<compile_context>
chip_gen: v7x
topology: tpu7x:2x2x1
jax: 0.10.0
libtpu: 0.0.40
codegen_flags: <defaults>
</compile_context>

<pallas_src>
import functools

import jax
import jax.numpy as jnp
from jax.experimental import pallas as pl
from jax.experimental.pallas import tpu as pltpu

# ----------------------------- model config ---------------------------------
CFG = dict(
    voc_size=20, embedding_dim=16, encoder_layers=2, kernel_size=5,
    encoder_dim=16, spec_dim=8, prenet_dim=16, decoder_dim=16,
    attention_dim=16, location_feature_dim=8, location_kernel_size=5,
    postnet_layers=2, postnet_dim=16, postnet_kernel_size=5,
)


def _act(y, act):
    if act == "relu":
        return jnp.maximum(y, 0.0)
    if act == "tanh":
        return jnp.tanh(y)
    if act == "sigmoid":
        return jax.nn.sigmoid(y)
    return y


def _lstm_gates(gates, c_prev, H):
    # gate order i, f, g, o on the column axis of a (rows, 4H) pre-activation
    i = jax.nn.sigmoid(gates[:, 0 * H:1 * H])
    f = jax.nn.sigmoid(gates[:, 1 * H:2 * H])
    g = jnp.tanh(gates[:, 2 * H:3 * H])
    o = jax.nn.sigmoid(gates[:, 3 * H:4 * H])
    c_new = f * c_prev + i * g
    return o * jnp.tanh(c_new), c_new


# ----------------------- dense / 1x1-conv kernel -----------------------------
def _dense_kernel(x_ref, w_ref, b_ref, o_ref, *, act):
    y = jnp.dot(x_ref[...], w_ref[...], preferred_element_type=jnp.float32)
    o_ref[...] = _act(y + b_ref[...], act)


def pallas_dense(x, w, b, act="none"):
    M = x.shape[0]
    N = w.shape[1]
    return pl.pallas_call(
        functools.partial(_dense_kernel, act=act),
        out_shape=jax.ShapeDtypeStruct((M, N), jnp.float32),
    )(x, w, b.reshape(1, N))


# -------------------- conv1d (+ BatchNorm train + act) kernel ----------------
# im2col outside the kernel; inside: ONE matmul, BN over all rows, single store.
def _conv_bn_act_kernel(x_ref, w_ref, b_ref, g_ref, be_ref, o_ref,
                        *, act, use_bn, eps, n):
    y = jnp.dot(x_ref[...], w_ref[...], preferred_element_type=jnp.float32)
    y = y + b_ref[...]
    if use_bn:
        mean = jnp.sum(y, axis=0, keepdims=True) * (1.0 / n)
        d = y - mean
        var = jnp.sum(d * d, axis=0, keepdims=True) * (1.0 / n)
        y = d * jax.lax.rsqrt(var + eps) * g_ref[...] + be_ref[...]
    o_ref[...] = _act(y, act)


def pallas_conv1d_bn_act(x_cl, w, b, gamma=None, beta=None,
                         act="none", use_bn=False, eps=1e-5):
    # x_cl: (B, L, Cin) channel-last ; w: (K, Cin, Cout) ; padding = K // 2
    B, L, Cin = x_cl.shape
    K, _, Cout = w.shape
    pad = K // 2
    x_pad = jnp.pad(x_cl, ((0, 0), (pad, pad), (0, 0))) if pad else x_cl
    cols = jnp.concatenate([x_pad[:, k:k + L, :] for k in range(K)], axis=-1)
    x2 = cols.reshape(B * L, K * Cin)              # im2col rows
    w2 = w.reshape(K * Cin, Cout)
    if gamma is None:
        gamma = jnp.ones((1, Cout), jnp.float32)
    if beta is None:
        beta = jnp.zeros((1, Cout), jnp.float32)
    y = pl.pallas_call(
        functools.partial(_conv_bn_act_kernel, act=act, use_bn=use_bn,
                          eps=eps, n=float(B * L)),
        out_shape=jax.ShapeDtypeStruct((B * L, Cout), jnp.float32),
    )(x2, w2, b.reshape(1, Cout), gamma, beta)
    return y.reshape(B, L, Cout)


# --------------------- fused bidirectional LSTM (encoder) --------------------
def _bilstm_kernel(xf_ref, xb_ref, whf_ref, whb_ref,
                   hf_out, hb_out, hf, cf, hb, cb, *, H):
    @pl.when(pl.program_id(0) == 0)
    def _():
        hf[...] = jnp.zeros_like(hf)
        cf[...] = jnp.zeros_like(cf)
        hb[...] = jnp.zeros_like(hb)
        cb[...] = jnp.zeros_like(cb)

    # forward direction, position l  (input-side gates precomputed, incl. bias)
    gf = xf_ref[0] + jnp.dot(hf[...], whf_ref[...],
                             preferred_element_type=jnp.float32)
    hfn, cfn = _lstm_gates(gf, cf[...], H)
    hf[...] = hfn
    cf[...] = cfn
    hf_out[0] = hfn

    # backward direction, position L-1-l (handled by the reversed index maps)
    gb = xb_ref[0] + jnp.dot(hb[...], whb_ref[...],
                             preferred_element_type=jnp.float32)
    hbn, cbn = _lstm_gates(gb, cb[...], H)
    hb[...] = hbn
    cb[...] = cbn
    hb_out[0] = hbn


def pallas_bilstm(x_cl, lstm_f, lstm_b):
    B, L, C = x_cl.shape
    H = lstm_f["wh"].shape[0]
    xs = jnp.transpose(x_cl, (1, 0, 2)).reshape(L * B, C)        # (L*B, C)
    # hoisted input-side gate pre-activations for ALL timesteps (one matmul each)
    xf = pallas_dense(xs, lstm_f["wx"], lstm_f["b"]).reshape(L, B, 4 * H)
    xb = pallas_dense(xs, lstm_b["wx"], lstm_b["b"]).reshape(L, B, 4 * H)
    hf, hb = pl.pallas_call(
        functools.partial(_bilstm_kernel, H=H),
        out_shape=[jax.ShapeDtypeStruct((L, B, H), jnp.float32),
                   jax.ShapeDtypeStruct((L, B, H), jnp.float32)],
        grid_spec=pltpu.PrefetchScalarGridSpec(
            num_scalar_prefetch=0, grid=(L,),
            in_specs=[
                pl.BlockSpec((1, B, 4 * H), lambda l: (l, 0, 0)),
                pl.BlockSpec((1, B, 4 * H), lambda l: (L - 1 - l, 0, 0)),
                pl.BlockSpec((H, 4 * H), lambda l: (0, 0)),
                pl.BlockSpec((H, 4 * H), lambda l: (0, 0)),
            ],
            out_specs=[
                pl.BlockSpec((1, B, H), lambda l: (l, 0, 0)),
                pl.BlockSpec((1, B, H), lambda l: (L - 1 - l, 0, 0)),
            ],
            scratch_shapes=[pltpu.VMEM((B, H), jnp.float32)] * 4),
        compiler_params=pltpu.CompilerParams(
            dimension_semantics=("arbitrary",)),
    )(xf, xb, lstm_f["wh"], lstm_b["wh"])
    out = jnp.concatenate([hf, hb], axis=-1)                     # (L, B, 2H)
    return jnp.transpose(out, (1, 0, 2))                         # (B, L, 2H)


# ------------------- fused decoder recurrence (whole T loop) ------------------
def _decoder_step_kernel(pg_ref, enc_ref, vh_ref, mask_ref,
                         wxc_ref, wh0_ref, wx1_ref, wh1_ref, b1_ref,
                         ww_ref, wb_ref, fw_ref, uw_ref, vw_ref,
                         ow_ref, ob_ref,
                         fs_ref, aw_ref,
                         h0, c0, h1, c1, cum, ctx, aw_s,
                         *, B, Ti, K, pad, dec, spec):
    enc = enc_ref.shape[2]

    @pl.when(pl.program_id(0) == 0)
    def _():
        h0[...] = jnp.zeros_like(h0)
        c0[...] = jnp.zeros_like(c0)
        h1[...] = jnp.zeros_like(h1)
        c1[...] = jnp.zeros_like(c1)
        cum[...] = jnp.zeros_like(cum)
        ctx[...] = jnp.zeros_like(ctx)

    # rnn0: prenet-side gate pre-activation (incl. bias) was hoisted outside;
    # only the recurrent / context matmuls run inside the serial loop.
    g0 = (pg_ref[0]
          + jnp.dot(ctx[...], wxc_ref[...], preferred_element_type=jnp.float32)
          + jnp.dot(h0[...], wh0_ref[...], preferred_element_type=jnp.float32))
    h0n, c0n = _lstm_gates(g0, c0[...], dec)
    h0[...] = h0n
    c0[...] = c0n

    # rnn1
    g1 = (b1_ref[...]
          + jnp.dot(h0n, wx1_ref[...], preferred_element_type=jnp.float32)
          + jnp.dot(h1[...], wh1_ref[...], preferred_element_type=jnp.float32))
    h1n, c1n = _lstm_gates(g1, c1[...], dec)
    h1[...] = h1n
    c1[...] = c1n

    # location-sensitive attention, all B elements in this single invocation.
    ws = jnp.dot(h1n, ww_ref[...], preferred_element_type=jnp.float32) + wb_ref[...]
    for b in range(B):                                   # B=2 static unroll
        # F-conv (in_channels=1) over the zero-padded cumulative weights.
        loc = cum[0:Ti, b:b + 1] * fw_ref[0:1, :]
        for k in range(1, K):
            loc = loc + cum[k:k + Ti, b:b + 1] * fw_ref[k:k + 1, :]   # (Ti, locdim)
        uf = jnp.dot(loc, uw_ref[...], preferred_element_type=jnp.float32)
        e = jnp.tanh(ws[b:b + 1, :] + vh_ref[b] + uf)                 # (Ti, A)
        en = jnp.sum(e * vw_ref[...], axis=1, keepdims=True)          # (Ti, 1)
        # large negative instead of -inf: identical softmax when any position is
        # unmasked, and avoids NaN for a fully padded row.
        en = jnp.where(mask_ref[:, b:b + 1] > 0.5, -1e30, en)
        m = jnp.max(en, axis=0, keepdims=True)
        p = jnp.exp(en - m)
        w = p / jnp.sum(p, axis=0, keepdims=True)                     # softmax over Ti
        aw_s[:, b:b + 1] = w
        ctx[b:b + 1, :] = jnp.sum(enc_ref[b] * w, axis=0, keepdims=True)

    aw = aw_s[...]                                       # (Ti, B)
    ctx_new = ctx[...]                                   # (B, enc)
    cum[pad:pad + Ti, :] = cum[pad:pad + Ti, :] + aw     # cumulative weights

    # fused feature(+tanh) / stop projection: one weight, tanh only on feat cols.
    y = (jnp.dot(h1n, ow_ref[0:dec, :], preferred_element_type=jnp.float32)
         + jnp.dot(ctx_new, ow_ref[dec:dec + enc, :],
                   preferred_element_type=jnp.float32)
         + ob_ref[...])                                  # (B, spec+1)
    col = jax.lax.broadcasted_iota(jnp.int32, y.shape, 1)
    fs_ref[0] = jnp.where(col < spec, jnp.tanh(y), y)
    aw_ref[0] = aw


def pallas_decoder_recurrence(pre_gates, enc_cl, vh, chr_mask, p, cfg):
    T, B, _ = pre_gates.shape
    _, Ti, enc = enc_cl.shape
    dec = cfg["decoder_dim"]
    spec = cfg["spec_dim"]
    A = cfg["attention_dim"]
    loc = cfg["location_feature_dim"]
    K = cfg["location_kernel_size"]
    pre = cfg["prenet_dim"]
    pad = K // 2

    wx_ctx = p["rnn0"]["wx"][pre:]                               # (enc, 4*dec)
    out_w = jnp.concatenate([p["feat_w"], p["stop_w"]], axis=1)  # (dec+enc, spec+1)
    out_b = jnp.concatenate([p["feat_b"], p["stop_b"]]).reshape(1, spec + 1)
    mask_tb = chr_mask.astype(jnp.float32).T                     # (Ti, B)

    def resident(shape):
        return pl.BlockSpec(shape, lambda t: (0,) * len(shape))

    fs, aws = pl.pallas_call(
        functools.partial(_decoder_step_kernel, B=B, Ti=Ti, K=K, pad=pad,
                          dec=dec, spec=spec),
        out_shape=[jax.ShapeDtypeStruct((T, B, spec + 1), jnp.float32),
                   jax.ShapeDtypeStruct((T, Ti, B), jnp.float32)],
        grid_spec=pltpu.PrefetchScalarGridSpec(
            num_scalar_prefetch=0, grid=(T,),
            in_specs=[
                pl.BlockSpec((1, B, 4 * dec), lambda t: (t, 0, 0)),  # streamed
                resident((B, Ti, enc)),                              # enc features
                resident((B, Ti, A)),                                # Vh (cached)
                resident((Ti, B)),                                   # mask
                resident((enc, 4 * dec)),                            # rnn0 ctx weight
                resident((dec, 4 * dec)),                            # rnn0 wh
                resident((dec, 4 * dec)),                            # rnn1 wx
                resident((dec, 4 * dec)),                            # rnn1 wh
                resident((1, 4 * dec)),                              # rnn1 bias
                resident((dec, A)),                                  # att W
                resident((1, A)),                                    # att W bias
                resident((K, loc)),                                  # att F
                resident((loc, A)),                                  # att U
                resident((1, A)),                                    # att v
                resident((dec + enc, spec + 1)),                     # fused out W
                resident((1, spec + 1)),                             # fused out b
            ],
            out_specs=[
                pl.BlockSpec((1, B, spec + 1), lambda t: (t, 0, 0)),
                pl.BlockSpec((1, Ti, B), lambda t: (t, 0, 0)),
            ],
            scratch_shapes=[pltpu.VMEM((B, dec), jnp.float32)] * 4
                           + [pltpu.VMEM((Ti + 2 * pad, B), jnp.float32),
                              pltpu.VMEM((B, enc), jnp.float32),
                              pltpu.VMEM((Ti, B), jnp.float32)]),
        compiler_params=pltpu.CompilerParams(
            dimension_semantics=("arbitrary",)),
    )(pre_gates, enc_cl, vh, mask_tb, wx_ctx, p["rnn0"]["wh"],
      p["rnn1"]["wx"], p["rnn1"]["wh"], p["rnn1"]["b"],
      p["att_Ww"], p["att_Wb"], p["att_Fw"], p["att_Uw"], p["att_vw"],
      out_w, out_b)
    return fs, aws


# ------------------------------- encoder -------------------------------------
def encoder_forward(p, chr_tensor, cfg):
    x = p["emb"][chr_tensor]                                   # (B, L, emb)
    for layer in p["enc_convs"]:
        x = pallas_conv1d_bn_act(x, layer["w"], layer["b"], layer["g"],
                                 layer["be"], act="relu", use_bn=True)
    return pallas_bilstm(x, p["lstm_f"], p["lstm_b"])          # (B, L, enc) channel-last


# ------------------------------- decoder -------------------------------------
def decoder_forward(p, enc_cl, chr_mask, spectrogram, spec_mask, drop_key, cfg):
    B, Ti, enc = enc_cl.shape
    spec_dim, dec = cfg["spec_dim"], cfg["decoder_dim"]
    pre, A = cfg["prenet_dim"], cfg["attention_dim"]
    T = spectrogram.shape[2]

    # prenet: Conv1d(1x1) -> StaticDropout(0.5, training=True) -> ReLU, twice.
    # TODO(synk): dropout RNG uses jax.random (cannot bit-match torch's RNG).
    x = jnp.transpose(spectrogram, (0, 2, 1)).reshape(B * T, spec_dim)
    k1, k2 = jax.random.split(drop_key)
    h = pallas_dense(x, p["pre_w1"], p["pre_b1"])
    h = jnp.maximum(jnp.where(jax.random.bernoulli(k1, 0.5, h.shape), h * 2.0, 0.0), 0.0)
    h = pallas_dense(h, p["pre_w2"], p["pre_b2"])
    h = jnp.maximum(jnp.where(jax.random.bernoulli(k2, 0.5, h.shape), h * 2.0, 0.0), 0.0)

    # hoist rnn0's input-side (prenet) gate matmul + bias out of the recurrence.
    pg = pallas_dense(h, p["rnn0"]["wx"][:pre], p["rnn0"]["b"])        # (B*T, 4*dec)
    pre_gates = jnp.transpose(pg.reshape(B, T, 4 * dec), (1, 0, 2))    # (T, B, 4*dec)

    # attention.Vh cached once per forward (V is a bias-free 1x1 conv).
    vh = pallas_dense(enc_cl.reshape(B * Ti, enc), p["att_Vw"],
                      jnp.zeros((A,), jnp.float32)).reshape(B, Ti, A)

    fs, aws = pallas_decoder_recurrence(pre_gates, enc_cl, vh, chr_mask, p, cfg)
    feat_outputs = jnp.transpose(fs[:, :, :spec_dim], (1, 2, 0))       # (B, spec, T)
    stop_tokens = jnp.transpose(fs[:, :, spec_dim], (1, 0))            # (B, T)
    attention_weights = jnp.transpose(aws, (2, 1, 0))                  # (B, Ti, T)

    # post net (nn.Sequential(*[conv,bn,tanh]*N) reuses the SAME modules, so the
    # body conv+bn+tanh is applied N times with shared weights).
    y = jnp.transpose(feat_outputs, (0, 2, 1))                         # (B, T, spec)
    y = pallas_conv1d_bn_act(y, p["post_in_w"], p["post_in_b"],
                             p["post_in_g"], p["post_in_be"],
                             act="tanh", use_bn=True)
    for _ in range(cfg["postnet_layers"]):
        y = pallas_conv1d_bn_act(y, p["post_body_w"], p["post_body_b"],
                                 p["post_body_g"], p["post_body_be"],
                                 act="tanh", use_bn=True)
    y = pallas_conv1d_bn_act(y, p["post_out_w"], p["post_out_b"],
                             act="none", use_bn=False)
    feat_residual = jnp.transpose(y, (0, 2, 1))                        # (B, spec, T)

    dm = spec_mask[:, None, :]
    feat_outputs = jnp.where(dm, -1.0, feat_outputs)
    feat_residual = jnp.where(dm, 0.0, feat_residual)
    attention_weights = jnp.where(dm, 0.0, attention_weights)
    stop_tokens = jnp.where(spec_mask, 1000.0, stop_tokens)
    return feat_outputs, feat_residual, stop_tokens, attention_weights


def tacotron2_forward(params, chr_tensor, spectrogram, chr_mask, spec_mask, drop_key):
    enc_cl = encoder_forward(params, chr_tensor, CFG)
    return decoder_forward(params, enc_cl, chr_mask, spectrogram, spec_mask,
                           drop_key, CFG)


# ----------------------------- parameter init --------------------------------
def init_params(key, cfg):
    keys = iter(jax.random.split(key, 64))

    def nrm(*shape):
        return jax.random.normal(next(keys), shape, jnp.float32) * 0.1

    voc, emb, enc = cfg["voc_size"], cfg["embedding_dim"], cfg["encoder_dim"]
    K, spec, pre = cfg["kernel_size"], cfg["spec_dim"], cfg["prenet_dim"]
    dec, A, loc = cfg["decoder_dim"], cfg["attention_dim"], cfg["location_feature_dim"]
    lK, pd, pK = cfg["location_kernel_size"], cfg["postnet_dim"], cfg["postnet_kernel_size"]
    H = enc // 2

    def lstm_params(in_dim, hid):
        # pre-concatenated gate weights (i,f,g,o along the column axis)
        return dict(wx=nrm(in_dim, 4 * hid), wh=nrm(hid, 4 * hid), b=nrm(1, 4 * hid))

    p = {}
    p["emb"] = nrm(voc, emb).at[0].set(0.0)                   # padding_idx=0
    p["enc_convs"] = []
    cin = emb
    for _ in range(cfg["encoder_layers"]):
        p["enc_convs"].append(dict(w=nrm(K, cin, enc), b=nrm(enc),
                                   g=jnp.ones((1, enc), jnp.float32),
                                   be=jnp.zeros((1, enc), jnp.float32)))
        cin = enc
    p["lstm_f"] = lstm_params(enc, H)
    p["lstm_b"] = lstm_params(enc, H)

    p["pre_w1"], p["pre_b1"] = nrm(spec, pre), nrm(pre)
    p["pre_w2"], p["pre_b2"] = nrm(pre, pre), nrm(pre)
    p["att_Ww"], p["att_Wb"] = nrm(dec, A), nrm(1, A)
    p["att_Vw"] = nrm(enc, A)
    p["att_Uw"] = nrm(loc, A)
    p["att_Fw"] = nrm(lK, loc)                                # F conv, in_channels=1
    p["att_vw"] = nrm(1, A)
    p["rnn0"] = lstm_params(pre + enc, dec)
    p["rnn1"] = lstm_params(dec, dec)
    p["feat_w"], p["feat_b"] = nrm(dec + enc, spec), nrm(spec)
    p["stop_w"], p["stop_b"] = nrm(dec + enc, 1), nrm(1)
    p["post_in_w"], p["post_in_b"] = nrm(1, spec, pd), nrm(pd)
    p["post_in_g"] = jnp.ones((1, pd), jnp.float32)
    p["post_in_be"] = jnp.zeros((1, pd), jnp.float32)
    p["post_body_w"], p["post_body_b"] = nrm(pK, pd, pd), nrm(pd)
    p["post_body_g"] = jnp.ones((1, pd), jnp.float32)
    p["post_body_be"] = jnp.zeros((1, pd), jnp.float32)
    p["post_out_w"], p["post_out_b"] = nrm(1, pd, spec), nrm(spec)
    return p


# --------------------------------- main ---------------------------------------
if __name__ == "__main__":
    key = jax.random.PRNGKey(0)
    k_chr, k_spec, k_par, k_drop = jax.random.split(key, 4)

    B, Ti, T = 2, 8, 8
    chr_lengths = jnp.array([8, 6])
    spec_lengths = jnp.array([8, 5])

    chr_tensor = jax.random.randint(k_chr, (B, Ti), 1, CFG["voc_size"],
                                    dtype=jnp.int32)
    chr_mask = jnp.arange(Ti)[None, :] >= chr_lengths[:, None]          # True = padded
    chr_tensor = jnp.where(chr_mask, 0, chr_tensor)
    spectrogram = jax.random.normal(k_spec, (B, CFG["spec_dim"], T), jnp.float32)
    spec_mask = jnp.arange(T)[None, :] >= spec_lengths[:, None]

    params = init_params(k_par, CFG)

    fwd = jax.jit(tacotron2_forward)
    raugh_spec, res_spec, stop_tokens, attention_weights = fwd(
        params, chr_tensor, spectrogram, chr_mask, spec_mask, k_drop)

    jax.block_until_ready((raugh_spec, res_spec, stop_tokens, attention_weights))
    assert raugh_spec.shape == (B, CFG["spec_dim"], T)
    assert res_spec.shape == (B, CFG["spec_dim"], T)
    assert stop_tokens.shape == (B, T)
    assert attention_weights.shape == (B, Ti, T)
    print("KERNEL_OK")
</pallas_src>

<mosaic_0001>
module attributes {stable_mosaic.version = 11 : i64} {
  func.func @_dense_kernel(%arg0: memref<16x8xf32, #tpu.memory_space<vmem>>, %arg1: memref<8x16xf32, #tpu.memory_space<vmem>>, %arg2: memref<1x16xf32, #tpu.memory_space<vmem>>, %arg3: memref<16x16xf32, #tpu.memory_space<vmem>>) attributes {dimension_semantics = [], scalar_prefetch = 0 : i64, scratch_operands = 0 : i64, tpu.core_type = #tpu.core_type<tc>} {
    %c0 = arith.constant 0 : index
    %c0_0 = arith.constant 0 : index
    %0 = vector.load %arg0[%c0, %c0_0] : memref<16x8xf32, #tpu.memory_space<vmem>>, vector<16x8xf32>
    %c0_1 = arith.constant 0 : index
    %c0_2 = arith.constant 0 : index
    %1 = vector.load %arg1[%c0_1, %c0_2] : memref<8x16xf32, #tpu.memory_space<vmem>>, vector<8x16xf32>
    %cst = arith.constant dense<0.000000e+00> : vector<16x16xf32>
    %2 = tpu.matmul %0, %1, %cst {dimension_numbers = #tpu.dot_dimension_numbers<[1], [0], [0], [1], [0, 0, 1, 1], [], []>} : vector<16x8xf32>, vector<8x16xf32>, vector<16x16xf32> -> vector<16x16xf32>
    %c0_3 = arith.constant 0 : index
    %c0_4 = arith.constant 0 : index
    %3 = vector.load %arg2[%c0_3, %c0_4] : memref<1x16xf32, #tpu.memory_space<vmem>>, vector<1x16xf32>
    %4 = vector.broadcast %3 : vector<1x16xf32> to vector<16x16xf32>
    %5 = arith.addf %2, %4 : vector<16x16xf32>
    %c0_5 = arith.constant 0 : index
    %c0_6 = arith.constant 0 : index
    %6 = vector.load %arg3[%c0_5, %c0_6] : memref<16x16xf32, #tpu.memory_space<vmem>>, vector<16x16xf32>
    tpu.vector_store %arg3[%c0_5, %c0_6], %5 {strides = array<i32>} : memref<16x16xf32, #tpu.memory_space<vmem>>, vector<16x16xf32>,
    return
  }
}

module attributes {stable_mosaic.version = 11 : i64} {
  func.func @_dense_kernel(%arg0: memref<16x16xf32, #tpu.memory_space<vmem>>, %arg1: memref<16x16xf32, #tpu.memory_space<vmem>>, %arg2: memref<1x16xf32, #tpu.memory_space<vmem>>, %arg3: memref<16x16xf32, #tpu.memory_space<vmem>>) attributes {dimension_semantics = [], scalar_prefetch = 0 : i64, scratch_operands = 0 : i64, tpu.core_type = #tpu.core_type<tc>} {
    %c0 = arith.constant 0 : index
    %c0_0 = arith.constant 0 : index
    %0 = vector.load %arg0[%c0, %c0_0] : memref<16x16xf32, #tpu.memory_space<vmem>>, vector<16x16xf32>
    %c0_1 = arith.constant 0 : index
    %c0_2 = arith.constant 0 : index
    %1 = vector.load %arg1[%c0_1, %c0_2] : memref<16x16xf32, #tpu.memory_space<vmem>>, vector<16x16xf32>
    %cst = arith.constant dense<0.000000e+00> : vector<16x16xf32>
    %2 = tpu.matmul %0, %1, %cst {dimension_numbers = #tpu.dot_dimension_numbers<[1], [0], [0], [1], [0, 0, 1, 1], [], []>} : vector<16x16xf32>, vector<16x16xf32>, vector<16x16xf32> -> vector<16x16xf32>
    %c0_3 = arith.constant 0 : index
    %c0_4 = arith.constant 0 : index
    %3 = vector.load %arg2[%c0_3, %c0_4] : memref<1x16xf32, #tpu.memory_space<vmem>>, vector<1x16xf32>
    %4 = vector.broadcast %3 : vector<1x16xf32> to vector<16x16xf32>
    %5 = arith.addf %2, %4 : vector<16x16xf32>
    %c0_5 = arith.constant 0 : index
    %c0_6 = arith.constant 0 : index
    %6 = vector.load %arg3[%c0_5, %c0_6] : memref<16x16xf32, #tpu.memory_space<vmem>>, vector<16x16xf32>
    tpu.vector_store %arg3[%c0_5, %c0_6], %5 {strides = array<i32>} : memref<16x16xf32, #tpu.memory_space<vmem>>, vector<16x16xf32>,
    return
  }
}

module attributes {stable_mosaic.version = 11 : i64} {
  func.func @_dense_kernel(%arg0: memref<16x16xf32, #tpu.memory_space<vmem>>, %arg1: memref<16x64xf32, #tpu.memory_space<vmem>>, %arg2: memref<1x64xf32, #tpu.memory_space<vmem>>, %arg3: memref<16x64xf32, #tpu.memory_space<vmem>>) attributes {dimension_semantics = [], scalar_prefetch = 0 : i64, scratch_operands = 0 : i64, tpu.core_type = #tpu.core_type<tc>} {
    %c0 = arith.constant 0 : index
    %c0_0 = arith.constant 0 : index
    %0 = vector.load %arg0[%c0, %c0_0] : memref<16x16xf32, #tpu.memory_space<vmem>>, vector<16x16xf32>
    %c0_1 = arith.constant 0 : index
    %c0_2 = arith.constant 0 : index
    %1 = vector.load %arg1[%c0_1, %c0_2] : memref<16x64xf32, #tpu.memory_space<vmem>>, vector<16x64xf32>
    %cst = arith.constant dense<0.000000e+00> : vector<16x64xf32>
    %2 = tpu.matmul %0, %1, %cst {dimension_numbers = #tpu.dot_dimension_numbers<[1], [0], [0], [1], [0, 0, 1, 1], [], []>} : vector<16x16xf32>, vector<16x64xf32>, vector<16x64xf32> -> vector<16x64xf32>
    %c0_3 = arith.constant 0 : index
    %c0_4 = arith.constant 0 : index
    %3 = vector.load %arg2[%c0_3, %c0_4] : memref<1x64xf32, #tpu.memory_space<vmem>>, vector<1x64xf32>
    %4 = vector.broadcast %3 : vector<1x64xf32> to vector<16x64xf32>
    %5 = arith.addf %2, %4 : vector<16x64xf32>
    %c0_5 = arith.constant 0 : index
    %c0_6 = arith.constant 0 : index
    %6 = vector.load %arg3[%c0_5, %c0_6] : memref<16x64xf32, #tpu.memory_space<vmem>>, vector<16x64xf32>
    tpu.vector_store %arg3[%c0_5, %c0_6], %5 {strides = array<i32>} : memref<16x64xf32, #tpu.memory_space<vmem>>, vector<16x64xf32>,
    return
  }
}

module attributes {stable_mosaic.version = 11 : i64} {
  func.func @_conv_bn_act_kernel(%arg0: memref<16x80xf32, #tpu.memory_space<vmem>>, %arg1: memref<80x16xf32, #tpu.memory_space<vmem>>, %arg2: memref<1x16xf32, #tpu.memory_space<vmem>>, %arg3: memref<1x16xf32, #tpu.memory_space<vmem>>, %arg4: memref<1x16xf32, #tpu.memory_space<vmem>>, %arg5: memref<16x16xf32, #tpu.memory_space<vmem>>) attributes {dimension_semantics = [], scalar_prefetch = 0 : i64, scratch_operands = 0 : i64, tpu.core_type = #tpu.core_type<tc>} {
    %c0 = arith.constant 0 : index
    %c0_0 = arith.constant 0 : index
    %0 = vector.load %arg0[%c0, %c0_0] : memref<16x80xf32, #tpu.memory_space<vmem>>, vector<16x80xf32>
    %c0_1 = arith.constant 0 : index
    %c0_2 = arith.constant 0 : index
    %1 = vector.load %arg1[%c0_1, %c0_2] : memref<80x16xf32, #tpu.memory_space<vmem>>, vector<80x16xf32>
    %cst = arith.constant dense<0.000000e+00> : vector<16x16xf32>
    %2 = tpu.matmul %0, %1, %cst {dimension_numbers = #tpu.dot_dimension_numbers<[1], [0], [0], [1], [0, 0, 1, 1], [], []>} : vector<16x80xf32>, vector<80x16xf32>, vector<16x16xf32> -> vector<16x16xf32>
    %c0_3 = arith.constant 0 : index
    %c0_4 = arith.constant 0 : index
    %3 = vector.load %arg2[%c0_3, %c0_4] : memref<1x16xf32, #tpu.memory_space<vmem>>, vector<1x16xf32>
    %4 = vector.broadcast %3 : vector<1x16xf32> to vector<16x16xf32>
    %5 = arith.addf %2, %4 : vector<16x16xf32>
    %cst_5 = arith.constant dense<0.000000e+00> : vector<16xf32>
    %6 = vector.multi_reduction <add>, %5, %cst_5 [0] : vector<16x16xf32> to vector<16xf32>
    %7 = vector.shape_cast %6 : vector<16xf32> to vector<1x16xf32>
    %cst_6 = arith.constant 6.250000e-02 : f32
    %8 = vector.broadcast %cst_6 : f32 to vector<1x16xf32>
    %9 = arith.mulf %7, %8 : vector<1x16xf32>
    %10 = vector.broadcast %9 : vector<1x16xf32> to vector<16x16xf32>
    %11 = arith.subf %5, %10 : vector<16x16xf32>
    %12 = arith.mulf %11, %11 : vector<16x16xf32>
    %cst_7 = arith.constant dense<0.000000e+00> : vector<16xf32>
    %13 = vector.multi_reduction <add>, %12, %cst_7 [0] : vector<16x16xf32> to vector<16xf32>
    %14 = vector.shape_cast %13 : vector<16xf32> to vector<1x16xf32>
    %cst_8 = arith.constant 6.250000e-02 : f32
    %15 = vector.broadcast %cst_8 : f32 to vector<1x16xf32>
    %16 = arith.mulf %14, %15 : vector<1x16xf32>
    %cst_9 = arith.constant 9.99999974E-6 : f32
    %17 = vector.broadcast %cst_9 : f32 to vector<1x16xf32>
    %18 = arith.addf %16, %17 : vector<1x16xf32>
    %19 = math.rsqrt %18 : vector<1x16xf32>
    %20 = vector.broadcast %19 : vector<1x16xf32> to vector<16x16xf32>
    %21 = arith.mulf %11, %20 : vector<16x16xf32>
    %c0_10 = arith.constant 0 : index
    %c0_11 = arith.constant 0 : index
    %22 = vector.load %arg3[%c0_10, %c0_11] : memref<1x16xf32, #tpu.memory_space<vmem>>, vector<1x16xf32>
    %23 = vector.broadcast %22 : vector<1x16xf32> to vector<16x16xf32>
    %24 = arith.mulf %21, %23 : vector<16x16xf32>
    %c0_12 = arith.constant 0 : index
    %c0_13 = arith.constant 0 : index
    %25 = vector.load %arg4[%c0_12, %c0_13] : memref<1x16xf32, #tpu.memory_space<vmem>>, vector<1x16xf32>
    %26 = vector.broadcast %25 : vector<1x16xf32> to vector<16x16xf32>
    %27 = arith.addf %24, %26 : vector<16x16xf32>
    %cst_14 = arith.constant 0.000000e+00 : f32
    %28 = vector.broadcast %cst_14 : f32 to vector<16x16xf32>
    %29 = arith.maximumf %27, %28 : vector<16x16xf32>
    %c0_15 = arith.constant 0 : index
    %c0_16 = arith.constant 0 : index
    %30 = vector.load %arg5[%c0_15, %c0_16] : memref<16x16xf32, #tpu.memory_space<vmem>>, vector<16x16xf32>
    tpu.vector_store %arg5[%c0_15, %c0_16], %29 {strides = array<i32>} : memref<16x16xf32, #tpu.memory_space<vmem>>, vector<16x16xf32>,
    return
  }
}

module attributes {stable_mosaic.version = 11 : i64} {
  func.func @_dense_kernel(%arg0: memref<16x16xf32, #tpu.memory_space<vmem>>, %arg1: memref<16x32xf32, #tpu.memory_space<vmem>>, %arg2: memref<1x32xf32, #tpu.memory_space<vmem>>, %arg3: memref<16x32xf32, #tpu.memory_space<vmem>>) attributes {dimension_semantics = [], scalar_prefetch = 0 : i64, scratch_operands = 0 : i64, tpu.core_type = #tpu.core_type<tc>} {
    %c0 = arith.constant 0 : index
    %c0_0 = arith.constant 0 : index
    %0 = vector.load %arg0[%c0, %c0_0] : memref<16x16xf32, #tpu.memory_space<vmem>>, vector<16x16xf32>
    %c0_1 = arith.constant 0 : index
    %c0_2 = arith.constant 0 : index
    %1 = vector.load %arg1[%c0_1, %c0_2] : memref<16x32xf32, #tpu.memory_space<vmem>>, vector<16x32xf32>
    %cst = arith.constant dense<0.000000e+00> : vector<16x32xf32>
    %2 = tpu.matmul %0, %1, %cst {dimension_numbers = #tpu.dot_dimension_numbers<[1], [0], [0], [1], [0, 0, 1, 1], [], []>} : vector<16x16xf32>, vector<16x32xf32>, vector<16x32xf32> -> vector<16x32xf32>
    %c0_3 = arith.constant 0 : index
    %c0_4 = arith.constant 0 : index
    %3 = vector.load %arg2[%c0_3, %c0_4] : memref<1x32xf32, #tpu.memory_space<vmem>>, vector<1x32xf32>
    %4 = vector.broadcast %3 : vector<1x32xf32> to vector<16x32xf32>
    %5 = arith.addf %2, %4 : vector<16x32xf32>
    %c0_5 = arith.constant 0 : index
    %c0_6 = arith.constant 0 : index
    %6 = vector.load %arg3[%c0_5, %c0_6] : memref<16x32xf32, #tpu.memory_space<vmem>>, vector<16x32xf32>
    tpu.vector_store %arg3[%c0_5, %c0_6], %5 {strides = array<i32>} : memref<16x32xf32, #tpu.memory_space<vmem>>, vector<16x32xf32>,
    return
  }
}

module attributes {stable_mosaic.version = 11 : i64} {
  func.func @_bilstm_kernel(%arg0: i32, %arg1: memref<1x2x32xf32, #tpu.memory_space<vmem>>, %arg2: memref<1x2x32xf32, #tpu.memory_space<vmem>>, %arg3: memref<8x32xf32, #tpu.memory_space<vmem>>, %arg4: memref<8x32xf32, #tpu.memory_space<vmem>>, %arg5: memref<1x2x8xf32, #tpu.memory_space<vmem>>, %arg6: memref<1x2x8xf32, #tpu.memory_space<vmem>>, %arg7: memref<2x8xf32, #tpu.memory_space<vmem>>, %arg8: memref<2x8xf32, #tpu.memory_space<vmem>>, %arg9: memref<2x8xf32, #tpu.memory_space<vmem>>, %arg10: memref<2x8xf32, #tpu.memory_space<vmem>>) attributes {dimension_semantics = [#tpu.dimension_semantics<arbitrary>], iteration_bounds = array<i64: 8>, scalar_prefetch = 0 : i64, scratch_operands = 4 : i64, tpu.core_type = #tpu.core_type<tc>, window_params = [{transform_indices = @transform_0, window_bounds = array<i64: 1, 2, 32>}, {transform_indices = @transform_1, window_bounds = array<i64: 1, 2, 32>}, {pipeline_mode = #tpu.pipeline_mode<synchronous>, transform_indices = @transform_2, window_bounds = array<i64: 8, 32>}, {pipeline_mode = #tpu.pipeline_mode<synchronous>, transform_indices = @transform_3, window_bounds = array<i64: 8, 32>}, {transform_indices = @transform_4, window_bounds = array<i64: 1, 2, 8>}, {transform_indices = @transform_5, window_bounds = array<i64: 1, 2, 8>}]} {
    %c0_i32 = arith.constant 0 : i32
    %0 = arith.cmpi eq, %arg0, %c0_i32 : i32
    %1 = arith.extui %0 : i1 to i32
    %c0_i32_0 = arith.constant 0 : i32
    %2 = arith.cmpi ne, %1, %c0_i32_0 : i32
    scf.if %2 {
      %cst_39 = arith.constant 0.000000e+00 : f32
      %77 = vector.broadcast %cst_39 : f32 to vector<2x8xf32>
      %c0_40 = arith.constant 0 : index
      %c0_41 = arith.constant 0 : index
      %78 = vector.load %arg7[%c0_40, %c0_41] : memref<2x8xf32, #tpu.memory_space<vmem>>, vector<2x8xf32>
      tpu.vector_store %arg7[%c0_40, %c0_41], %77 {strides = array<i32>} : memref<2x8xf32, #tpu.memory_space<vmem>>, vector<2x8xf32>,
      %cst_42 = arith.constant 0.000000e+00 : f32
      %79 = vector.broadcast %cst_42 : f32 to vector<2x8xf32>
      %c0_43 = arith.constant 0 : index
      %c0_44 = arith.constant 0 : index
      %80 = vector.load %arg8[%c0_43, %c0_44] : memref<2x8xf32, #tpu.memory_space<vmem>>, vector<2x8xf32>
      tpu.vector_store %arg8[%c0_43, %c0_44], %79 {strides = array<i32>} : memref<2x8xf32, #tpu.memory_space<vmem>>, vector<2x8xf32>,
      %cst_45 = arith.constant 0.000000e+00 : f32
      %81 = vector.broadcast %cst_45 : f32 to vector<2x8xf32>
      %c0_46 = arith.constant 0 : index
      %c0_47 = arith.constant 0 : index
      %82 = vector.load %arg9[%c0_46, %c0_47] : memref<2x8xf32, #tpu.memory_space<vmem>>, vector<2x8xf32>
      tpu.vector_store %arg9[%c0_46, %c0_47], %81 {strides = array<i32>} : memref<2x8xf32, #tpu.memory_space<vmem>>, vector<2x8xf32>,
      %cst_48 = arith.constant 0.000000e+00 : f32
      %83 = vector.broadcast %cst_48 : f32 to vector<2x8xf32>
      %c0_49 = arith.constant 0 : index
      %c0_50 = arith.constant 0 : index
      %84 = vector.load %arg10[%c0_49, %c0_50] : memref<2x8xf32, #tpu.memory_space<vmem>>, vector<2x8xf32>
      tpu.vector_store %arg10[%c0_49, %c0_50], %83 {strides = array<i32>} : memref<2x8xf32, #tpu.memory_space<vmem>>, vector<2x8xf32>,
    } else {
    }
    %c0 = arith.constant 0 : index
    %c0_1 = arith.constant 0 : index
    %c0_2 = arith.constant 0 : index
    %3 = vector.load %arg1[%c0, %c0_1, %c0_2] : memref<1x2x32xf32, #tpu.memory_space<vmem>>, vector<1x2x32xf32>
    %4 = vector.shape_cast %3 : vector<1x2x32xf32> to vector<2x32xf32>
    %c0_3 = arith.constant 0 : index
    %c0_4 = arith.constant 0 : index
    %5 = vector.load %arg7[%c0_3, %c0_4] : memref<2x8xf32, #tpu.memory_space<vmem>>, vector<2x8xf32>
    %c0_5 = arith.constant 0 : index
    %c0_6 = arith.constant 0 : index
    %6 = vector.load %arg3[%c0_5, %c0_6] : memref<8x32xf32, #tpu.memory_space<vmem>>, vector<8x32xf32>
    %cst = arith.constant dense<0.000000e+00> : vector<2x32xf32>
    %7 = tpu.matmul %5, %6, %cst {dimension_numbers = #tpu.dot_dimension_numbers<[1], [0], [0], [1], [0, 0, 1, 1], [], []>} : vector<2x8xf32>, vector<8x32xf32>, vector<2x32xf32> -> vector<2x32xf32>
    %8 = arith.addf %4, %7 : vector<2x32xf32>
    %c0_7 = arith.constant 0 : index
    %c0_8 = arith.constant 0 : index
    %9 = vector.load %arg8[%c0_7, %c0_8] : memref<2x8xf32, #tpu.memory_space<vmem>>, vector<2x8xf32>
    %10 = vector.extract_strided_slice %8 {offsets = [0, 0], sizes = [2, 8], strides = [1, 1]} : vector<2x32xf32> to vector<2x8xf32>
    %11 = arith.negf %10 : vector<2x8xf32>
    %12 = math.exp %11 : vector<2x8xf32>
    %cst_9 = arith.constant 1.000000e+00 : f32
    %13 = vector.broadcast %cst_9 : f32 to vector<2x8xf32>
    %14 = arith.addf %13, %12 : vector<2x8xf32>
    %15 = arith.divf %13, %14 : vector<2x8xf32>
    %16 = vector.extract_strided_slice %8 {offsets = [0, 8], sizes = [2, 8], strides = [1, 1]} : vector<2x32xf32> to vector<2x8xf32>
    %17 = arith.negf %16 : vector<2x8xf32>
    %18 = math.exp %17 : vector<2x8xf32>
    %cst_10 = arith.constant 1.000000e+00 : f32
    %19 = vector.broadcast %cst_10 : f32 to vector<2x8xf32>
    %20 = arith.addf %19, %18 : vector<2x8xf32>
    %21 = arith.divf %19, %20 : vector<2x8xf32>
    %22 = vector.extract_strided_slice %8 {offsets = [0, 16], sizes = [2, 8], strides = [1, 1]} : vector<2x32xf32> to vector<2x8xf32>
    %23 = math.tanh %22 : vector<2x8xf32>
    %24 = vector.extract_strided_slice %8 {offsets = [0, 24], sizes = [2, 8], strides = [1, 1]} : vector<2x32xf32> to vector<2x8xf32>
    %25 = arith.negf %24 : vector<2x8xf32>
    %26 = math.exp %25 : vector<2x8xf32>
    %cst_11 = arith.constant 1.000000e+00 : f32
    %27 = vector.broadcast %cst_11 : f32 to vector<2x8xf32>
    %28 = arith.addf %27, %26 : vector<2x8xf32>
    %29 = arith.divf %27, %28 : vector<2x8xf32>
    %30 = arith.mulf %21, %9 : vector<2x8xf32>
    %31 = arith.mulf %15, %23 : vector<2x8xf32>
    %32 = arith.addf %30, %31 : vector<2x8xf32>
    %33 = math.tanh %32 : vector<2x8xf32>
    %34 = arith.mulf %29, %33 : vector<2x8xf32>
    %c0_12 = arith.constant 0 : index
    %c0_13 = arith.constant 0 : index
    %35 = vector.load %arg7[%c0_12, %c0_13] : memref<2x8xf32, #tpu.memory_space<vmem>>, vector<2x8xf32>
    tpu.vector_store %arg7[%c0_12, %c0_13], %34 {strides = array<i32>} : memref<2x8xf32, #tpu.memory_space<vmem>>, vector<2x8xf32>,
    %c0_14 = arith.constant 0 : index
    %c0_15 = arith.constant 0 : index
    %36 = vector.load %arg8[%c0_14, %c0_15] : memref<2x8xf32, #tpu.memory_space<vmem>>, vector<2x8xf32>
    tpu.vector_store %arg8[%c0_14, %c0_15], %32 {strides = array<i32>} : memref<2x8xf32, #tpu.memory_space<vmem>>, vector<2x8xf32>,
    %c0_16 = arith.constant 0 : index
    %c0_17 = arith.constant 0 : index
    %c0_18 = arith.constant 0 : index
    %37 = vector.load %arg5[%c0_16, %c0_17, %c0_18] : memref<1x2x8xf32, #tpu.memory_space<vmem>>, vector<1x2x8xf32>
    %38 = vector.shape_cast %37 : vector<1x2x8xf32> to vector<2x8xf32>
    %39 = vector.shape_cast %34 : vector<2x8xf32> to vector<1x2x8xf32>
    tpu.vector_store %arg5[%c0_16, %c0_17, %c0_18], %39 {strides = array<i32>} : memref<1x2x8xf32, #tpu.memory_space<vmem>>, vector<1x2x8xf32>,
    %c0_19 = arith.constant 0 : index
    %c0_20 = arith.constant 0 : index
    %c0_21 = arith.constant 0 : index
    %40 = vector.load %arg2[%c0_19, %c0_20, %c0_21] : memref<1x2x32xf32, #tpu.memory_space<vmem>>, vector<1x2x32xf32>
    %41 = vector.shape_cast %40 : vector<1x2x32xf32> to vector<2x32xf32>
    %c0_22 = arith.constant 0 : index
    %c0_23 = arith.constant 0 : index
    %42 = vector.load %arg9[%c0_22, %c0_23] : memref<2x8xf32, #tpu.memory_space<vmem>>, vector<2x8xf32>
    %c0_24 = arith.constant 0 : index
    %c0_25 = arith.constant 0 : index
    %43 = vector.load %arg4[%c0_24, %c0_25] : memref<8x32xf32, #tpu.memory_space<vmem>>, vector<8x32xf32>
    %cst_26 = arith.constant dense<0.000000e+00> : vector<2x32xf32>
    %44 = tpu.matmul %42, %43, %cst_26 {dimension_numbers = #tpu.dot_dimension_numbers<[1], [0], [0], [1], [0, 0, 1, 1], [], []>} : vector<2x8xf32>, vector<8x32xf32>, vector<2x32xf32> -> vector<2x32xf32>
    %45 = arith.addf %41, %44 : vector<2x32xf32>
    %c0_27 = arith.constant 0 : index
    %c0_28 = arith.constant 0 : index
    %46 = vector.load %arg10[%c0_27, %c0_28] : memref<2x8xf32, #tpu.memory_space<vmem>>, vector<2x8xf32>
    %47 = vector.extract_strided_slice %45 {offsets = [0, 0], sizes = [2, 8], strides = [1, 1]} : vector<2x32xf32> to vector<2x8xf32>
    %48 = arith.negf %47 : vector<2x8xf32>
    %49 = math.exp %48 : vector<2x8xf32>
    %cst_29 = arith.constant 1.000000e+00 : f32
    %50 = vector.broadcast %cst_29 : f32 to vector<2x8xf32>
    %51 = arith.addf %50, %49 : vector<2x8xf32>
    %52 = arith.divf %50, %51 : vector<2x8xf32>
    %53 = vector.extract_strided_slice %45 {offsets = [0, 8], sizes = [2, 8], strides = [1, 1]} : vector<2x32xf32> to vector<2x8xf32>
    %54 = arith.negf %53 : vector<2x8xf32>
    %55 = math.exp %54 : vector<2x8xf32>
    %cst_30 = arith.constant 1.000000e+00 : f32
    %56 = vector.broadcast %cst_30 : f32 to vector<2x8xf32>
    %57 = arith.addf %56, %55 : vector<2x8xf32>
    %58 = arith.divf %56, %57 : vector<2x8xf32>
    %59 = vector.extract_strided_slice %45 {offsets = [0, 16], sizes = [2, 8], strides = [1, 1]} : vector<2x32xf32> to vector<2x8xf32>
    %60 = math.tanh %59 : vector<2x8xf32>
    %61 = vector.extract_strided_slice %45 {offsets = [0, 24], sizes = [2, 8], strides = [1, 1]} : vector<2x32xf32> to vector<2x8xf32>
    %62 = arith.negf %61 : vector<2x8xf32>
    %63 = math.exp %62 : vector<2x8xf32>
    %cst_31 = arith.constant 1.000000e+00 : f32
    %64 = vector.broadcast %cst_31 : f32 to vector<2x8xf32>
    %65 = arith.addf %64, %63 : vector<2x8xf32>
    %66 = arith.divf %64, %65 : vector<2x8xf32>
    %67 = arith.mulf %58, %46 : vector<2x8xf32>
    %68 = arith.mulf %52, %60 : vector<2x8xf32>
    %69 = arith.addf %67, %68 : vector<2x8xf32>
    %70 = math.tanh %69 : vector<2x8xf32>
    %71 = arith.mulf %66, %70 : vector<2x8xf32>
    %c0_32 = arith.constant 0 : index
    %c0_33 = arith.constant 0 : index
    %72 = vector.load %arg9[%c0_32, %c0_33] : memref<2x8xf32, #tpu.memory_space<vmem>>, vector<2x8xf32>
    tpu.vector_store %arg9[%c0_32, %c0_33], %71 {strides = array<i32>} : memref<2x8xf32, #tpu.memory_space<vmem>>, vector<2x8xf32>,
    %c0_34 = arith.constant 0 : index
    %c0_35 = arith.constant 0 : index
    %73 = vector.load %arg10[%c0_34, %c0_35] : memref<2x8xf32, #tpu.memory_space<vmem>>, vector<2x8xf32>
    tpu.vector_store %arg10[%c0_34, %c0_35], %69 {strides = array<i32>} : memref<2x8xf32, #tpu.memory_space<vmem>>, vector<2x8xf32>,
    %c0_36 = arith.constant 0 : index
    %c0_37 = arith.constant 0 : index
    %c0_38 = arith.constant 0 : index
    %74 = vector.load %arg6[%c0_36, %c0_37, %c0_38] : memref<1x2x8xf32, #tpu.memory_space<vmem>>, vector<1x2x8xf32>
    %75 = vector.shape_cast %74 : vector<1x2x8xf32> to vector<2x8xf32>
    %76 = vector.shape_cast %71 : vector<2x8xf32> to vector<1x2x8xf32>
    tpu.vector_store %arg6[%c0_36, %c0_37, %c0_38], %76 {strides = array<i32>} : memref<1x2x8xf32, #tpu.memory_space<vmem>>, vector<1x2x8xf32>,
    return
  }
  func.func @transform_0(%arg0: i32) -> (i32, i32, i32) {
    %c0_i32 = arith.constant 0 : i32
    %c0_i32_0 = arith.constant 0 : i32
    %c0_i32_1 = arith.constant 0 : i32
    return %arg0, %c0_i32, %c0_i32_0 : i32, i32, i32
  }
  func.func @transform_1(%arg0: i32) -> (i32, i32, i32) {
    %c7_i32 = arith.constant 7 : i32
    %0 = arith.subi %c7_i32, %arg0 : i32
    %c0_i32 = arith.constant 0 : i32
    %c0_i32_0 = arith.constant 0 : i32
    %c0_i32_1 = arith.constant 0 : i32
    return %0, %c0_i32, %c0_i32_0 : i32, i32, i32
  }
  func.func @transform_2(%arg0: i32) -> (i32, i32) {
    %c0_i32 = arith.constant 0 : i32
    %c0_i32_0 = arith.constant 0 : i32
    %c0_i32_1 = arith.constant 0 : i32
    return %c0_i32, %c0_i32_0 : i32, i32
  }
  func.func @transform_3(%arg0: i32) -> (i32, i32) {
    %c0_i32 = arith.constant 0 : i32
    %c0_i32_0 = arith.constant 0 : i32
    %c0_i32_1 = arith.constant 0 : i32
    return %c0_i32, %c0_i32_0 : i32, i32
  }
  func.func @transform_4(%arg0: i32) -> (i32, i32, i32) {
    %c0_i32 = arith.constant 0 : i32
    %c0_i32_0 = arith.constant 0 : i32
    %c0_i32_1 = arith.constant 0 : i32
    return %arg0, %c0_i32, %c0_i32_0 : i32, i32, i32
  }
  func.func @transform_5(%arg0: i32) -> (i32, i32, i32) {
    %c7_i32 = arith.constant 7 : i32
    %0 = arith.subi %c7_i32, %arg0 : i32
    %c0_i32 = arith.constant 0 : i32
    %c0_i32_0 = arith.constant 0 : i32
    %c0_i32_1 = arith.constant 0 : i32
    return %0, %c0_i32, %c0_i32_0 : i32, i32, i32
  }
}

module attributes {stable_mosaic.version = 11 : i64} {
  func.func @_decoder_step_kernel(%arg0: i32, %arg1: memref<1x2x64xf32, #tpu.memory_space<vmem>>, %arg2: memref<2x8x16xf32, #tpu.memory_space<vmem>>, %arg3: memref<2x8x16xf32, #tpu.memory_space<vmem>>, %arg4: memref<8x2xf32, #tpu.memory_space<vmem>>, %arg5: memref<16x64xf32, #tpu.memory_space<vmem>>, %arg6: memref<16x64xf32, #tpu.memory_space<vmem>>, %arg7: memref<16x64xf32, #tpu.memory_space<vmem>>, %arg8: memref<16x64xf32, #tpu.memory_space<vmem>>, %arg9: memref<1x64xf32, #tpu.memory_space<vmem>>, %arg10: memref<16x16xf32, #tpu.memory_space<vmem>>, %arg11: memref<1x16xf32, #tpu.memory_space<vmem>>, %arg12: memref<5x8xf32, #tpu.memory_space<vmem>>, %arg13: memref<8x16xf32, #tpu.memory_space<vmem>>, %arg14: memref<1x16xf32, #tpu.memory_space<vmem>>, %arg15: memref<32x9xf32, #tpu.memory_space<vmem>>, %arg16: memref<1x9xf32, #tpu.memory_space<vmem>>, %arg17: memref<1x2x9xf32, #tpu.memory_space<vmem>>, %arg18: memref<1x8x2xf32, #tpu.memory_space<vmem>>, %arg19: memref<2x16xf32, #tpu.memory_space<vmem>>, %arg20: memref<2x16xf32, #tpu.memory_space<vmem>>, %arg21: memref<2x16xf32, #tpu.memory_space<vmem>>, %arg22: memref<2x16xf32, #tpu.memory_space<vmem>>, %arg23: memref<12x2xf32, #tpu.memory_space<vmem>>, %arg24: memref<2x16xf32, #tpu.memory_space<vmem>>, %arg25: memref<8x2xf32, #tpu.memory_space<vmem>>) attributes {dimension_semantics = [#tpu.dimension_semantics<arbitrary>], iteration_bounds = array<i64: 8>, scalar_prefetch = 0 : i64, scratch_operands = 7 : i64, tpu.core_type = #tpu.core_type<tc>, window_params = [{transform_indices = @transform_0, window_bounds = array<i64: 1, 2, 64>}, {pipeline_mode = #tpu.pipeline_mode<synchronous>, transform_indices = @transform_1, window_bounds = array<i64: 2, 8, 16>}, {pipeline_mode = #tpu.pipeline_mode<synchronous>, transform_indices = @transform_2, window_bounds = array<i64: 2, 8, 16>}, {pipeline_mode = #tpu.pipeline_mode<synchronous>, transform_indices = @transform_3, window_bounds = array<i64: 8, 2>}, {pipeline_mode = #tpu.pipeline_mode<synchronous>, transform_indices = @transform_4, window_bounds = array<i64: 16, 64>}, {pipeline_mode = #tpu.pipeline_mode<synchronous>, transform_indices = @transform_5, window_bounds = array<i64: 16, 64>}, {pipeline_mode = #tpu.pipeline_mode<synchronous>, transform_indices = @transform_6, window_bounds = array<i64: 16, 64>}, {pipeline_mode = #tpu.pipeline_mode<synchronous>, transform_indices = @transform_7, window_bounds = array<i64: 16, 64>}, {pipeline_mode = #tpu.pipeline_mode<synchronous>, transform_indices = @transform_8, window_bounds = array<i64: 1, 64>}, {pipeline_mode = #tpu.pipeline_mode<synchronous>, transform_indices = @transform_9, window_bounds = array<i64: 16, 16>}, {pipeline_mode = #tpu.pipeline_mode<synchronous>, transform_indices = @transform_10, window_bounds = array<i64: 1, 16>}, {pipeline_mode = #tpu.pipeline_mode<synchronous>, transform_indices = @transform_11, window_bounds = array<i64: 5, 8>}, {pipeline_mode = #tpu.pipeline_mode<synchronous>, transform_indices = @transform_12, window_bounds = array<i64: 8, 16>}, {pipeline_mode = #tpu.pipeline_mode<synchronous>, transform_indices = @transform_13, window_bounds = array<i64: 1, 16>}, {pipeline_mode = #tpu.pipeline_mode<synchronous>, transform_indices = @transform_14, window_bounds = array<i64: 32, 9>}, {pipeline_mode = #tpu.pipeline_mode<synchronous>, transform_indices = @transform_15, window_bounds = array<i64: 1, 9>}, {transform_indices = @transform_16, window_bounds = array<i64: 1, 2, 9>}, {transform_indices = @transform_17, window_bounds = array<i64: 1, 8, 2>}]} {
    %c0_i32 = arith.constant 0 : i32
    %0 = arith.cmpi eq, %arg0, %c0_i32 : i32
    %1 = arith.extui %0 : i1 to i32
    %c0_i32_0 = arith.constant 0 : i32
    %2 = arith.cmpi ne, %1, %c0_i32_0 : i32
    scf.if %2 {
      %cst_148 = arith.constant 0.000000e+00 : f32
      %237 = vector.broadcast %cst_148 : f32 to vector<2x16xf32>
      %c0_149 = arith.constant 0 : index
      %c0_150 = arith.constant 0 : index
      %238 = vector.load %arg19[%c0_149, %c0_150] : memref<2x16xf32, #tpu.memory_space<vmem>>, vector<2x16xf32>
      tpu.vector_store %arg19[%c0_149, %c0_150], %237 {strides = array<i32>} : memref<2x16xf32, #tpu.memory_space<vmem>>, vector<2x16xf32>,
      %cst_151 = arith.constant 0.000000e+00 : f32
      %239 = vector.broadcast %cst_151 : f32 to vector<2x16xf32>
      %c0_152 = arith.constant 0 : index
      %c0_153 = arith.constant 0 : index
      %240 = vector.load %arg20[%c0_152, %c0_153] : memref<2x16xf32, #tpu.memory_space<vmem>>, vector<2x16xf32>
      tpu.vector_store %arg20[%c0_152, %c0_153], %239 {strides = array<i32>} : memref<2x16xf32, #tpu.memory_space<vmem>>, vector<2x16xf32>,
      %cst_154 = arith.constant 0.000000e+00 : f32
      %241 = vector.broadcast %cst_154 : f32 to vector<2x16xf32>
      %c0_155 = arith.constant 0 : index
      %c0_156 = arith.constant 0 : index
      %242 = vector.load %arg21[%c0_155, %c0_156] : memref<2x16xf32, #tpu.memory_space<vmem>>, vector<2x16xf32>
      tpu.vector_store %arg21[%c0_155, %c0_156], %241 {strides = array<i32>} : memref<2x16xf32, #tpu.memory_space<vmem>>, vector<2x16xf32>,
      %cst_157 = arith.constant 0.000000e+00 : f32
      %243 = vector.broadcast %cst_157 : f32 to vector<2x16xf32>
      %c0_158 = arith.constant 0 : index
      %c0_159 = arith.constant 0 : index
      %244 = vector.load %arg22[%c0_158, %c0_159] : memref<2x16xf32, #tpu.memory_space<vmem>>, vector<2x16xf32>
      tpu.vector_store %arg22[%c0_158, %c0_159], %243 {strides = array<i32>} : memref<2x16xf32, #tpu.memory_space<vmem>>, vector<2x16xf32>,
      %cst_160 = arith.constant 0.000000e+00 : f32
      %245 = vector.broadcast %cst_160 : f32 to vector<12x2xf32>
      %c0_161 = arith.constant 0 : index
      %c0_162 = arith.constant 0 : index
      %246 = vector.load %arg23[%c0_161, %c0_162] : memref<12x2xf32, #tpu.memory_space<vmem>>, vector<12x2xf32>
      tpu.vector_store %arg23[%c0_161, %c0_162], %245 {strides = array<i32>} : memref<12x2xf32, #tpu.memory_space<vmem>>, vector<12x2xf32>,
      %cst_163 = arith.constant 0.000000e+00 : f32
      %247 = vector.broadcast %cst_163 : f32 to vector<2x16xf32>
      %c0_164 = arith.constant 0 : index
      %c0_165 = arith.constant 0 : index
      %248 = vector.load %arg24[%c0_164, %c0_165] : memref<2x16xf32, #tpu.memory_space<vmem>>, vector<2x16xf32>
      tpu.vector_store %arg24[%c0_164, %c0_165], %247 {strides = array<i32>} : memref<2x16xf32, #tpu.memory_space<vmem>>, vector<2x16xf32>,
    } else {
    }
    %c0 = arith.constant 0 : index
    %c0_1 = arith.constant 0 : index
    %c0_2 = arith.constant 0 : index
    %3 = vector.load %arg1[%c0, %c0_1, %c0_2] : memref<1x2x64xf32, #tpu.memory_space<vmem>>, vector<1x2x64xf32>
    %4 = vector.shape_cast %3 : vector<1x2x64xf32> to vector<2x64xf32>
    %c0_3 = arith.constant 0 : index
    %c0_4 = arith.constant 0 : index
    %5 = vector.load %arg24[%c0_3, %c0_4] : memref<2x16xf32, #tpu.memory_space<vmem>>, vector<2x16xf32>
    %c0_5 = arith.constant 0 : index
    %c0_6 = arith.constant 0 : index
    %6 = vector.load %arg5[%c0_5, %c0_6] : memref<16x64xf32, #tpu.memory_space<vmem>>, vector<16x64xf32>
    %cst = arith.constant dense<0.000000e+00> : vector<2x64xf32>
    %7 = tpu.matmul %5, %6, %cst {dimension_numbers = #tpu.dot_dimension_numbers<[1], [0], [0], [1], [0, 0, 1, 1], [], []>} : vector<2x16xf32>, vector<16x64xf32>, vector<2x64xf32> -> vector<2x64xf32>
    %8 = arith.addf %4, %7 : vector<2x64xf32>
    %c0_7 = arith.constant 0 : index
    %c0_8 = arith.constant 0 : index
    %9 = vector.load %arg19[%c0_7, %c0_8] : memref<2x16xf32, #tpu.memory_space<vmem>>, vector<2x16xf32>
    %c0_9 = arith.constant 0 : index
    %c0_10 = arith.constant 0 : index
    %10 = vector.load %arg6[%c0_9, %c0_10] : memref<16x64xf32, #tpu.memory_space<vmem>>, vector<16x64xf32>
    %cst_11 = arith.constant dense<0.000000e+00> : vector<2x64xf32>
    %11 = tpu.matmul %9, %10, %cst_11 {dimension_numbers = #tpu.dot_dimension_numbers<[1], [0], [0], [1], [0, 0, 1, 1], [], []>} : vector<2x16xf32>, vector<16x64xf32>, vector<2x64xf32> -> vector<2x64xf32>
    %12 = arith.addf %8, %11 : vector<2x64xf32>
    %c0_12 = arith.constant 0 : index
    %c0_13 = arith.constant 0 : index
    %13 = vector.load %arg20[%c0_12, %c0_13] : memref<2x16xf32, #tpu.memory_space<vmem>>, vector<2x16xf32>
    %14 = vector.extract_strided_slice %12 {offsets = [0, 0], sizes = [2, 16], strides = [1, 1]} : vector<2x64xf32> to vector<2x16xf32>
    %15 = arith.negf %14 : vector<2x16xf32>
    %16 = math.exp %15 : vector<2x16xf32>
    %cst_14 = arith.constant 1.000000e+00 : f32
    %17 = vector.broadcast %cst_14 : f32 to vector<2x16xf32>
    %18 = arith.addf %17, %16 : vector<2x16xf32>
    %19 = arith.divf %17, %18 : vector<2x16xf32>
    %20 = vector.extract_strided_slice %12 {offsets = [0, 16], sizes = [2, 16], strides = [1, 1]} : vector<2x64xf32> to vector<2x16xf32>
    %21 = arith.negf %20 : vector<2x16xf32>
    %22 = math.exp %21 : vector<2x16xf32>
    %cst_15 = arith.constant 1.000000e+00 : f32
    %23 = vector.broadcast %cst_15 : f32 to vector<2x16xf32>
    %24 = arith.addf %23, %22 : vector<2x16xf32>
    %25 = arith.divf %23, %24 : vector<2x16xf32>
    %26 = vector.extract_strided_slice %12 {offsets = [0, 32], sizes = [2, 16], strides = [1, 1]} : vector<2x64xf32> to vector<2x16xf32>
    %27 = math.tanh %26 : vector<2x16xf32>
    %28 = vector.extract_strided_slice %12 {offsets = [0, 48], sizes = [2, 16], strides = [1, 1]} : vector<2x64xf32> to vector<2x16xf32>
    %29 = arith.negf %28 : vector<2x16xf32>
    %30 = math.exp %29 : vector<2x16xf32>
    %cst_16 = arith.constant 1.000000e+00 : f32
    %31 = vector.broadcast %cst_16 : f32 to vector<2x16xf32>
    %32 = arith.addf %31, %30 : vector<2x16xf32>
    %33 = arith.divf %31, %32 : vector<2x16xf32>
    %34 = arith.mulf %25, %13 : vector<2x16xf32>
    %35 = arith.mulf %19, %27 : vector<2x16xf32>
    %36 = arith.addf %34, %35 : vector<2x16xf32>
    %37 = math.tanh %36 : vector<2x16xf32>
    %38 = arith.mulf %33, %37 : vector<2x16xf32>
    %c0_17 = arith.constant 0 : index
    %c0_18 = arith.constant 0 : index
    %39 = vector.load %arg19[%c0_17, %c0_18] : memref<2x16xf32, #tpu.memory_space<vmem>>, vector<2x16xf32>
    tpu.vector_store %arg19[%c0_17, %c0_18], %38 {strides = array<i32>} : memref<2x16xf32, #tpu.memory_space<vmem>>, vector<2x16xf32>,
    %c0_19 = arith.constant 0 : index
    %c0_20 = arith.constant 0 : index
    %40 = vector.load %arg20[%c0_19, %c0_20] : memref<2x16xf32, #tpu.memory_space<vmem>>, vector<2x16xf32>
    tpu.vector_store %arg20[%c0_19, %c0_20], %36 {strides = array<i32>} : memref<2x16xf32, #tpu.memory_space<vmem>>, vector<2x16xf32>,
    %c0_21 = arith.constant 0 : index
    %c0_22 = arith.constant 0 : index
    %41 = vector.load %arg9[%c0_21, %c0_22] : memref<1x64xf32, #tpu.memory_space<vmem>>, vector<1x64xf32>
    %c0_23 = arith.constant 0 : index
    %c0_24 = arith.constant 0 : index
    %42 = vector.load %arg7[%c0_23, %c0_24] : memref<16x64xf32, #tpu.memory_space<vmem>>, vector<16x64xf32>
    %cst_25 = arith.constant dense<0.000000e+00> : vector<2x64xf32>
    %43 = tpu.matmul %38, %42, %cst_25 {dimension_numbers = #tpu.dot_dimension_numbers<[1], [0], [0], [1], [0, 0, 1, 1], [], []>} : vector<2x16xf32>, vector<16x64xf32>, vector<2x64xf32> -> vector<2x64xf32>
    %44 = vector.broadcast %41 : vector<1x64xf32> to vector<2x64xf32>
    %45 = arith.addf %44, %43 : vector<2x64xf32>
    %c0_26 = arith.constant 0 : index
    %c0_27 = arith.constant 0 : index
    %46 = vector.load %arg21[%c0_26, %c0_27] : memref<2x16xf32, #tpu.memory_space<vmem>>, vector<2x16xf32>
    %c0_28 = arith.constant 0 : index
    %c0_29 = arith.constant 0 : index
    %47 = vector.load %arg8[%c0_28, %c0_29] : memref<16x64xf32, #tpu.memory_space<vmem>>, vector<16x64xf32>
    %cst_30 = arith.constant dense<0.000000e+00> : vector<2x64xf32>
    %48 = tpu.matmul %46, %47, %cst_30 {dimension_numbers = #tpu.dot_dimension_numbers<[1], [0], [0], [1], [0, 0, 1, 1], [], []>} : vector<2x16xf32>, vector<16x64xf32>, vector<2x64xf32> -> vector<2x64xf32>
    %49 = arith.addf %45, %48 : vector<2x64xf32>
    %c0_31 = arith.constant 0 : index
    %c0_32 = arith.constant 0 : index
    %50 = vector.load %arg22[%c0_31, %c0_32] : memref<2x16xf32, #tpu.memory_space<vmem>>, vector<2x16xf32>
    %51 = vector.extract_strided_slice %49 {offsets = [0, 0], sizes = [2, 16], strides = [1, 1]} : vector<2x64xf32> to vector<2x16xf32>
    %52 = arith.negf %51 : vector<2x16xf32>
    %53 = math.exp %52 : vector<2x16xf32>
    %cst_33 = arith.constant 1.000000e+00 : f32
    %54 = vector.broadcast %cst_33 : f32 to vector<2x16xf32>
    %55 = arith.addf %54, %53 : vector<2x16xf32>
    %56 = arith.divf %54, %55 : vector<2x16xf32>
    %57 = vector.extract_strided_slice %49 {offsets = [0, 16], sizes = [2, 16], strides = [1, 1]} : vector<2x64xf32> to vector<2x16xf32>
    %58 = arith.negf %57 : vector<2x16xf32>
    %59 = math.exp %58 : vector<2x16xf32>
    %cst_34 = arith.constant 1.000000e+00 : f32
    %60 = vector.broadcast %cst_34 : f32 to vector<2x16xf32>
    %61 = arith.addf %60, %59 : vector<2x16xf32>
    %62 = arith.divf %60, %61 : vector<2x16xf32>
    %63 = vector.extract_strided_slice %49 {offsets = [0, 32], sizes = [2, 16], strides = [1, 1]} : vector<2x64xf32> to vector<2x16xf32>
    %64 = math.tanh %63 : vector<2x16xf32>
    %65 = vector.extract_strided_slice %49 {offsets = [0, 48], sizes = [2, 16], strides = [1, 1]} : vector<2x64xf32> to vector<2x16xf32>
    %66 = arith.negf %65 : vector<2x16xf32>
    %67 = math.exp %66 : vector<2x16xf32>
    %cst_35 = arith.constant 1.000000e+00 : f32
    %68 = vector.broadcast %cst_35 : f32 to vector<2x16xf32>
    %69 = arith.addf %68, %67 : vector<2x16xf32>
    %70 = arith.divf %68, %69 : vector<2x16xf32>
    %71 = arith.mulf %62, %50 : vector<2x16xf32>
    %72 = arith.mulf %56, %64 : vector<2x16xf32>
    %73 = arith.addf %71, %72 : vector<2x16xf32>
    %74 = math.tanh %73 : vector<2x16xf32>
    %75 = arith.mulf %70, %74 : vector<2x16xf32>
    %c0_36 = arith.constant 0 : index
    %c0_37 = arith.constant 0 : index
    %76 = vector.load %arg21[%c0_36, %c0_37] : memref<2x16xf32, #tpu.memory_space<vmem>>, vector<2x16xf32>
    tpu.vector_store %arg21[%c0_36, %c0_37], %75 {strides = array<i32>} : memref<2x16xf32, #tpu.memory_space<vmem>>, vector<2x16xf32>,
    %c0_38 = arith.constant 0 : index
    %c0_39 = arith.constant 0 : index
    %77 = vector.load %arg22[%c0_38, %c0_39] : memref<2x16xf32, #tpu.memory_space<vmem>>, vector<2x16xf32>
    tpu.vector_store %arg22[%c0_38, %c0_39], %73 {strides = array<i32>} : memref<2x16xf32, #tpu.memory_space<vmem>>, vector<2x16xf32>,
    %c0_40 = arith.constant 0 : index
    %c0_41 = arith.constant 0 : index
    %78 = vector.load %arg10[%c0_40, %c0_41] : memref<16x16xf32, #tpu.memory_space<vmem>>, vector<16x16xf32>
    %cst_42 = arith.constant dense<0.000000e+00> : vector<2x16xf32>
    %79 = tpu.matmul %75, %78, %cst_42 {dimension_numbers = #tpu.dot_dimension_numbers<[1], [0], [0], [1], [0, 0, 1, 1], [], []>} : vector<2x16xf32>, vector<16x16xf32>, vector<2x16xf32> -> vector<2x16xf32>
    %c0_43 = arith.constant 0 : index
    %c0_44 = arith.constant 0 : index
    %80 = vector.load %arg11[%c0_43, %c0_44] : memref<1x16xf32, #tpu.memory_space<vmem>>, vector<1x16xf32>
    %81 = vector.broadcast %80 : vector<1x16xf32> to vector<2x16xf32>
    %82 = arith.addf %79, %81 : vector<2x16xf32>
    %c0_45 = arith.constant 0 : index
    %c0_46 = arith.constant 0 : index
    %83 = vector.load %arg23[%c0_45, %c0_46] : memref<12x2xf32, #tpu.memory_space<vmem>>, vector<8x1xf32>
    %c0_47 = arith.constant 0 : index
    %c0_48 = arith.constant 0 : index
    %84 = vector.load %arg12[%c0_47, %c0_48] : memref<5x8xf32, #tpu.memory_space<vmem>>, vector<1x8xf32>
    %85 = vector.broadcast %83 : vector<8x1xf32> to vector<8x8xf32>
    %86 = vector.broadcast %84 : vector<1x8xf32> to vector<8x8xf32>
    %87 = arith.mulf %85, %86 : vector<8x8xf32>
    %c1 = arith.constant 1 : index
    %c0_49 = arith.constant 0 : index
    %88 = vector.load %arg23[%c1, %c0_49] : memref<12x2xf32, #tpu.memory_space<vmem>>, vector<8x1xf32>
    %c1_50 = arith.constant 1 : index
    %c0_51 = arith.constant 0 : index
    %89 = vector.load %arg12[%c1_50, %c0_51] : memref<5x8xf32, #tpu.memory_space<vmem>>, vector<1x8xf32>
    %90 = vector.broadcast %88 : vector<8x1xf32> to vector<8x8xf32>
    %91 = vector.broadcast %89 : vector<1x8xf32> to vector<8x8xf32>
    %92 = arith.mulf %90, %91 : vector<8x8xf32>
    %93 = arith.addf %87, %92 : vector<8x8xf32>
    %c2 = arith.constant 2 : index
    %c0_52 = arith.constant 0 : index
    %94 = vector.load %arg23[%c2, %c0_52] : memref<12x2xf32, #tpu.memory_space<vmem>>, vector<8x1xf32>
    %c2_53 = arith.constant 2 : index
    %c0_54 = arith.constant 0 : index
    %95 = vector.load %arg12[%c2_53, %c0_54] : memref<5x8xf32, #tpu.memory_space<vmem>>, vector<1x8xf32>
    %96 = vector.broadcast %94 : vector<8x1xf32> to vector<8x8xf32>
    %97 = vector.broadcast %95 : vector<1x8xf32> to vector<8x8xf32>
    %98 = arith.mulf %96, %97 : vector<8x8xf32>
    %99 = arith.addf %93, %98 : vector<8x8xf32>
    %c3 = arith.constant 3 : index
    %c0_55 = arith.constant 0 : index
    %100 = vector.load %arg23[%c3, %c0_55] : memref<12x2xf32, #tpu.memory_space<vmem>>, vector<8x1xf32>
    %c3_56 = arith.constant 3 : index
    %c0_57 = arith.constant 0 : index
    %101 = vector.load %arg12[%c3_56, %c0_57] : memref<5x8xf32, #tpu.memory_space<vmem>>, vector<1x8xf32>
    %102 = vector.broadcast %100 : vector<8x1xf32> to vector<8x8xf32>
    %103 = vector.broadcast %101 : vector<1x8xf32> to vector<8x8xf32>
    %104 = arith.mulf %102, %103 : vector<8x8xf32>
    %105 = arith.addf %99, %104 : vector<8x8xf32>
    %c4 = arith.constant 4 : index
    %c0_58 = arith.constant 0 : index
    %106 = vector.load %arg23[%c4, %c0_58] : memref<12x2xf32, #tpu.memory_space<vmem>>, vector<8x1xf32>
    %c4_59 = arith.constant 4 : index
    %c0_60 = arith.constant 0 : index
    %107 = vector.load %arg12[%c4_59, %c0_60] : memref<5x8xf32, #tpu.memory_space<vmem>>, vector<1x8xf32>
    %108 = vector.broadcast %106 : vector<8x1xf32> to vector<8x8xf32>
    %109 = vector.broadcast %107 : vector<1x8xf32> to vector<8x8xf32>
    %110 = arith.mulf %108, %109 : vector<8x8xf32>
    %111 = arith.addf %105, %110 : vector<8x8xf32>
    %c0_61 = arith.constant 0 : index
    %c0_62 = arith.constant 0 : index
    %112 = vector.load %arg13[%c0_61, %c0_62] : memref<8x16xf32, #tpu.memory_space<vmem>>, vector<8x16xf32>
    %cst_63 = arith.constant dense<0.000000e+00> : vector<8x16xf32>
    %113 = tpu.matmul %111, %112, %cst_63 {dimension_numbers = #tpu.dot_dimension_numbers<[1], [0], [0], [1], [0, 0, 1, 1], [], []>} : vector<8x8xf32>, vector<8x16xf32>, vector<8x16xf32> -> vector<8x16xf32>
    %114 = vector.extract_strided_slice %82 {offsets = [0, 0], sizes = [1, 16], strides = [1, 1]} : vector<2x16xf32> to vector<1x16xf32>
    %c0_64 = arith.constant 0 : index
    %c0_65 = arith.constant 0 : index
    %c0_66 = arith.constant 0 : index
    %115 = vector.load %arg3[%c0_64, %c0_65, %c0_66] : memref<2x8x16xf32, #tpu.memory_space<vmem>>, vector<1x8x16xf32>
    %116 = vector.shape_cast %115 : vector<1x8x16xf32> to vector<8x16xf32>
    %117 = vector.broadcast %114 : vector<1x16xf32> to vector<8x16xf32>
    %118 = arith.addf %117, %116 : vector<8x16xf32>
    %119 = arith.addf %118, %113 : vector<8x16xf32>
    %120 = math.tanh %119 : vector<8x16xf32>
    %c0_67 = arith.constant 0 : index
    %c0_68 = arith.constant 0 : index
    %121 = vector.load %arg14[%c0_67, %c0_68] : memref<1x16xf32, #tpu.memory_space<vmem>>, vector<1x16xf32>
    %122 = vector.broadcast %121 : vector<1x16xf32> to vector<8x16xf32>
    %123 = arith.mulf %120, %122 : vector<8x16xf32>
    %cst_69 = arith.constant dense<0.000000e+00> : vector<8xf32>
    %124 = vector.multi_reduction <add>, %123, %cst_69 [1] : vector<8x16xf32> to vector<8xf32>
    %125 = vector.shape_cast %124 : vector<8xf32> to vector<8x1xf32>
    %c0_70 = arith.constant 0 : index
    %c0_71 = arith.constant 0 : index
    %126 = vector.load %arg4[%c0_70, %c0_71] : memref<8x2xf32, #tpu.memory_space<vmem>>, vector<8x1xf32>
    %cst_72 = arith.constant 5.000000e-01 : f32
    %127 = vector.broadcast %cst_72 : f32 to vector<8x1xf32>
    %128 = arith.cmpf ogt, %126, %127 : vector<8x1xf32>
    %cst_73 = arith.constant -1.000000e+30 : f32
    %129 = vector.broadcast %cst_73 : f32 to vector<8x1xf32>
    %130 = arith.select %128, %129, %125 : vector<8x1xi1>, vector<8x1xf32>
    %cst_74 = arith.constant dense<0xFF800000> : vector<1xf32>
    %131 = vector.multi_reduction <maximumf>, %130, %cst_74 [0] : vector<8x1xf32> to vector<1xf32>
    %132 = vector.shape_cast %131 : vector<1xf32> to vector<1x1xf32>
    %133 = vector.broadcast %132 : vector<1x1xf32> to vector<8x1xf32>
    %134 = arith.subf %130, %133 : vector<8x1xf32>
    %135 = math.exp %134 : vector<8x1xf32>
    %cst_75 = arith.constant dense<0.000000e+00> : vector<1xf32>
    %136 = vector.multi_reduction <add>, %135, %cst_75 [0] : vector<8x1xf32> to vector<1xf32>
    %137 = vector.shape_cast %136 : vector<1xf32> to vector<1x1xf32>
    %138 = vector.broadcast %137 : vector<1x1xf32> to vector<8x1xf32>
    %139 = arith.divf %135, %138 : vector<8x1xf32>
    %c0_76 = arith.constant 0 : index
    %c0_77 = arith.constant 0 : index
    %140 = vector.load %arg25[%c0_76, %c0_77] : memref<8x2xf32, #tpu.memory_space<vmem>>, vector<8x1xf32>
    tpu.vector_store %arg25[%c0_76, %c0_77], %139 {strides = array<i32>} : memref<8x2xf32, #tpu.memory_space<vmem>>, vector<8x1xf32>,
    %c0_78 = arith.constant 0 : index
    %c0_79 = arith.constant 0 : index
    %c0_80 = arith.constant 0 : index
    %141 = vector.load %arg2[%c0_78, %c0_79, %c0_80] : memref<2x8x16xf32, #tpu.memory_space<vmem>>, vector<1x8x16xf32>
    %142 = vector.shape_cast %141 : vector<1x8x16xf32> to vector<8x16xf32>
    %143 = vector.broadcast %139 : vector<8x1xf32> to vector<8x16xf32>
    %144 = arith.mulf %142, %143 : vector<8x16xf32>
    %cst_81 = arith.constant dense<0.000000e+00> : vector<16xf32>
    %145 = vector.multi_reduction <add>, %144, %cst_81 [0] : vector<8x16xf32> to vector<16xf32>
    %146 = vector.shape_cast %145 : vector<16xf32> to vector<1x16xf32>
    %c0_82 = arith.constant 0 : index
    %c0_83 = arith.constant 0 : index
    %147 = vector.load %arg24[%c0_82, %c0_83] : memref<2x16xf32, #tpu.memory_space<vmem>>, vector<1x16xf32>
    tpu.vector_store %arg24[%c0_82, %c0_83], %146 {strides = array<i32>} : memref<2x16xf32, #tpu.memory_space<vmem>>, vector<1x16xf32>,
    %c0_84 = arith.constant 0 : index
    %c1_85 = arith.constant 1 : index
    %148 = vector.load %arg23[%c0_84, %c1_85] : memref<12x2xf32, #tpu.memory_space<vmem>>, vector<8x1xf32>
    %c0_86 = arith.constant 0 : index
    %c0_87 = arith.constant 0 : index
    %149 = vector.load %arg12[%c0_86, %c0_87] : memref<5x8xf32, #tpu.memory_space<vmem>>, vector<1x8xf32>
    %150 = vector.broadcast %148 : vector<8x1xf32> to vector<8x8xf32>
    %151 = vector.broadcast %149 : vector<1x8xf32> to vector<8x8xf32>
    %152 = arith.mulf %150, %151 : vector<8x8xf32>
    %c1_88 = arith.constant 1 : index
    %c1_89 = arith.constant 1 : index
    %153 = vector.load %arg23[%c1_88, %c1_89] : memref<12x2xf32, #tpu.memory_space<vmem>>, vector<8x1xf32>
    %c1_90 = arith.constant 1 : index
    %c0_91 = arith.constant 0 : index
    %154 = vector.load %arg12[%c1_90, %c0_91] : memref<5x8xf32, #tpu.memory_space<vmem>>, vector<1x8xf32>
    %155 = vector.broadcast %153 : vector<8x1xf32> to vector<8x8xf32>
    %156 = vector.broadcast %154 : vector<1x8xf32> to vector<8x8xf32>
    %157 = arith.mulf %155, %156 : vector<8x8xf32>
    %158 = arith.addf %152, %157 : vector<8x8xf32>
    %c2_92 = arith.constant 2 : index
    %c1_93 = arith.constant 1 : index
    %159 = vector.load %arg23[%c2_92, %c1_93] : memref<12x2xf32, #tpu.memory_space<vmem>>, vector<8x1xf32>
    %c2_94 = arith.constant 2 : index
    %c0_95 = arith.constant 0 : index
    %160 = vector.load %arg12[%c2_94, %c0_95] : memref<5x8xf32, #tpu.memory_space<vmem>>, vector<1x8xf32>
    %161 = vector.broadcast %159 : vector<8x1xf32> to vector<8x8xf32>
    %162 = vector.broadcast %160 : vector<1x8xf32> to vector<8x8xf32>
    %163 = arith.mulf %161, %162 : vector<8x8xf32>
    %164 = arith.addf %158, %163 : vector<8x8xf32>
    %c3_96 = arith.constant 3 : index
    %c1_97 = arith.constant 1 : index
    %165 = vector.load %arg23[%c3_96, %c1_97] : memref<12x2xf32, #tpu.memory_space<vmem>>, vector<8x1xf32>
    %c3_98 = arith.constant 3 : index
    %c0_99 = arith.constant 0 : index
    %166 = vector.load %arg12[%c3_98, %c0_99] : memref<5x8xf32, #tpu.memory_space<vmem>>, vector<1x8xf32>
    %167 = vector.broadcast %165 : vector<8x1xf32> to vector<8x8xf32>
    %168 = vector.broadcast %166 : vector<1x8xf32> to vector<8x8xf32>
    %169 = arith.mulf %167, %168 : vector<8x8xf32>
    %170 = arith.addf %164, %169 : vector<8x8xf32>
    %c4_100 = arith.constant 4 : index
    %c1_101 = arith.constant 1 : index
    %171 = vector.load %arg23[%c4_100, %c1_101] : memref<12x2xf32, #tpu.memory_space<vmem>>, vector<8x1xf32>
    %c4_102 = arith.constant 4 : index
    %c0_103 = arith.constant 0 : index
    %172 = vector.load %arg12[%c4_102, %c0_103] : memref<5x8xf32, #tpu.memory_space<vmem>>, vector<1x8xf32>
    %173 = vector.broadcast %171 : vector<8x1xf32> to vector<8x8xf32>
    %174 = vector.broadcast %172 : vector<1x8xf32> to vector<8x8xf32>
    %175 = arith.mulf %173, %174 : vector<8x8xf32>
    %176 = arith.addf %170, %175 : vector<8x8xf32>
    %c0_104 = arith.constant 0 : index
    %c0_105 = arith.constant 0 : index
    %177 = vector.load %arg13[%c0_104, %c0_105] : memref<8x16xf32, #tpu.memory_space<vmem>>, vector<8x16xf32>
    %cst_106 = arith.constant dense<0.000000e+00> : vector<8x16xf32>
    %178 = tpu.matmul %176, %177, %cst_106 {dimension_numbers = #tpu.dot_dimension_numbers<[1], [0], [0], [1], [0, 0, 1, 1], [], []>} : vector<8x8xf32>, vector<8x16xf32>, vector<8x16xf32> -> vector<8x16xf32>
    %179 = vector.extract_strided_slice %82 {offsets = [1, 0], sizes = [1, 16], strides = [1, 1]} : vector<2x16xf32> to vector<1x16xf32>
    %c1_107 = arith.constant 1 : index
    %c0_108 = arith.constant 0 : index
    %c0_109 = arith.constant 0 : index
    %180 = vector.load %arg3[%c1_107, %c0_108, %c0_109] : memref<2x8x16xf32, #tpu.memory_space<vmem>>, vector<1x8x16xf32>
    %181 = vector.shape_cast %180 : vector<1x8x16xf32> to vector<8x16xf32>
    %182 = vector.broadcast %179 : vector<1x16xf32> to vector<8x16xf32>
    %183 = arith.addf %182, %181 : vector<8x16xf32>
    %184 = arith.addf %183, %178 : vector<8x16xf32>
    %185 = math.tanh %184 : vector<8x16xf32>
    %c0_110 = arith.constant 0 : index
    %c0_111 = arith.constant 0 : index
    %186 = vector.load %arg14[%c0_110, %c0_111] : memref<1x16xf32, #tpu.memory_space<vmem>>, vector<1x16xf32>
    %187 = vector.broadcast %186 : vector<1x16xf32> to vector<8x16xf32>
    %188 = arith.mulf %185, %187 : vector<8x16xf32>
    %cst_112 = arith.constant dense<0.000000e+00> : vector<8xf32>
    %189 = vector.multi_reduction <add>, %188, %cst_112 [1] : vector<8x16xf32> to vector<8xf32>
    %190 = vector.shape_cast %189 : vector<8xf32> to vector<8x1xf32>
    %c0_113 = arith.constant 0 : index
    %c1_114 = arith.constant 1 : index
    %191 = vector.load %arg4[%c0_113, %c1_114] : memref<8x2xf32, #tpu.memory_space<vmem>>, vector<8x1xf32>
    %cst_115 = arith.constant 5.000000e-01 : f32
    %192 = vector.broadcast %cst_115 : f32 to vector<8x1xf32>
    %193 = arith.cmpf ogt, %191, %192 : vector<8x1xf32>
    %cst_116 = arith.constant -1.000000e+30 : f32
    %194 = vector.broadcast %cst_116 : f32 to vector<8x1xf32>
    %195 = arith.select %193, %194, %190 : vector<8x1xi1>, vector<8x1xf32>
    %cst_117 = arith.constant dense<0xFF800000> : vector<1xf32>
    %196 = vector.multi_reduction <maximumf>, %195, %cst_117 [0] : vector<8x1xf32> to vector<1xf32>
    %197 = vector.shape_cast %196 : vector<1xf32> to vector<1x1xf32>
    %198 = vector.broadcast %197 : vector<1x1xf32> to vector<8x1xf32>
    %199 = arith.subf %195, %198 : vector<8x1xf32>
    %200 = math.exp %199 : vector<8x1xf32>
    %cst_118 = arith.constant dense<0.000000e+00> : vector<1xf32>
    %201 = vector.multi_reduction <add>, %200, %cst_118 [0] : vector<8x1xf32> to vector<1xf32>
    %202 = vector.shape_cast %201 : vector<1xf32> to vector<1x1xf32>
    %203 = vector.broadcast %202 : vector<1x1xf32> to vector<8x1xf32>
    %204 = arith.divf %200, %203 : vector<8x1xf32>
    %c0_119 = arith.constant 0 : index
    %c1_120 = arith.constant 1 : index
    %205 = vector.load %arg25[%c0_119, %c1_120] : memref<8x2xf32, #tpu.memory_space<vmem>>, vector<8x1xf32>
    tpu.vector_store %arg25[%c0_119, %c1_120], %204 {strides = array<i32>} : memref<8x2xf32, #tpu.memory_space<vmem>>, vector<8x1xf32>,
    %c1_121 = arith.constant 1 : index
    %c0_122 = arith.constant 0 : index
    %c0_123 = arith.constant 0 : index
    %206 = vector.load %arg2[%c1_121, %c0_122, %c0_123] : memref<2x8x16xf32, #tpu.memory_space<vmem>>, vector<1x8x16xf32>
    %207 = vector.shape_cast %206 : vector<1x8x16xf32> to vector<8x16xf32>
    %208 = vector.broadcast %204 : vector<8x1xf32> to vector<8x16xf32>
    %209 = arith.mulf %207, %208 : vector<8x16xf32>
    %cst_124 = arith.constant dense<0.000000e+00> : vector<16xf32>
    %210 = vector.multi_reduction <add>, %209, %cst_124 [0] : vector<8x16xf32> to vector<16xf32>
    %211 = vector.shape_cast %210 : vector<16xf32> to vector<1x16xf32>
    %c1_125 = arith.constant 1 : index
    %c0_126 = arith.constant 0 : index
    %212 = vector.load %arg24[%c1_125, %c0_126] : memref<2x16xf32, #tpu.memory_space<vmem>>, vector<1x16xf32>
    tpu.vector_store %arg24[%c1_125, %c0_126], %211 {strides = array<i32>} : memref<2x16xf32, #tpu.memory_space<vmem>>, vector<1x16xf32>,
    %c0_127 = arith.constant 0 : index
    %c0_128 = arith.constant 0 : index
    %213 = vector.load %arg25[%c0_127, %c0_128] : memref<8x2xf32, #tpu.memory_space<vmem>>, vector<8x2xf32>
    %c0_129 = arith.constant 0 : index
    %c0_130 = arith.constant 0 : index
    %214 = vector.load %arg24[%c0_129, %c0_130] : memref<2x16xf32, #tpu.memory_space<vmem>>, vector<2x16xf32>
    %c2_131 = arith.constant 2 : index
    %c0_132 = arith.constant 0 : index
    %215 = vector.load %arg23[%c2_131, %c0_132] : memref<12x2xf32, #tpu.memory_space<vmem>>, vector<8x2xf32>
    %216 = arith.addf %215, %213 : vector<8x2xf32>
    %c2_133 = arith.constant 2 : index
    %c0_134 = arith.constant 0 : index
    %217 = vector.load %arg23[%c2_133, %c0_134] : memref<12x2xf32, #tpu.memory_space<vmem>>, vector<8x2xf32>
    tpu.vector_store %arg23[%c2_133, %c0_134], %216 {strides = array<i32>} : memref<12x2xf32, #tpu.memory_space<vmem>>, vector<8x2xf32>,
    %c0_135 = arith.constant 0 : index
    %c0_136 = arith.constant 0 : index
    %218 = vector.load %arg15[%c0_135, %c0_136] : memref<32x9xf32, #tpu.memory_space<vmem>>, vector<16x9xf32>
    %cst_137 = arith.constant dense<0.000000e+00> : vector<2x9xf32>
    %219 = tpu.matmul %75, %218, %cst_137 {dimension_numbers = #tpu.dot_dimension_numbers<[1], [0], [0], [1], [0, 0, 1, 1], [], []>} : vector<2x16xf32>, vector<16x9xf32>, vector<2x9xf32> -> vector<2x9xf32>
    %c16 = arith.constant 16 : index
    %c0_138 = arith.constant 0 : index
    %220 = vector.load %arg15[%c16, %c0_138] : memref<32x9xf32, #tpu.memory_space<vmem>>, vector<16x9xf32>
    %cst_139 = arith.constant dense<0.000000e+00> : vector<2x9xf32>
    %221 = tpu.matmul %214, %220, %cst_139 {dimension_numbers = #tpu.dot_dimension_numbers<[1], [0], [0], [1], [0, 0, 1, 1], [], []>} : vector<2x16xf32>, vector<16x9xf32>, vector<2x9xf32> -> vector<2x9xf32>
    %222 = arith.addf %219, %221 : vector<2x9xf32>
    %c0_140 = arith.constant 0 : index
    %c0_141 = arith.constant 0 : index
    %223 = vector.load %arg16[%c0_140, %c0_141] : memref<1x9xf32, #tpu.memory_space<vmem>>, vector<1x9xf32>
    %224 = vector.broadcast %223 : vector<1x9xf32> to vector<2x9xf32>
    %225 = arith.addf %222, %224 : vector<2x9xf32>
    %226 = tpu.iota {dimensions = array<i32: 1>} : vector<2x9xi32>
    %c8_i32 = arith.constant 8 : i32
    %227 = vector.broadcast %c8_i32 : i32 to vector<2x9xi32>
    %228 = arith.cmpi slt, %226, %227 : vector<2x9xi32>
    %229 = math.tanh %225 : vector<2x9xf32>
    %230 = arith.select %228, %229, %225 : vector<2x9xi1>, vector<2x9xf32>
    %c0_142 = arith.constant 0 : index
    %c0_143 = arith.constant 0 : index
    %c0_144 = arith.constant 0 : index
    %231 = vector.load %arg17[%c0_142, %c0_143, %c0_144] : memref<1x2x9xf32, #tpu.memory_space<vmem>>, vector<1x2x9xf32>
    %232 = vector.shape_cast %231 : vector<1x2x9xf32> to vector<2x9xf32>
    %233 = vector.shape_cast %230 : vector<2x9xf32> to vector<1x2x9xf32>
    tpu.vector_store %arg17[%c0_142, %c0_143, %c0_144], %233 {strides = array<i32>} : memref<1x2x9xf32, #tpu.memory_space<vmem>>, vector<1x2x9xf32>,
    %c0_145 = arith.constant 0 : index
    %c0_146 = arith.constant 0 : index
    %c0_147 = arith.constant 0 : index
    %234 = vector.load %arg18[%c0_145, %c0_146, %c0_147] : memref<1x8x2xf32, #tpu.memory_space<vmem>>, vector<1x8x2xf32>
    %235 = vector.shape_cast %234 : vector<1x8x2xf32> to vector<8x2xf32>
    %236 = vector.shape_cast %213 : vector<8x2xf32> to vector<1x8x2xf32>
    tpu.vector_store %arg18[%c0_145, %c0_146, %c0_147], %236 {strides = array<i32>} : memref<1x8x2xf32, #tpu.memory_space<vmem>>, vector<1x8x2xf32>,
    return
  }
  func.func @transform_0(%arg0: i32) -> (i32, i32, i32) {
    %c0_i32 = arith.constant 0 : i32
    %c0_i32_0 = arith.constant 0 : i32
    %c0_i32_1 = arith.constant 0 : i32
    return %arg0, %c0_i32, %c0_i32_0 : i32, i32, i32
  }
  func.func @transform_1(%arg0: i32) -> (i32, i32, i32) {
    %c0_i32 = arith.constant 0 : i32
    %c0_i32_0 = arith.constant 0 : i32
    %c0_i32_1 = arith.constant 0 : i32
    %c0_i32_2 = arith.constant 0 : i32
    return %c0_i32, %c0_i32_0, %c0_i32_1 : i32, i32, i32
  }
  func.func @transform_2(%arg0: i32) -> (i32, i32, i32) {
    %c0_i32 = arith.constant 0 : i32
    %c0_i32_0 = arith.constant 0 : i32
    %c0_i32_1 = arith.constant 0 : i32
    %c0_i32_2 = arith.constant 0 : i32
    return %c0_i32, %c0_i32_0, %c0_i32_1 : i32, i32, i32
  }
  func.func @transform_3(%arg0: i32) -> (i32, i32) {
    %c0_i32 = arith.constant 0 : i32
    %c0_i32_0 = arith.constant 0 : i32
    %c0_i32_1 = arith.constant 0 : i32
    return %c0_i32, %c0_i32_0 : i32, i32
  }
  func.func @transform_4(%arg0: i32) -> (i32, i32) {
    %c0_i32 = arith.constant 0 : i32
    %c0_i32_0 = arith.constant 0 : i32
    %c0_i32_1 = arith.constant 0 : i32
    return %c0_i32, %c0_i32_0 : i32, i32
  }
  func.func @transform_5(%arg0: i32) -> (i32, i32) {
    %c0_i32 = arith.constant 0 : i32
    %c0_i32_0 = arith.constant 0 : i32
    %c0_i32_1 = arith.constant 0 : i32
    return %c0_i32, %c0_i32_0 : i32, i32
  }
  func.func @transform_6(%arg0: i32) -> (i32, i32) {
    %c0_i32 = arith.constant 0 : i32
    %c0_i32_0 = arith.constant 0 : i32
    %c0_i32_1 = arith.constant 0 : i32
    return %c0_i32, %c0_i32_0 : i32, i32
  }
  func.func @transform_7(%arg0: i32) -> (i32, i32) {
    %c0_i32 = arith.constant 0 : i32
    %c0_i32_0 = arith.constant 0 : i32
    %c0_i32_1 = arith.constant 0 : i32
    return %c0_i32, %c0_i32_0 : i32, i32
  }
  func.func @transform_8(%arg0: i32) -> (i32, i32) {
    %c0_i32 = arith.constant 0 : i32
    %c0_i32_0 = arith.constant 0 : i32
    %c0_i32_1 = arith.constant 0 : i32
    return %c0_i32, %c0_i32_0 : i32, i32
  }
  func.func @transform_9(%arg0: i32) -> (i32, i32) {
    %c0_i32 = arith.constant 0 : i32
    %c0_i32_0 = arith.constant 0 : i32
    %c0_i32_1 = arith.constant 0 : i32
    return %c0_i32, %c0_i32_0 : i32, i32
  }
  func.func @transform_10(%arg0: i32) -> (i32, i32) {
    %c0_i32 = arith.constant 0 : i32
    %c0_i32_0 = arith.constant 0 : i32
    %c0_i32_1 = arith.constant 0 : i32
    return %c0_i32, %c0_i32_0 : i32, i32
  }
  func.func @transform_11(%arg0: i32) -> (i32, i32) {
    %c0_i32 = arith.constant 0 : i32
    %c0_i32_0 = arith.constant 0 : i32
    %c0_i32_1 = arith.constant 0 : i32
    return %c0_i32, %c0_i32_0 : i32, i32
  }
  func.func @transform_12(%arg0: i32) -> (i32, i32) {
    %c0_i32 = arith.constant 0 : i32
    %c0_i32_0 = arith.constant 0 : i32
    %c0_i32_1 = arith.constant 0 : i32
    return %c0_i32, %c0_i32_0 : i32, i32
  }
  func.func @transform_13(%arg0: i32) -> (i32, i32) {
    %c0_i32 = arith.constant 0 : i32
    %c0_i32_0 = arith.constant 0 : i32
    %c0_i32_1 = arith.constant 0 : i32
    return %c0_i32, %c0_i32_0 : i32, i32
  }
  func.func @transform_14(%arg0: i32) -> (i32, i32) {
    %c0_i32 = arith.constant 0 : i32
    %c0_i32_0 = arith.constant 0 : i32
    %c0_i32_1 = arith.constant 0 : i32
    return %c0_i32, %c0_i32_0 : i32, i32
  }
  func.func @transform_15(%arg0: i32) -> (i32, i32) {
    %c0_i32 = arith.constant 0 : i32
    %c0_i32_0 = arith.constant 0 : i32
    %c0_i32_1 = arith.constant 0 : i32
    return %c0_i32, %c0_i32_0 : i32, i32
  }
  func.func @transform_16(%arg0: i32) -> (i32, i32, i32) {
    %c0_i32 = arith.constant 0 : i32
    %c0_i32_0 = arith.constant 0 : i32
    %c0_i32_1 = arith.constant 0 : i32
    return %arg0, %c0_i32, %c0_i32_0 : i32, i32, i32
  }
  func.func @transform_17(%arg0: i32) -> (i32, i32, i32) {
    %c0_i32 = arith.constant 0 : i32
    %c0_i32_0 = arith.constant 0 : i32
    %c0_i32_1 = arith.constant 0 : i32
    return %arg0, %c0_i32, %c0_i32_0 : i32, i32, i32
  }
}

module attributes {stable_mosaic.version = 11 : i64} {
  func.func @_conv_bn_act_kernel(%arg0: memref<16x80xf32, #tpu.memory_space<vmem>>, %arg1: memref<80x16xf32, #tpu.memory_space<vmem>>, %arg2: memref<1x16xf32, #tpu.memory_space<vmem>>, %arg3: memref<1x16xf32, #tpu.memory_space<vmem>>, %arg4: memref<1x16xf32, #tpu.memory_space<vmem>>, %arg5: memref<16x16xf32, #tpu.memory_space<vmem>>) attributes {dimension_semantics = [], scalar_prefetch = 0 : i64, scratch_operands = 0 : i64, tpu.core_type = #tpu.core_type<tc>} {
    %c0 = arith.constant 0 : index
    %c0_0 = arith.constant 0 : index
    %0 = vector.load %arg0[%c0, %c0_0] : memref<16x80xf32, #tpu.memory_space<vmem>>, vector<16x80xf32>
    %c0_1 = arith.constant 0 : index
    %c0_2 = arith.constant 0 : index
    %1 = vector.load %arg1[%c0_1, %c0_2] : memref<80x16xf32, #tpu.memory_space<vmem>>, vector<80x16xf32>
    %cst = arith.constant dense<0.000000e+00> : vector<16x16xf32>
    %2 = tpu.matmul %0, %1, %cst {dimension_numbers = #tpu.dot_dimension_numbers<[1], [0], [0], [1], [0, 0, 1, 1], [], []>} : vector<16x80xf32>, vector<80x16xf32>, vector<16x16xf32> -> vector<16x16xf32>
    %c0_3 = arith.constant 0 : index
    %c0_4 = arith.constant 0 : index
    %3 = vector.load %arg2[%c0_3, %c0_4] : memref<1x16xf32, #tpu.memory_space<vmem>>, vector<1x16xf32>
    %4 = vector.broadcast %3 : vector<1x16xf32> to vector<16x16xf32>
    %5 = arith.addf %2, %4 : vector<16x16xf32>
    %cst_5 = arith.constant dense<0.000000e+00> : vector<16xf32>
    %6 = vector.multi_reduction <add>, %5, %cst_5 [0] : vector<16x16xf32> to vector<16xf32>
    %7 = vector.shape_cast %6 : vector<16xf32> to vector<1x16xf32>
    %cst_6 = arith.constant 6.250000e-02 : f32
    %8 = vector.broadcast %cst_6 : f32 to vector<1x16xf32>
    %9 = arith.mulf %7, %8 : vector<1x16xf32>
    %10 = vector.broadcast %9 : vector<1x16xf32> to vector<16x16xf32>
    %11 = arith.subf %5, %10 : vector<16x16xf32>
    %12 = arith.mulf %11, %11 : vector<16x16xf32>
    %cst_7 = arith.constant dense<0.000000e+00> : vector<16xf32>
    %13 = vector.multi_reduction <add>, %12, %cst_7 [0] : vector<16x16xf32> to vector<16xf32>
    %14 = vector.shape_cast %13 : vector<16xf32> to vector<1x16xf32>
    %cst_8 = arith.constant 6.250000e-02 : f32
    %15 = vector.broadcast %cst_8 : f32 to vector<1x16xf32>
    %16 = arith.mulf %14, %15 : vector<1x16xf32>
    %cst_9 = arith.constant 9.99999974E-6 : f32
    %17 = vector.broadcast %cst_9 : f32 to vector<1x16xf32>
    %18 = arith.addf %16, %17 : vector<1x16xf32>
    %19 = math.rsqrt %18 : vector<1x16xf32>
    %20 = vector.broadcast %19 : vector<1x16xf32> to vector<16x16xf32>
    %21 = arith.mulf %11, %20 : vector<16x16xf32>
    %c0_10 = arith.constant 0 : index
    %c0_11 = arith.constant 0 : index
    %22 = vector.load %arg3[%c0_10, %c0_11] : memref<1x16xf32, #tpu.memory_space<vmem>>, vector<1x16xf32>
    %23 = vector.broadcast %22 : vector<1x16xf32> to vector<16x16xf32>
    %24 = arith.mulf %21, %23 : vector<16x16xf32>
    %c0_12 = arith.constant 0 : index
    %c0_13 = arith.constant 0 : index
    %25 = vector.load %arg4[%c0_12, %c0_13] : memref<1x16xf32, #tpu.memory_space<vmem>>, vector<1x16xf32>
    %26 = vector.broadcast %25 : vector<1x16xf32> to vector<16x16xf32>
    %27 = arith.addf %24, %26 : vector<16x16xf32>
    %28 = math.tanh %27 : vector<16x16xf32>
    %c0_14 = arith.constant 0 : index
    %c0_15 = arith.constant 0 : index
    %29 = vector.load %arg5[%c0_14, %c0_15] : memref<16x16xf32, #tpu.memory_space<vmem>>, vector<16x16xf32>
    tpu.vector_store %arg5[%c0_14, %c0_15], %28 {strides = array<i32>} : memref<16x16xf32, #tpu.memory_space<vmem>>, vector<16x16xf32>,
    return
  }
}

module attributes {stable_mosaic.version = 11 : i64} {
  func.func @_conv_bn_act_kernel(%arg0: memref<16x8xf32, #tpu.memory_space<vmem>>, %arg1: memref<8x16xf32, #tpu.memory_space<vmem>>, %arg2: memref<1x16xf32, #tpu.memory_space<vmem>>, %arg3: memref<1x16xf32, #tpu.memory_space<vmem>>, %arg4: memref<1x16xf32, #tpu.memory_space<vmem>>, %arg5: memref<16x16xf32, #tpu.memory_space<vmem>>) attributes {dimension_semantics = [], scalar_prefetch = 0 : i64, scratch_operands = 0 : i64, tpu.core_type = #tpu.core_type<tc>} {
    %c0 = arith.constant 0 : index
    %c0_0 = arith.constant 0 : index
    %0 = vector.load %arg0[%c0, %c0_0] : memref<16x8xf32, #tpu.memory_space<vmem>>, vector<16x8xf32>
    %c0_1 = arith.constant 0 : index
    %c0_2 = arith.constant 0 : index
    %1 = vector.load %arg1[%c0_1, %c0_2] : memref<8x16xf32, #tpu.memory_space<vmem>>, vector<8x16xf32>
    %cst = arith.constant dense<0.000000e+00> : vector<16x16xf32>
    %2 = tpu.matmul %0, %1, %cst {dimension_numbers = #tpu.dot_dimension_numbers<[1], [0], [0], [1], [0, 0, 1, 1], [], []>} : vector<16x8xf32>, vector<8x16xf32>, vector<16x16xf32> -> vector<16x16xf32>
    %c0_3 = arith.constant 0 : index
    %c0_4 = arith.constant 0 : index
    %3 = vector.load %arg2[%c0_3, %c0_4] : memref<1x16xf32, #tpu.memory_space<vmem>>, vector<1x16xf32>
    %4 = vector.broadcast %3 : vector<1x16xf32> to vector<16x16xf32>
    %5 = arith.addf %2, %4 : vector<16x16xf32>
    %cst_5 = arith.constant dense<0.000000e+00> : vector<16xf32>
    %6 = vector.multi_reduction <add>, %5, %cst_5 [0] : vector<16x16xf32> to vector<16xf32>
    %7 = vector.shape_cast %6 : vector<16xf32> to vector<1x16xf32>
    %cst_6 = arith.constant 6.250000e-02 : f32
    %8 = vector.broadcast %cst_6 : f32 to vector<1x16xf32>
    %9 = arith.mulf %7, %8 : vector<1x16xf32>
    %10 = vector.broadcast %9 : vector<1x16xf32> to vector<16x16xf32>
    %11 = arith.subf %5, %10 : vector<16x16xf32>
    %12 = arith.mulf %11, %11 : vector<16x16xf32>
    %cst_7 = arith.constant dense<0.000000e+00> : vector<16xf32>
    %13 = vector.multi_reduction <add>, %12, %cst_7 [0] : vector<16x16xf32> to vector<16xf32>
    %14 = vector.shape_cast %13 : vector<16xf32> to vector<1x16xf32>
    %cst_8 = arith.constant 6.250000e-02 : f32
    %15 = vector.broadcast %cst_8 : f32 to vector<1x16xf32>
    %16 = arith.mulf %14, %15 : vector<1x16xf32>
    %cst_9 = arith.constant 9.99999974E-6 : f32
    %17 = vector.broadcast %cst_9 : f32 to vector<1x16xf32>
    %18 = arith.addf %16, %17 : vector<1x16xf32>
    %19 = math.rsqrt %18 : vector<1x16xf32>
    %20 = vector.broadcast %19 : vector<1x16xf32> to vector<16x16xf32>
    %21 = arith.mulf %11, %20 : vector<16x16xf32>
    %c0_10 = arith.constant 0 : index
    %c0_11 = arith.constant 0 : index
    %22 = vector.load %arg3[%c0_10, %c0_11] : memref<1x16xf32, #tpu.memory_space<vmem>>, vector<1x16xf32>
    %23 = vector.broadcast %22 : vector<1x16xf32> to vector<16x16xf32>
    %24 = arith.mulf %21, %23 : vector<16x16xf32>
    %c0_12 = arith.constant 0 : index
    %c0_13 = arith.constant 0 : index
    %25 = vector.load %arg4[%c0_12, %c0_13] : memref<1x16xf32, #tpu.memory_space<vmem>>, vector<1x16xf32>
    %26 = vector.broadcast %25 : vector<1x16xf32> to vector<16x16xf32>
    %27 = arith.addf %24, %26 : vector<16x16xf32>
    %28 = math.tanh %27 : vector<16x16xf32>
    %c0_14 = arith.constant 0 : index
    %c0_15 = arith.constant 0 : index
    %29 = vector.load %arg5[%c0_14, %c0_15] : memref<16x16xf32, #tpu.memory_space<vmem>>, vector<16x16xf32>
    tpu.vector_store %arg5[%c0_14, %c0_15], %28 {strides = array<i32>} : memref<16x16xf32, #tpu.memory_space<vmem>>, vector<16x16xf32>,
    return
  }
}

module attributes {stable_mosaic.version = 11 : i64} {
  func.func @_conv_bn_act_kernel(%arg0: memref<16x16xf32, #tpu.memory_space<vmem>>, %arg1: memref<16x8xf32, #tpu.memory_space<vmem>>, %arg2: memref<1x8xf32, #tpu.memory_space<vmem>>, %arg3: memref<1x8xf32, #tpu.memory_space<vmem>>, %arg4: memref<1x8xf32, #tpu.memory_space<vmem>>, %arg5: memref<16x8xf32, #tpu.memory_space<vmem>>) attributes {dimension_semantics = [], scalar_prefetch = 0 : i64, scratch_operands = 0 : i64, tpu.core_type = #tpu.core_type<tc>} {
    %c0 = arith.constant 0 : index
    %c0_0 = arith.constant 0 : index
    %0 = vector.load %arg0[%c0, %c0_0] : memref<16x16xf32, #tpu.memory_space<vmem>>, vector<16x16xf32>
    %c0_1 = arith.constant 0 : index
    %c0_2 = arith.constant 0 : index
    %1 = vector.load %arg1[%c0_1, %c0_2] : memref<16x8xf32, #tpu.memory_space<vmem>>, vector<16x8xf32>
    %cst = arith.constant dense<0.000000e+00> : vector<16x8xf32>
    %2 = tpu.matmul %0, %1, %cst {dimension_numbers = #tpu.dot_dimension_numbers<[1], [0], [0], [1], [0, 0, 1, 1], [], []>} : vector<16x16xf32>, vector<16x8xf32>, vector<16x8xf32> -> vector<16x8xf32>
    %c0_3 = arith.constant 0 : index
    %c0_4 = arith.constant 0 : index
    %3 = vector.load %arg2[%c0_3, %c0_4] : memref<1x8xf32, #tpu.memory_space<vmem>>, vector<1x8xf32>
    %4 = vector.broadcast %3 : vector<1x8xf32> to vector<16x8xf32>
    %5 = arith.addf %2, %4 : vector<16x8xf32>
    %c0_5 = arith.constant 0 : index
    %c0_6 = arith.constant 0 : index
    %6 = vector.load %arg5[%c0_5, %c0_6] : memref<16x8xf32, #tpu.memory_space<vmem>>, vector<16x8xf32>
    tpu.vector_store %arg5[%c0_5, %c0_6], %5 {strides = array<i32>} : memref<16x8xf32, #tpu.memory_space<vmem>>, vector<16x8xf32>,
    return
  }
}

</mosaic_0001>

<llo_original>
// kernel: tacotron2_forward.15
$region0: #{tacotron2_forward.15}
  #allocation0 [shape = 'u32[]', space=smem, size = 0x4, offset = 0x4, fixed_abs, tag = 'smem constant byte address 0x4 - core index']
  #allocation1 [shape = 'u32[144,128]{1,0:T(1,128)}', space=vmem, size = 0x12000, scoped, tag = 'internal scratch']
  %s0 = inlined_call_operand.vmem [shape: f32[16,16], index: 0, kind: input, shape index: {}]
  %s1 = inlined_call_operand.vmem [shape: f32[16,16], index: 1, kind: input, shape index: {}]
  %s2 = inlined_call_operand.vmem [shape: f32[1,16], index: 2, kind: input, shape index: {}]
  %s3 = inlined_call_operand.vmem [shape: f32[16,16], index: 3, kind: output, shape index: {}]
  %s4 = sld [smem:[#allocation0]]
  $region22: #{tacotron2_forward.15} parent=0
    _
  %s6 = ssub.s32 1, %s4
  %s7 = scalar_select 0, %s6, %s4
  // Predicated region
  $region2: #{tacotron2_forward.15} parent=0 // pred_check
    _
  $region3: #{tacotron2_forward.15} parent=0 // pred_check_branch
    %9 = sbr.rel (0) target = $region5
  $region4: #{tacotron2_forward.15} parent=0 // pred_region
    _
  $region5: #{tacotron2_forward.15} parent=0 // pred_fallthru
    _
  // Predicated region
  $region6: #{tacotron2_forward.15} parent=0 // pred_check
    _
  $region7: #{tacotron2_forward.15} parent=0 // pred_check_branch
    %11 = sbr.rel (0) target = $region9
  $region8: #{tacotron2_forward.15} parent=0 // pred_region
    _
  $region9: #{tacotron2_forward.15} parent=0 // pred_fallthru
    _
  // Predicated region
  $region10: #{tacotron2_forward.15} parent=0 // pred_check
    _
  $region11: #{tacotron2_forward.15} parent=0 // pred_check_branch
    %13 = sbr.rel (0) target = $region13
  $region12: #{tacotron2_forward.15} parent=0 // pred_region
    _
  $region13: #{tacotron2_forward.15} parent=0 // pred_fallthru
    _
  %v14 = vld [vmem:[%s0] sm:$0xff]
  %v15 = vld [vmem:[%s0 + $0x8] sm:$0xff]
  %v16 = vld [vmem:[%s1] sm:$0xff]
  %v17 = vld [vmem:[%s1 + $0x8] sm:$0xff]
  %v18 = vld [vmem:[%s2] sm:$0x1]
  %v20 = vlaneseq
  %v21 = vshrl.u32 %v20, 7
  %v22 = vsub.s32 0, %v21
  %v23 = vrot.slane %v18, %v22
  %vm25 = vcmask 130048
  %v27 = vsel %vm25, %v14, 0
  %v30 = vsel %vm25, %v15, 0
  %32 = vmatprep.subr.mxu0 0.0
  %33 = vmatpush1.msra.mxu0 %v16
  %34 = vmatprep.subr.mxu0 0.0
  %35 = vmatpush1.msra.mxu0 %v17
  %36 = vmatprep.subr.mxu0 0.0
  %37 = vmatpush1.msra.mxu0 0.0
  %38 = vmatprep.subr.mxu0 0.0
  %39 = vmatpush1.msra.mxu0 0.0
  %40 = vmatprep.subr.mxu0 0.0
  %41 = vmatpush1.msra.mxu0 0.0
  %42 = vmatprep.subr.mxu0 0.0
  %43 = vmatpush1.msra.mxu0 0.0
  %44 = vmatprep.subr.mxu0 0.0
  %45 = vmatpush1.msra.mxu0 0.0
  %46 = vmatprep.subr.mxu0 0.0
  %47 = vmatpush1.msra.mxu0 0.0
  %48 = vmatprep.subr.mxu0 0.0
  %49 = vmatpush1.msra.mxu0 0.0
  %50 = vmatprep.subr.mxu0 0.0
  %51 = vmatpush1.msra.mxu0 0.0
  %52 = vmatprep.subr.mxu0 0.0
  %53 = vmatpush1.msra.mxu0 0.0
  %54 = vmatprep.subr.mxu0 0.0
  %55 = vmatpush1.msra.mxu0 0.0
  %56 = vmatprep.subr.mxu0 0.0
  %57 = vmatpush1.msra.mxu0 0.0
  %58 = vmatprep.subr.mxu0 0.0
  %59 = vmatpush1.msra.mxu0 0.0
  %60 = vmatprep.subr.mxu0 0.0
  %61 = vmatpush1.msra.mxu0 0.0
  %62 = vmatprep.subr.mxu0 0.0
  %63 = vmatpush1.msra.mxu0 0.0
  %64 = vmatprep.subr.mxu0 0.0
  %65 = vmatpush1.msra.mxu0 0.0
  %66 = vmatprep.subr.mxu0 0.0
  %67 = vmatpush1.msra.mxu0 0.0
  %68 = vmatprep.subr.mxu0 0.0
  %69 = vmatpush1.msra.mxu0 0.0
  %70 = vmatprep.subr.mxu0 0.0
  %71 = vmatpush1.msra.mxu0 0.0
  %72 = vmatprep.subr.mxu0 0.0
  %73 = vmatpush1.msra.mxu0 0.0
  %74 = vmatprep.subr.mxu0 0.0
  %75 = vmatpush1.msra.mxu0 0.0
  %76 = vmatprep.subr.mxu0 0.0
  %77 = vmatpush1.msra.mxu0 0.0
  %78 = vmatprep.subr.mxu0 0.0
  %79 = vmatpush1.msra.mxu0 0.0
  %80 = vmatprep.subr.mxu0 0.0
  %81 = vmatpush1.msra.mxu0 0.0
  %82 = vmatprep.subr.mxu0 0.0
  %83 = vmatpush1.msra.mxu0 0.0
  %84 = vmatprep.subr.mxu0 0.0
  %85 = vmatpush1.msra.mxu0 0.0
  %86 = vmatprep.subr.mxu0 0.0
  %87 = vmatpush1.msra.mxu0 0.0
  %88 = vmatprep.subr.mxu0 0.0
  %89 = vmatpush1.msra.mxu0 0.0
  %90 = vmatprep.subr.mxu0 0.0
  %91 = vmatpush1.msra.mxu0 0.0
  %92 = vmatprep.subr.mxu0 0.0
  %93 = vmatpush1.msra.mxu0 0.0
  %94 = vmatprep.subr.mxu0 0.0
  %95 = vmatpush1.msra.mxu0 0.0
  %96 = vmatprep.mubr.f32.mxu0 0.0
  %97 = vmatmul.mubr.f32.gmra.mrb[0].mxu0 %v27
  %v98 = vpop.f32.mrb[0].mxu0
  %v99 = vadd.f32 %v23, %v98
  %v100 = vpop.f32.mrb[0].mxu0
  %101 = vmatprep.mubr.f32.mxu0 0.0
  %102 = vmatmul.mubr.f32.gmra.mrb[0].mxu0 %v30
  %v103 = vpop.f32.mrb[0].mxu0
  %v104 = vadd.f32 %v23, %v103
  %v105 = vpop.f32.mrb[0].mxu0
  %106 = vdwg.mxu0
  %107 = vst.msk [vmem:[%s3] sm:$0xff] %vm25, %v99
  %108 = vst.msk [vmem:[%s3 + $0x8] sm:$0xff] %vm25, %v104
  // Predicated region
  $region14: #{tacotron2_forward.15} parent=0 // pred_check
    _
  $region15: #{tacotron2_forward.15} parent=0 // pred_check_branch
    %110 = sbr.rel (0) target = $region17
  $region16: #{tacotron2_forward.15} parent=0 // pred_region
    _
  $region17: #{tacotron2_forward.15} parent=0 // pred_fallthru
    _
  // Predicated region
  $region18: #{tacotron2_forward.15} parent=0 // pred_check
    _
  $region19: #{tacotron2_forward.15} parent=0 // pred_check_branch
    %112 = sbr.rel (0) target = $region21
  $region20: #{tacotron2_forward.15} parent=0 // pred_region
    _
  $region21: #{tacotron2_forward.15} parent=0 // pred_fallthru
    _

// kernel: tacotron2_forward.14
$region0: #{tacotron2_forward.14}
  #allocation0 [shape = 'u32[]', space=smem, size = 0x4, offset = 0x4, fixed_abs, tag = 'smem constant byte address 0x4 - core index']
  #allocation1 [shape = 'u32[144,128]{1,0:T(1,128)}', space=vmem, size = 0x12000, scoped, tag = 'internal scratch']
  %s0 = inlined_call_operand.vmem [shape: f32[16,8], index: 0, kind: input, shape index: {}]
  %s1 = inlined_call_operand.vmem [shape: f32[8,16], index: 1, kind: input, shape index: {}]
  %s2 = inlined_call_operand.vmem [shape: f32[1,16], index: 2, kind: input, shape index: {}]
  %s3 = inlined_call_operand.vmem [shape: f32[16,16], index: 3, kind: output, shape index: {}]
  %s4 = sld [smem:[#allocation0]]
  $region22: #{tacotron2_forward.14} parent=0
    _
  %s6 = ssub.s32 1, %s4
  %s7 = scalar_select 0, %s6, %s4
  // Predicated region
  $region2: #{tacotron2_forward.14} parent=0 // pred_check
    _
  $region3: #{tacotron2_forward.14} parent=0 // pred_check_branch
    %9 = sbr.rel (0) target = $region5
  $region4: #{tacotron2_forward.14} parent=0 // pred_region
    _
  $region5: #{tacotron2_forward.14} parent=0 // pred_fallthru
    _
  // Predicated region
  $region6: #{tacotron2_forward.14} parent=0 // pred_check
    _
  $region7: #{tacotron2_forward.14} parent=0 // pred_check_branch
    %11 = sbr.rel (0) target = $region9
  $region8: #{tacotron2_forward.14} parent=0 // pred_region
    _
  $region9: #{tacotron2_forward.14} parent=0 // pred_fallthru
    _
  // Predicated region
  $region10: #{tacotron2_forward.14} parent=0 // pred_check
    _
  $region11: #{tacotron2_forward.14} parent=0 // pred_check_branch
    %13 = sbr.rel (0) target = $region13
  $region12: #{tacotron2_forward.14} parent=0 // pred_region
    _
  $region13: #{tacotron2_forward.14} parent=0 // pred_fallthru
    _
  %v14 = vld [vmem:[%s0] sm:$0xff]
  %v15 = vld [vmem:[%s0 + $0x8] sm:$0xff]
  %v16 = vld [vmem:[%s1] sm:$0xff]
  %v17 = vld [vmem:[%s2] sm:$0x1]
  %v19 = vlaneseq
  %v20 = vshrl.u32 %v19, 7
  %v21 = vsub.s32 0, %v20
  %v22 = vrot.slane %v17, %v21
  %vm24 = vcmask 64512
  %v26 = vsel %vm24, %v14, 0
  %v29 = vsel %vm24, %v15, 0
  %31 = vmatprep.subr.mxu0 0.0
  %32 = vmatpush1.msra.mxu0 %v16
  %33 = vmatprep.subr.mxu0 0.0
  %34 = vmatpush1.msra.mxu0 0.0
  %35 = vmatprep.subr.mxu0 0.0
  %36 = vmatpush1.msra.mxu0 0.0
  %37 = vmatprep.subr.mxu0 0.0
  %38 = vmatpush1.msra.mxu0 0.0
  %39 = vmatprep.subr.mxu0 0.0
  %40 = vmatpush1.msra.mxu0 0.0
  %41 = vmatprep.subr.mxu0 0.0
  %42 = vmatpush1.msra.mxu0 0.0
  %43 = vmatprep.subr.mxu0 0.0
  %44 = vmatpush1.msra.mxu0 0.0
  %45 = vmatprep.subr.mxu0 0.0
  %46 = vmatpush1.msra.mxu0 0.0
  %47 = vmatprep.subr.mxu0 0.0
  %48 = vmatpush1.msra.mxu0 0.0
  %49 = vmatprep.subr.mxu0 0.0
  %50 = vmatpush1.msra.mxu0 0.0
  %51 = vmatprep.subr.mxu0 0.0
  %52 = vmatpush1.msra.mxu0 0.0
  %53 = vmatprep.subr.mxu0 0.0
  %54 = vmatpush1.msra.mxu0 0.0
  %55 = vmatprep.subr.mxu0 0.0
  %56 = vmatpush1.msra.mxu0 0.0
  %57 = vmatprep.subr.mxu0 0.0
  %58 = vmatpush1.msra.mxu0 0.0
  %59 = vmatprep.subr.mxu0 0.0
  %60 = vmatpush1.msra.mxu0 0.0
  %61 = vmatprep.subr.mxu0 0.0
  %62 = vmatpush1.msra.mxu0 0.0
  %63 = vmatprep.subr.mxu0 0.0
  %64 = vmatpush1.msra.mxu0 0.0
  %65 = vmatprep.subr.mxu0 0.0
  %66 = vmatpush1.msra.mxu0 0.0
  %67 = vmatprep.subr.mxu0 0.0
  %68 = vmatpush1.msra.mxu0 0.0
  %69 = vmatprep.subr.mxu0 0.0
  %70 = vmatpush1.msra.mxu0 0.0
  %71 = vmatprep.subr.mxu0 0.0
  %72 = vmatpush1.msra.mxu0 0.0
  %73 = vmatprep.subr.mxu0 0.0
  %74 = vmatpush1.msra.mxu0 0.0
  %75 = vmatprep.subr.mxu0 0.0
  %76 = vmatpush1.msra.mxu0 0.0
  %77 = vmatprep.subr.mxu0 0.0
  %78 = vmatpush1.msra.mxu0 0.0
  %79 = vmatprep.subr.mxu0 0.0
  %80 = vmatpush1.msra.mxu0 0.0
  %81 = vmatprep.subr.mxu0 0.0
  %82 = vmatpush1.msra.mxu0 0.0
  %83 = vmatprep.subr.mxu0 0.0
  %84 = vmatpush1.msra.mxu0 0.0
  %85 = vmatprep.subr.mxu0 0.0
  %86 = vmatpush1.msra.mxu0 0.0
  %87 = vmatprep.subr.mxu0 0.0
  %88 = vmatpush1.msra.mxu0 0.0
  %89 = vmatprep.subr.mxu0 0.0
  %90 = vmatpush1.msra.mxu0 0.0
  %91 = vmatprep.subr.mxu0 0.0
  %92 = vmatpush1.msra.mxu0 0.0
  %93 = vmatprep.subr.mxu0 0.0
  %94 = vmatpush1.msra.mxu0 0.0
  %95 = vmatprep.mubr.f32.mxu0 0.0
  %96 = vmatmul.mubr.f32.gmra.mrb[0].mxu0 %v26
  %v97 = vpop.f32.mrb[0].mxu0
  %v98 = vadd.f32 %v22, %v97
  %v99 = vpop.f32.mrb[0].mxu0
  %100 = vmatprep.mubr.f32.mxu0 0.0
  %101 = vmatmul.mubr.f32.gmra.mrb[0].mxu0 %v29
  %v102 = vpop.f32.mrb[0].mxu0
  %v103 = vadd.f32 %v22, %v102
  %v104 = vpop.f32.mrb[0].mxu0
  %105 = vdwg.mxu0
  %vm106 = vcmask 130048
  %107 = vst.msk [vmem:[%s3] sm:$0xff] %vm106, %v98
  %108 = vst.msk [vmem:[%s3 + $0x8] sm:$0xff] %vm106, %v103
  // Predicated region
  $region14: #{tacotron2_forward.14} parent=0 // pred_check
    _
  $region15: #{tacotron2_forward.14} parent=0 // pred_check_branch
    %110 = sbr.rel (0) target = $region17
  $region16: #{tacotron2_forward.14} parent=0 // pred_region
    _
  $region17: #{tacotron2_forward.14} parent=0 // pred_fallthru
    _
  // Predicated region
  $region18: #{tacotron2_forward.14} parent=0 // pred_check
    _
  $region19: #{tacotron2_forward.14} parent=0 // pred_check_branch
    %112 = sbr.rel (0) target = $region21
  $region20: #{tacotron2_forward.14} parent=0 // pred_region
    _
  $region21: #{tacotron2_forward.14} parent=0 // pred_fallthru
    _

// kernel: tacotron2_forward.16
$region0: #{tacotron2_forward.16}
  #allocation0 [shape = 'u32[]', space=smem, size = 0x4, offset = 0x4, fixed_abs, tag = 'smem constant byte address 0x4 - core index']
  #allocation1 [shape = 'u32[144,128]{1,0:T(1,128)}', space=vmem, size = 0x12000, scoped, tag = 'internal scratch']
  %s0 = inlined_call_operand.vmem [shape: f32[16,16], index: 0, kind: input, shape index: {}]
  %s1 = inlined_call_operand.vmem [shape: f32[16,64], index: 1, kind: input, shape index: {}]
  %s2 = inlined_call_operand.vmem [shape: f32[1,64], index: 2, kind: input, shape index: {}]
  %s3 = inlined_call_operand.vmem [shape: f32[16,64], index: 3, kind: output, shape index: {}]
  %s4 = sld [smem:[#allocation0]]
  $region22: #{tacotron2_forward.16} parent=0
    _
  %s6 = ssub.s32 1, %s4
  %s7 = scalar_select 0, %s6, %s4
  // Predicated region
  $region2: #{tacotron2_forward.16} parent=0 // pred_check
    _
  $region3: #{tacotron2_forward.16} parent=0 // pred_check_branch
    %9 = sbr.rel (0) target = $region5
  $region4: #{tacotron2_forward.16} parent=0 // pred_region
    _
  $region5: #{tacotron2_forward.16} parent=0 // pred_fallthru
    _
  // Predicated region
  $region6: #{tacotron2_forward.16} parent=0 // pred_check
    _
  $region7: #{tacotron2_forward.16} parent=0 // pred_check_branch
    %11 = sbr.rel (0) target = $region9
  $region8: #{tacotron2_forward.16} parent=0 // pred_region
    _
  $region9: #{tacotron2_forward.16} parent=0 // pred_fallthru
    _
  // Predicated region
  $region10: #{tacotron2_forward.16} parent=0 // pred_check
    _
  $region11: #{tacotron2_forward.16} parent=0 // pred_check_branch
    %13 = sbr.rel (0) target = $region13
  $region12: #{tacotron2_forward.16} parent=0 // pred_region
    _
  $region13: #{tacotron2_forward.16} parent=0 // pred_fallthru
    _
  %v14 = vld [vmem:[%s0] sm:$0xff]
  %v15 = vld [vmem:[%s0 + $0x8] sm:$0xff]
  %v16 = vld [vmem:[%s1] sm:$0xff]
  %v17 = vld [vmem:[%s1 + $0x8] sm:$0xff]
  %v18 = vld [vmem:[%s2] sm:$0x1]
  %v20 = vlaneseq
  %v21 = vshrl.u32 %v20, 7
  %v22 = vsub.s32 0, %v21
  %v23 = vrot.slane %v18, %v22
  %vm25 = vcmask 130048
  %v27 = vsel %vm25, %v14, 0
  %v30 = vsel %vm25, %v15, 0
  %32 = vmatprep.subr.mxu0 0.0
  %33 = vmatpush1.msra.mxu0 %v16
  %34 = vmatprep.subr.mxu0 0.0
  %35 = vmatpush1.msra.mxu0 %v17
  %36 = vmatprep.subr.mxu0 0.0
  %37 = vmatpush1.msra.mxu0 0.0
  %38 = vmatprep.subr.mxu0 0.0
  %39 = vmatpush1.msra.mxu0 0.0
  %40 = vmatprep.subr.mxu0 0.0
  %41 = vmatpush1.msra.mxu0 0.0
  %42 = vmatprep.subr.mxu0 0.0
  %43 = vmatpush1.msra.mxu0 0.0
  %44 = vmatprep.subr.mxu0 0.0
  %45 = vmatpush1.msra.mxu0 0.0
  %46 = vmatprep.subr.mxu0 0.0
  %47 = vmatpush1.msra.mxu0 0.0
  %48 = vmatprep.subr.mxu0 0.0
  %49 = vmatpush1.msra.mxu0 0.0
  %50 = vmatprep.subr.mxu0 0.0
  %51 = vmatpush1.msra.mxu0 0.0
  %52 = vmatprep.subr.mxu0 0.0
  %53 = vmatpush1.msra.mxu0 0.0
  %54 = vmatprep.subr.mxu0 0.0
  %55 = vmatpush1.msra.mxu0 0.0
  %56 = vmatprep.subr.mxu0 0.0
  %57 = vmatpush1.msra.mxu0 0.0
  %58 = vmatprep.subr.mxu0 0.0
  %59 = vmatpush1.msra.mxu0 0.0
  %60 = vmatprep.subr.mxu0 0.0
  %61 = vmatpush1.msra.mxu0 0.0
  %62 = vmatprep.subr.mxu0 0.0
  %63 = vmatpush1.msra.mxu0 0.0
  %64 = vmatprep.subr.mxu0 0.0
  %65 = vmatpush1.msra.mxu0 0.0
  %66 = vmatprep.subr.mxu0 0.0
  %67 = vmatpush1.msra.mxu0 0.0
  %68 = vmatprep.subr.mxu0 0.0
  %69 = vmatpush1.msra.mxu0 0.0
  %70 = vmatprep.subr.mxu0 0.0
  %71 = vmatpush1.msra.mxu0 0.0
  %72 = vmatprep.subr.mxu0 0.0
  %73 = vmatpush1.msra.mxu0 0.0
  %74 = vmatprep.subr.mxu0 0.0
  %75 = vmatpush1.msra.mxu0 0.0
  %76 = vmatprep.subr.mxu0 0.0
  %77 = vmatpush1.msra.mxu0 0.0
  %78 = vmatprep.subr.mxu0 0.0
  %79 = vmatpush1.msra.mxu0 0.0
  %80 = vmatprep.subr.mxu0 0.0
  %81 = vmatpush1.msra.mxu0 0.0
  %82 = vmatprep.subr.mxu0 0.0
  %83 = vmatpush1.msra.mxu0 0.0
  %84 = vmatprep.subr.mxu0 0.0
  %85 = vmatpush1.msra.mxu0 0.0
  %86 = vmatprep.subr.mxu0 0.0
  %87 = vmatpush1.msra.mxu0 0.0
  %88 = vmatprep.subr.mxu0 0.0
  %89 = vmatpush1.msra.mxu0 0.0
  %90 = vmatprep.subr.mxu0 0.0
  %91 = vmatpush1.msra.mxu0 0.0
  %92 = vmatprep.subr.mxu0 0.0
  %93 = vmatpush1.msra.mxu0 0.0
  %94 = vmatprep.subr.mxu0 0.0
  %95 = vmatpush1.msra.mxu0 0.0
  %96 = vmatprep.mubr.f32.mxu0 0.0
  %97 = vmatmul.mubr.f32.gmra.mrb[0].mxu0 %v27
  %v98 = vpop.f32.mrb[0].mxu0
  %v99 = vadd.f32 %v23, %v98
  %v100 = vpop.f32.mrb[0].mxu0
  %101 = vmatprep.mubr.f32.mxu0 0.0
  %102 = vmatmul.mubr.f32.gmra.mrb[0].mxu0 %v30
  %v103 = vpop.f32.mrb[0].mxu0
  %v104 = vadd.f32 %v23, %v103
  %v105 = vpop.f32.mrb[0].mxu0
  %106 = vdwg.mxu0
  %vm107 = vcmask 523264
  %108 = vst.msk [vmem:[%s3] sm:$0xff] %vm107, %v99
  %109 = vst.msk [vmem:[%s3 + $0x8] sm:$0xff] %vm107, %v104
  // Predicated region
  $region14: #{tacotron2_forward.16} parent=0 // pred_check
    _
  $region15: #{tacotron2_forward.16} parent=0 // pred_check_branch
    %111 = sbr.rel (0) target = $region17
  $region16: #{tacotron2_forward.16} parent=0 // pred_region
    _
  $region17: #{tacotron2_forward.16} parent=0 // pred_fallthru
    _
  // Predicated region
  $region18: #{tacotron2_forward.16} parent=0 // pred_check
    _
  $region19: #{tacotron2_forward.16} parent=0 // pred_check_branch
    %113 = sbr.rel (0) target = $region21
  $region20: #{tacotron2_forward.16} parent=0 // pred_region
    _
  $region21: #{tacotron2_forward.16} parent=0 // pred_fallthru
    _

// kernel: tacotron2_forward.20
$region0: #{tacotron2_forward.20}
  #allocation0 [shape = 'u32[]', space=smem, size = 0x4, offset = 0x4, fixed_abs, tag = 'smem constant byte address 0x4 - core index']
  #allocation1 [shape = 'u32[144,128]{1,0:T(1,128)}', space=vmem, size = 0x12000, scoped, tag = 'internal scratch']
  %s0 = inlined_call_operand.vmem [shape: f32[16,16], index: 0, kind: input, shape index: {}]
  %s1 = inlined_call_operand.vmem [shape: f32[16,32], index: 1, kind: input, shape index: {}]
  %s2 = inlined_call_operand.vmem [shape: f32[1,32], index: 2, kind: input, shape index: {}]
  %s3 = inlined_call_operand.vmem [shape: f32[16,32], index: 3, kind: output, shape index: {}]
  %s4 = sld [smem:[#allocation0]]
  $region22: #{tacotron2_forward.20} parent=0
    _
  %s6 = ssub.s32 1, %s4
  %s7 = scalar_select 0, %s6, %s4
  // Predicated region
  $region2: #{tacotron2_forward.20} parent=0 // pred_check
    _
  $region3: #{tacotron2_forward.20} parent=0 // pred_check_branch
    %9 = sbr.rel (0) target = $region5
  $region4: #{tacotron2_forward.20} parent=0 // pred_region
    _
  $region5: #{tacotron2_forward.20} parent=0 // pred_fallthru
    _
  // Predicated region
  $region6: #{tacotron2_forward.20} parent=0 // pred_check
    _
  $region7: #{tacotron2_forward.20} parent=0 // pred_check_branch
    %11 = sbr.rel (0) target = $region9
  $region8: #{tacotron2_forward.20} parent=0 // pred_region
    _
  $region9: #{tacotron2_forward.20} parent=0 // pred_fallthru
    _
  // Predicated region
  $region10: #{tacotron2_forward.20} parent=0 // pred_check
    _
  $region11: #{tacotron2_forward.20} parent=0 // pred_check_branch
    %13 = sbr.rel (0) target = $region13
  $region12: #{tacotron2_forward.20} parent=0 // pred_region
    _
  $region13: #{tacotron2_forward.20} parent=0 // pred_fallthru
    _
  %v14 = vld [vmem:[%s0] sm:$0xff]
  %v15 = vld [vmem:[%s0 + $0x8] sm:$0xff]
  %v16 = vld [vmem:[%s1] sm:$0xff]
  %v17 = vld [vmem:[%s1 + $0x8] sm:$0xff]
  %v18 = vld [vmem:[%s2] sm:$0x1]
  %v20 = vlaneseq
  %v21 = vshrl.u32 %v20, 7
  %v22 = vsub.s32 0, %v21
  %v23 = vrot.slane %v18, %v22
  %vm25 = vcmask 130048
  %v27 = vsel %vm25, %v14, 0
  %v30 = vsel %vm25, %v15, 0
  %32 = vmatprep.subr.mxu0 0.0
  %33 = vmatpush1.msra.mxu0 %v16
  %34 = vmatprep.subr.mxu0 0.0
  %35 = vmatpush1.msra.mxu0 %v17
  %36 = vmatprep.subr.mxu0 0.0
  %37 = vmatpush1.msra.mxu0 0.0
  %38 = vmatprep.subr.mxu0 0.0
  %39 = vmatpush1.msra.mxu0 0.0
  %40 = vmatprep.subr.mxu0 0.0
  %41 = vmatpush1.msra.mxu0 0.0
  %42 = vmatprep.subr.mxu0 0.0
  %43 = vmatpush1.msra.mxu0 0.0
  %44 = vmatprep.subr.mxu0 0.0
  %45 = vmatpush1.msra.mxu0 0.0
  %46 = vmatprep.subr.mxu0 0.0
  %47 = vmatpush1.msra.mxu0 0.0
  %48 = vmatprep.subr.mxu0 0.0
  %49 = vmatpush1.msra.mxu0 0.0
  %50 = vmatprep.subr.mxu0 0.0
  %51 = vmatpush1.msra.mxu0 0.0
  %52 = vmatprep.subr.mxu0 0.0
  %53 = vmatpush1.msra.mxu0 0.0
  %54 = vmatprep.subr.mxu0 0.0
  %55 = vmatpush1.msra.mxu0 0.0
  %56 = vmatprep.subr.mxu0 0.0
  %57 = vmatpush1.msra.mxu0 0.0
  %58 = vmatprep.subr.mxu0 0.0
  %59 = vmatpush1.msra.mxu0 0.0
  %60 = vmatprep.subr.mxu0 0.0
  %61 = vmatpush1.msra.mxu0 0.0
  %62 = vmatprep.subr.mxu0 0.0
  %63 = vmatpush1.msra.mxu0 0.0
  %64 = vmatprep.subr.mxu0 0.0
  %65 = vmatpush1.msra.mxu0 0.0
  %66 = vmatprep.subr.mxu0 0.0
  %67 = vmatpush1.msra.mxu0 0.0
  %68 = vmatprep.subr.mxu0 0.0
  %69 = vmatpush1.msra.mxu0 0.0
  %70 = vmatprep.subr.mxu0 0.0
  %71 = vmatpush1.msra.mxu0 0.0
  %72 = vmatprep.subr.mxu0 0.0
  %73 = vmatpush1.msra.mxu0 0.0
  %74 = vmatprep.subr.mxu0 0.0
  %75 = vmatpush1.msra.mxu0 0.0
  %76 = vmatprep.subr.mxu0 0.0
  %77 = vmatpush1.msra.mxu0 0.0
  %78 = vmatprep.subr.mxu0 0.0
  %79 = vmatpush1.msra.mxu0 0.0
  %80 = vmatprep.subr.mxu0 0.0
  %81 = vmatpush1.msra.mxu0 0.0
  %82 = vmatprep.subr.mxu0 0.0
  %83 = vmatpush1.msra.mxu0 0.0
  %84 = vmatprep.subr.mxu0 0.0
  %85 = vmatpush1.msra.mxu0 0.0
  %86 = vmatprep.subr.mxu0 0.0
  %87 = vmatpush1.msra.mxu0 0.0
  %88 = vmatprep.subr.mxu0 0.0
  %89 = vmatpush1.msra.mxu0 0.0
  %90 = vmatprep.subr.mxu0 0.0
  %91 = vmatpush1.msra.mxu0 0.0
  %92 = vmatprep.subr.mxu0 0.0
  %93 = vmatpush1.msra.mxu0 0.0
  %94 = vmatprep.subr.mxu0 0.0
  %95 = vmatpush1.msra.mxu0 0.0
  %96 = vmatprep.mubr.f32.mxu0 0.0
  %97 = vmatmul.mubr.f32.gmra.mrb[0].mxu0 %v27
  %v98 = vpop.f32.mrb[0].mxu0
  %v99 = vadd.f32 %v23, %v98
  %v100 = vpop.f32.mrb[0].mxu0
  %101 = vmatprep.mubr.f32.mxu0 0.0
  %102 = vmatmul.mubr.f32.gmra.mrb[0].mxu0 %v30
  %v103 = vpop.f32.mrb[0].mxu0
  %v104 = vadd.f32 %v23, %v103
  %v105 = vpop.f32.mrb[0].mxu0
  %106 = vdwg.mxu0
  %vm107 = vcmask 261120
  %108 = vst.msk [vmem:[%s3] sm:$0xff] %vm107, %v99
  %109 = vst.msk [vmem:[%s3 + $0x8] sm:$0xff] %vm107, %v104
  // Predicated region
  $region14: #{tacotron2_forward.20} parent=0 // pred_check
    _
  $region15: #{tacotron2_forward.20} parent=0 // pred_check_branch
    %111 = sbr.rel (0) target = $region17
  $region16: #{tacotron2_forward.20} parent=0 // pred_region
    _
  $region17: #{tacotron2_forward.20} parent=0 // pred_fallthru
    _
  // Predicated region
  $region18: #{tacotron2_forward.20} parent=0 // pred_check
    _
  $region19: #{tacotron2_forward.20} parent=0 // pred_check_branch
    %113 = sbr.rel (0) target = $region21
  $region20: #{tacotron2_forward.20} parent=0 // pred_region
    _
  $region21: #{tacotron2_forward.20} parent=0 // pred_fallthru
    _

// kernel: tacotron2_forward.17
$region0: #{tacotron2_forward.17}
  #allocation0 [shape = 'u32[]', space=smem, size = 0x4, offset = 0x4, fixed_abs, tag = 'smem constant byte address 0x4 - core index']
  #allocation1 [shape = 'u32[144,128]{1,0:T(1,128)}', space=vmem, size = 0x12000, scoped, tag = 'internal scratch']
  %s0 = inlined_call_operand.vmem [shape: f32[16,80], index: 0, kind: input, shape index: {}]
  %s1 = inlined_call_operand.vmem [shape: f32[80,16], index: 1, kind: input, shape index: {}]
  %s2 = inlined_call_operand.vmem [shape: f32[1,16], index: 2, kind: input, shape index: {}]
  %s3 = inlined_call_operand.vmem [shape: f32[1,16], index: 3, kind: input, shape index: {}]
  %s4 = inlined_call_operand.vmem [shape: f32[1,16], index: 4, kind: input, shape index: {}]
  %s5 = inlined_call_operand.vmem [shape: f32[16,16], index: 5, kind: output, shape index: {}]
  %s6 = sld [smem:[#allocation0]]
  $region30: #{tacotron2_forward.17} parent=0
    _
  %s8 = ssub.s32 1, %s6
  %s9 = scalar_select 0, %s8, %s6
  // Predicated region
  $region2: #{tacotron2_forward.17} parent=0 // pred_check
    _
  $region3: #{tacotron2_forward.17} parent=0 // pred_check_branch
    %11 = sbr.rel (0) target = $region5
  $region4: #{tacotron2_forward.17} parent=0 // pred_region
    _
  $region5: #{tacotron2_forward.17} parent=0 // pred_fallthru
    _
  // Predicated region
  $region6: #{tacotron2_forward.17} parent=0 // pred_check
    _
  $region7: #{tacotron2_forward.17} parent=0 // pred_check_branch
    %13 = sbr.rel (0) target = $region9
  $region8: #{tacotron2_forward.17} parent=0 // pred_region
    _
  $region9: #{tacotron2_forward.17} parent=0 // pred_fallthru
    _
  // Predicated region
  $region10: #{tacotron2_forward.17} parent=0 // pred_check
    _
  $region11: #{tacotron2_forward.17} parent=0 // pred_check_branch
    %15 = sbr.rel (0) target = $region13
  $region12: #{tacotron2_forward.17} parent=0 // pred_region
    _
  $region13: #{tacotron2_forward.17} parent=0 // pred_fallthru
    _
  // Predicated region
  $region14: #{tacotron2_forward.17} parent=0 // pred_check
    _
  $region15: #{tacotron2_forward.17} parent=0 // pred_check_branch
    %17 = sbr.rel (0) target = $region17
  $region16: #{tacotron2_forward.17} parent=0 // pred_region
    _
  $region17: #{tacotron2_forward.17} parent=0 // pred_fallthru
    _
  // Predicated region
  $region18: #{tacotron2_forward.17} parent=0 // pred_check
    _
  $region19: #{tacotron2_forward.17} parent=0 // pred_check_branch
    %19 = sbr.rel (0) target = $region21
  $region20: #{tacotron2_forward.17} parent=0 // pred_region
    _
  $region21: #{tacotron2_forward.17} parent=0 // pred_fallthru
    _
  %v20 = vld [vmem:[%s0] sm:$0xff]
  %v21 = vld [vmem:[%s0 + $0x8] sm:$0xff]
  %v22 = vld [vmem:[%s1] sm:$0xff]
  %v23 = vld [vmem:[%s1 + $0x8] sm:$0xff]
  %v24 = vld [vmem:[%s1 + $0x10] sm:$0xff]
  %v25 = vld [vmem:[%s1 + $0x18] sm:$0xff]
  %v26 = vld [vmem:[%s1 + $0x20] sm:$0xff]
  %v27 = vld [vmem:[%s1 + $0x28] sm:$0xff]
  %v28 = vld [vmem:[%s1 + $0x30] sm:$0xff]
  %v29 = vld [vmem:[%s1 + $0x38] sm:$0xff]
  %v30 = vld [vmem:[%s1 + $0x40] sm:$0xff]
  %v31 = vld [vmem:[%s1 + $0x48] sm:$0xff]
  %v32 = vld [vmem:[%s2] sm:$0x1]
  %v34 = vlaneseq
  %v35 = vshrl.u32 %v34, 7
  %v36 = vsub.s32 0, %v35
  %v37 = vrot.slane %v32, %v36
  %vm39 = vcmask 654336
  %v41 = vsel %vm39, %v20, 0
  %v44 = vsel %vm39, %v21, 0
  %46 = vmatprep.subr.mxu0 0.0
  %47 = vmatpush1.msra.mxu0 %v22
  %48 = vmatprep.subr.mxu0 0.0
  %49 = vmatpush1.msra.mxu0 %v23
  %50 = vmatprep.subr.mxu0 0.0
  %51 = vmatpush1.msra.mxu0 %v24
  %52 = vmatprep.subr.mxu0 0.0
  %53 = vmatpush1.msra.mxu0 %v25
  %54 = vmatprep.subr.mxu0 0.0
  %55 = vmatpush1.msra.mxu0 %v26
  %56 = vmatprep.subr.mxu0 0.0
  %57 = vmatpush1.msra.mxu0 %v27
  %58 = vmatprep.subr.mxu0 0.0
  %59 = vmatpush1.msra.mxu0 %v28
  %60 = vmatprep.subr.mxu0 0.0
  %61 = vmatpush1.msra.mxu0 %v29
  %62 = vmatprep.subr.mxu0 0.0
  %63 = vmatpush1.msra.mxu0 %v30
  %64 = vmatprep.subr.mxu0 0.0
  %65 = vmatpush1.msra.mxu0 %v31
  %66 = vmatprep.subr.mxu0 0.0
  %67 = vmatpush1.msra.mxu0 0.0
  %68 = vmatprep.subr.mxu0 0.0
  %69 = vmatpush1.msra.mxu0 0.0
  %70 = vmatprep.subr.mxu0 0.0
  %71 = vmatpush1.msra.mxu0 0.0
  %72 = vmatprep.subr.mxu0 0.0
  %73 = vmatpush1.msra.mxu0 0.0
  %74 = vmatprep.subr.mxu0 0.0
  %75 = vmatpush1.msra.mxu0 0.0
  %76 = vmatprep.subr.mxu0 0.0
  %77 = vmatpush1.msra.mxu0 0.0
  %78 = vmatprep.subr.mxu0 0.0
  %79 = vmatpush1.msra.mxu0 0.0
  %80 = vmatprep.subr.mxu0 0.0
  %81 = vmatpush1.msra.mxu0 0.0
  %82 = vmatprep.subr.mxu0 0.0
  %83 = vmatpush1.msra.mxu0 0.0
  %84 = vmatprep.subr.mxu0 0.0
  %85 = vmatpush1.msra.mxu0 0.0
  %86 = vmatprep.subr.mxu0 0.0
  %87 = vmatpush1.msra.mxu0 0.0
  %88 = vmatprep.subr.mxu0 0.0
  %89 = vmatpush1.msra.mxu0 0.0
  %90 = vmatprep.subr.mxu0 0.0
  %91 = vmatpush1.msra.mxu0 0.0
  %92 = vmatprep.subr.mxu0 0.0
  %93 = vmatpush1.msra.mxu0 0.0
  %94 = vmatprep.subr.mxu0 0.0
  %95 = vmatpush1.msra.mxu0 0.0
  %96 = vmatprep.subr.mxu0 0.0
  %97 = vmatpush1.msra.mxu0 0.0
  %98 = vmatprep.subr.mxu0 0.0
  %99 = vmatpush1.msra.mxu0 0.0
  %100 = vmatprep.subr.mxu0 0.0
  %101 = vmatpush1.msra.mxu0 0.0
  %102 = vmatprep.subr.mxu0 0.0
  %103 = vmatpush1.msra.mxu0 0.0
  %104 = vmatprep.subr.mxu0 0.0
  %105 = vmatpush1.msra.mxu0 0.0
  %106 = vmatprep.subr.mxu0 0.0
  %107 = vmatpush1.msra.mxu0 0.0
  %108 = vmatprep.subr.mxu0 0.0
  %109 = vmatpush1.msra.mxu0 0.0
  %110 = vmatprep.mubr.f32.mxu0 0.0
  %111 = vmatmul.mubr.f32.gmra.mrb[0].mxu0 %v41
  %v112 = vpop.f32.mrb[0].mxu0
  %v113 = vadd.f32 %v37, %v112
  %v114 = vpop.f32.mrb[0].mxu0
  %115 = vmatprep.mubr.f32.mxu0 0.0
  %116 = vmatmul.mubr.f32.gmra.mrb[0].mxu0 %v44
  %v117 = vpop.f32.mrb[0].mxu0
  %v118 = vadd.f32 %v37, %v117
  %v119 = vpop.f32.mrb[0].mxu0
  %120 = vdwg.mxu0
  %vm121 = vcmask 130048
  %v122 = vsel %vm121, %v113, 0.0
  %v123 = vsel %vm121, %v118, 0.0
  %v124 = vadd.f32 %v122, %v123
  %v125 = vrot.slane %v124, 4
  %v126 = vadd.f32 %v124, %v125
  %v127 = vrot.slane %v126, 2
  %v128 = vadd.f32 %v126, %v127
  %v129 = vrot.slane %v128, 1
  %v130 = vadd.f32 %v128, %v129
  %v131 = vmul.f32 %v130, 0.0625
  %v132 = vsub.f32 %v113, %v131
  %v133 = vsub.f32 %v118, %v131
  %v134 = vmul.f32 %v132, %v132
  %v135 = vmul.f32 %v133, %v133
  %v136 = vsel %vm121, %v134, 0.0
  %v137 = vsel %vm121, %v135, 0.0
  %v138 = vadd.f32 %v136, %v137
  %v139 = vrot.slane %v138, 4
  %v140 = vadd.f32 %v138, %v139
  %v141 = vrot.slane %v140, 2
  %v142 = vadd.f32 %v140, %v141
  %v143 = vrot.slane %v142, 1
  %v144 = vadd.f32 %v142, %v143
  %v145 = vmul.f32 %v144, 0.0625
  %v146 = vadd.f32 %v145, 1e-05
  %v147 = vrsqrt.pop %v146
  %v148 = vmul.f32 %v132, %v147
  %v149 = vmul.f32 %v133, %v147
  %v150 = vld [vmem:[%s3] sm:$0x1]
  %v152 = vlaneseq
  %v153 = vshrl.u32 %v152, 7
  %v154 = vsub.s32 0, %v153
  %v155 = vrot.slane %v150, %v154
  %v157 = vmul.f32 %v148, %v155
  %v158 = vmul.f32 %v149, %v155
  %v159 = vld [vmem:[%s4] sm:$0x1]
  %v161 = vlaneseq
  %v162 = vshrl.u32 %v161, 7
  %v163 = vsub.s32 0, %v162
  %v164 = vrot.slane %v159, %v163
  %v166 = vadd.f32 %v157, %v164
  %v167 = vadd.f32 %v158, %v164
  %v168 = vmax.f32 %v166, 0.0
  %v169 = vmax.f32 %v167, 0.0
  %170 = vst.msk [vmem:[%s5] sm:$0xff] %vm121, %v168
  %171 = vst.msk [vmem:[%s5 + $0x8] sm:$0xff] %vm121, %v169
  // Predicated region
  $region22: #{tacotron2_forward.17} parent=0 // pred_check
    _
  $region23: #{tacotron2_forward.17} parent=0 // pred_check_branch
    %173 = sbr.rel (0) target = $region25
  $region24: #{tacotron2_forward.17} parent=0 // pred_region
    _
  $region25: #{tacotron2_forward.17} parent=0 // pred_fallthru
    _
  // Predicated region
  $region26: #{tacotron2_forward.17} parent=0 // pred_check
    _
  $region27: #{tacotron2_forward.17} parent=0 // pred_check_branch
    %175 = sbr.rel (0) target = $region29
  $region28: #{tacotron2_forward.17} parent=0 // pred_region
    _
  $region29: #{tacotron2_forward.17} parent=0 // pred_fallthru
    _

// kernel: tacotron2_forward.21
$region0: #{tacotron2_forward.21}
  #allocation0 [shape = 'u32[]', space=smem, size = 0x4, offset = 0x4, fixed_abs, tag = 'smem constant byte address 0x4 - core index']
  #allocation1 [shape = 'u32[144,128]{1,0:T(1,128)}', space=vmem, size = 0x12000, scoped, tag = 'internal scratch']
  #allocation2 [shape = 'f32[2,8]{1,0:T(2,128)}', space=vmem, size = 0x400, scoped, tag = 'scratch operand']
  #allocation3 [shape = 'f32[2,8]{1,0:T(2,128)}', space=vmem, size = 0x400, scoped, tag = 'scratch operand']
  #allocation4 [shape = 'f32[2,8]{1,0:T(2,128)}', space=vmem, size = 0x400, scoped, tag = 'scratch operand']
  #allocation5 [shape = 'f32[2,8]{1,0:T(2,128)}', space=vmem, size = 0x400, scoped, tag = 'scratch operand']
  %s0 = inlined_call_operand.vmem [shape: f32[8,2,32], index: 0, kind: input, shape index: {}]
  %s1 = inlined_call_operand.vmem [shape: f32[8,2,32], index: 1, kind: input, shape index: {}]
  %s2 = inlined_call_operand.vmem [shape: f32[8,32], index: 2, kind: input, shape index: {}]
  %s3 = inlined_call_operand.vmem [shape: f32[8,32], index: 3, kind: input, shape index: {}]
  %s4 = inlined_call_operand.vmem [shape: f32[8,2,8], index: 4, kind: output, shape index: {0}]
  %s5 = inlined_call_operand.vmem [shape: f32[8,2,8], index: 5, kind: output, shape index: {1}]
  %6 = xla_tuple %s4, %s5
  %s7 = sld [smem:[#allocation0]]
  $region61: #{tacotron2_forward.21} parent=0
    _
  %s9 = ssub.s32 1, %s7
  %s10 = scalar_select 0, %s9, %s7
  loop: start=0, step=1, limit=10
  $region2: #{tacotron2_forward.21} parent=0 // loop_pre_header
    _
  $region3: #{tacotron2_forward.21} parent=0 // loop_header
    %s12 = sphi 0, %s16
    %p13 = scmp.ge.s32.totalorder %s12, 10
    %s22 = sphi 0, %s24
    %s25 = sphi 0, %s22
    %s26 = sphi 0, %s25
    %s42 = sphi 0, %s26
    %s50 = sphi 0, %s52
    %s53 = sphi 0, %s50
    %s54 = sphi 0, %s53
    %s70 = sphi 0, %s54
    %s74 = sphi 0, %s74
    %s76 = sphi 0, %s74
    %s77 = sphi 0, %s76
    %s91 = sphi 0, %s77
    %s95 = sphi 0, %s95
    %s97 = sphi 0, %s95
    %s98 = sphi 0, %s97
    %s112 = sphi 0, %s98
    %s118 = sphi 0, %s120
    %s121 = sphi 0, %s118
    %s122 = sphi 0, %s121
    %s138 = sphi 0, %s122
    %s146 = sphi 0, %s148
    %s149 = sphi 0, %s146
    %s150 = sphi 0, %s149
    %s166 = sphi 0, %s150
  $region4: #{tacotron2_forward.21} parent=0 // loop_header_branch
    %15 = sbr.rel (%p13) target = $region8
  $region5: #{tacotron2_forward.21} parent=0 // loop_body
    %s17 = ssub.s32 %s12, 1
    %s18 = ssub.s32 %s12, 2
    %s19 = sadd.s32 %s12, 1
    %s20 = ssub.s32 %s12, %s19
    %p21 = scmp.eq.s32.totalorder %s20, 0
    %s23 = sadd.s32 %s22, 1
    %s24 = scalar_select %p21, %s22, %s23
    %p27 = pneg %p21
    %p28 = scmp.eq.s32.totalorder %s12, 7
    %p29 = por %p27, %p28
    %p30 = scmp.ne.s32.totalorder %s22, %s25
    %p31 = scmp.eq.s32.totalorder %s12, 0
    %p32 = por %p30, %p31
    %p33 = scmp.ne.s32.totalorder %s22, %s25
    %p34 = scmp.eq.s32.totalorder %s17, 7
    %p35 = por %p33, %p34
    %p36 = scmp.ne.s32.totalorder %s25, %s26
    %p37 = scmp.eq.s32.totalorder %s17, 0
    %p38 = por %p36, %p37
    %p39 = scmp.ne.s32.totalorder %s25, %s26
    %p40 = scmp.eq.s32.totalorder %s18, 7
    %p41 = por %p39, %p40
    %p43 = scmp.ne.s32.totalorder %s26, %s42
    %p44 = scmp.eq.s32.totalorder %s18, 0
    %p45 = por %p43, %p44
    %s46 = ssub.s32 7, %s12
    %s47 = ssub.s32 7, %s19
    %s48 = ssub.s32 %s46, %s47
    %p49 = scmp.eq.s32.totalorder %s48, 0
    %s51 = sadd.s32 %s50, 1
    %s52 = scalar_select %p49, %s50, %s51
    %p55 = pneg %p49
    %p56 = scmp.eq.s32.totalorder %s12, 7
    %p57 = por %p55, %p56
    %p58 = scmp.ne.s32.totalorder %s50, %s53
    %p59 = scmp.eq.s32.totalorder %s12, 0
    %p60 = por %p58, %p59
    %p61 = scmp.ne.s32.totalorder %s50, %s53
    %p62 = scmp.eq.s32.totalorder %s17, 7
    %p63 = por %p61, %p62
    %p64 = scmp.ne.s32.totalorder %s53, %s54
    %p65 = scmp.eq.s32.totalorder %s17, 0
    %p66 = por %p64, %p65
    %p67 = scmp.ne.s32.totalorder %s53, %s54
    %p68 = scmp.eq.s32.totalorder %s18, 7
    %p69 = por %p67, %p68
    %p71 = scmp.ne.s32.totalorder %s54, %s70
    %p72 = scmp.eq.s32.totalorder %s18, 0
    %p73 = por %p71, %p72
    %s75 = sadd.s32 %s74, 1
    %p78 = scmp.eq.s32.totalorder %s12, 7
    %p79 = scmp.ne.s32.totalorder %s74, %s76
    %p80 = scmp.eq.s32.totalorder %s12, 0
    %p81 = por %p79, %p80
    %p82 = scmp.ne.s32.totalorder %s74, %s76
    %p83 = scmp.eq.s32.totalorder %s17, 7
    %p84 = por %p82, %p83
    %p85 = scmp.ne.s32.totalorder %s76, %s77
    %p86 = scmp.eq.s32.totalorder %s17, 0
    %p87 = por %p85, %p86
    %p88 = scmp.ne.s32.totalorder %s76, %s77
    %p89 = scmp.eq.s32.totalorder %s18, 7
    %p90 = por %p88, %p89
    %p92 = scmp.ne.s32.totalorder %s77, %s91
    %p93 = scmp.eq.s32.totalorder %s18, 0
    %p94 = por %p92, %p93
    %s96 = sadd.s32 %s95, 1
    %p99 = scmp.eq.s32.totalorder %s12, 7
    %p100 = scmp.ne.s32.totalorder %s95, %s97
    %p101 = scmp.eq.s32.totalorder %s12, 0
    %p102 = por %p100, %p101
    %p103 = scmp.ne.s32.totalorder %s95, %s97
    %p104 = scmp.eq.s32.totalorder %s17, 7
    %p105 = por %p103, %p104
    %p106 = scmp.ne.s32.totalorder %s97, %s98
    %p107 = scmp.eq.s32.totalorder %s17, 0
    %p108 = por %p106, %p107
    %p109 = scmp.ne.s32.totalorder %s97, %s98
    %p110 = scmp.eq.s32.totalorder %s18, 7
    %p111 = por %p109, %p110
    %p113 = scmp.ne.s32.totalorder %s98, %s112
    %p114 = scmp.eq.s32.totalorder %s18, 0
    %p115 = por %p113, %p114
    %s116 = ssub.s32 %s12, %s19
    %p117 = scmp.eq.s32.totalorder %s116, 0
    %s119 = sadd.s32 %s118, 1
    %s120 = scalar_select %p117, %s118, %s119
    %p123 = pneg %p117
    %p124 = scmp.eq.s32.totalorder %s12, 7
    %p125 = por %p123, %p124
    %p126 = scmp.ne.s32.totalorder %s118, %s121
    %p127 = scmp.eq.s32.totalorder %s12, 0
    %p128 = por %p126, %p127
    %p129 = scmp.ne.s32.totalorder %s118, %s121
    %p130 = scmp.eq.s32.totalorder %s17, 7
    %p131 = por %p129, %p130
    %p132 = scmp.ne.s32.totalorder %s121, %s122
    %p133 = scmp.eq.s32.totalorder %s17, 0
    %p134 = por %p132, %p133
    %p135 = scmp.ne.s32.totalorder %s121, %s122
    %p136 = scmp.eq.s32.totalorder %s18, 7
    %p137 = por %p135, %p136
    %p139 = scmp.ne.s32.totalorder %s122, %s138
    %p140 = scmp.eq.s32.totalorder %s18, 0
    %p141 = por %p139, %p140
    %s142 = ssub.s32 7, %s12
    %s143 = ssub.s32 7, %s19
    %s144 = ssub.s32 %s142, %s143
    %p145 = scmp.eq.s32.totalorder %s144, 0
    %s147 = sadd.s32 %s146, 1
    %s148 = scalar_select %p145, %s146, %s147
    %p151 = pneg %p145
    %p152 = scmp.eq.s32.totalorder %s12, 7
    %p153 = por %p151, %p152
    %p154 = scmp.ne.s32.totalorder %s146, %s149
    %p155 = scmp.eq.s32.totalorder %s12, 0
    %p156 = por %p154, %p155
    %p157 = scmp.ne.s32.totalorder %s146, %s149
    %p158 = scmp.eq.s32.totalorder %s17, 7
    %p159 = por %p157, %p158
    %p160 = scmp.ne.s32.totalorder %s149, %s150
    %p161 = scmp.eq.s32.totalorder %s17, 0
    %p162 = por %p160, %p161
    %p163 = scmp.ne.s32.totalorder %s149, %s150
    %p164 = scmp.eq.s32.totalorder %s18, 7
    %p165 = por %p163, %p164
    %p167 = scmp.ne.s32.totalorder %s150, %s166
    %p168 = scmp.eq.s32.totalorder %s18, 0
    %p169 = por %p167, %p168
    %p170 = scmp.le.s32.totalorder 1, %s12
    %p171 = scmp.lt.s32.totalorder %s12, 9
    %p172 = pnand %p170, %p171
    %p173 = pneg %p172
    // Predicated region
    $region9: #{tacotron2_forward.21} parent=5 // pred_check
      _
    $region10: #{tacotron2_forward.21} parent=5 // pred_check_branch
      %175 = sbr.rel (%p172) target = $region12
    $region11: #{tacotron2_forward.21} parent=5 // pred_region
      %s176 = ssub.s32 %s12, 1
      // Predicated region
      $region13: #{tacotron2_forward.21} parent=11 // pred_check
        %p177 = pneg %p87
      $region14: #{tacotron2_forward.21} parent=11 // pred_check_branch
        %179 = sbr.rel (%p177) target = $region16
      $region15: #{tacotron2_forward.21} parent=11 // pred_region
        _
      $region16: #{tacotron2_forward.21} parent=11 // pred_fallthru
        _
      // Predicated region
      $region17: #{tacotron2_forward.21} parent=11 // pred_check
        %p180 = pneg %p108
      $region18: #{tacotron2_forward.21} parent=11 // pred_check_branch
        %182 = sbr.rel (%p180) target = $region20
      $region19: #{tacotron2_forward.21} parent=11 // pred_region
        _
      $region20: #{tacotron2_forward.21} parent=11 // pred_fallthru
        _
    $region12: #{tacotron2_forward.21} parent=5 // pred_fallthru
      _
    %p183 = scmp.lt.s32.totalorder %s12, 8
    // Predicated region
    $region21: #{tacotron2_forward.21} parent=5 // pred_check
      %p184 = pneg %p183
    $region22: #{tacotron2_forward.21} parent=5 // pred_check_branch
      %186 = sbr.rel (%p184) target = $region24
    $region23: #{tacotron2_forward.21} parent=5 // pred_region
      // Predicated region
      $region25: #{tacotron2_forward.21} parent=23 // pred_check
        %p187 = pneg %p32
      $region26: #{tacotron2_forward.21} parent=23 // pred_check_branch
        %189 = sbr.rel (%p187) target = $region28
      $region27: #{tacotron2_forward.21} parent=23 // pred_region
        %p190 = scmp.lt.s32.totalorder %s12, 7
        %s191 = scalar_select %p190, %s12, 7
        %s192 = smul.addr %s191, 2
        %s193 = scalar_lea.vmem %s0, %s192
      $region28: #{tacotron2_forward.21} parent=23 // pred_fallthru
        _
      // Predicated region
      $region29: #{tacotron2_forward.21} parent=23 // pred_check
        %p194 = pneg %p60
      $region30: #{tacotron2_forward.21} parent=23 // pred_check_branch
        %196 = sbr.rel (%p194) target = $region32
      $region31: #{tacotron2_forward.21} parent=23 // pred_region
        %s197 = ssub.s32 7, %s12
        %p198 = scmp.lt.s32.totalorder %s197, 7
        %s199 = scalar_select %p198, %s197, 7
        %s200 = smul.addr %s199, 2
        %s201 = scalar_lea.vmem %s1, %s200
        %s202 = ssub.s32 7, %s12
      $region32: #{tacotron2_forward.21} parent=23 // pred_fallthru
        _
    $region24: #{tacotron2_forward.21} parent=5 // pred_fallthru
      _
    %p203 = scmp.le.s32.totalorder 1, %s12
    %p204 = scmp.lt.s32.totalorder %s12, 9
    %p205 = pnand %p203, %p204
    %p206 = pneg %p205
    // Predicated region
    $region33: #{tacotron2_forward.21} parent=5 // pred_check
      _
    $region34: #{tacotron2_forward.21} parent=5 // pred_check_branch
      %208 = sbr.rel (%p205) target = $region36
    $region35: #{tacotron2_forward.21} parent=5 // pred_region
      %s209 = ssub.s32 %s12, 1
      %p210 = scmp.lt.s32.totalorder %s17, 7
      %s211 = scalar_select %p210, %s17, 7
      %s212 = smul.addr %s211, 2
      %s213 = scalar_lea.vmem %s0, %s212
      %p214 = pneg %p38
      %p215 = pneg %p35
      %s216 = ssub.s32 7, %s17
      %p217 = scmp.lt.s32.totalorder %s216, 7
      %s218 = scalar_select %p217, %s216, 7
      %s219 = smul.addr %s218, 2
      %s220 = scalar_lea.vmem %s1, %s219
      %p221 = pneg %p66
      %p222 = pneg %p63
      %p223 = pneg %p87
      %p224 = pneg %p84
      %p225 = pneg %p108
      %p226 = pneg %p105
      %p227 = pneg %p134
      %p228 = pneg %p131
      %p229 = scmp.lt.s32.totalorder %s17, 7
      %s230 = scalar_select %p229, %s17, 7
      %s231 = smul.addr %s230, 2
      %s232 = scalar_lea.vmem %s4, %s231
      %p233 = pneg %p162
      %p234 = pneg %p159
      %s235 = ssub.s32 7, %s17
      %p236 = scmp.lt.s32.totalorder %s235, 7
      %s237 = scalar_select %p236, %s235, 7
      %s238 = smul.addr %s237, 2
      %s239 = scalar_lea.vmem %s5, %s238
      %p240 = scmp.lt.s32.totalorder %s17, 7
      %s241 = scalar_select %p240, %s17, 7
      %s242 = smul.addr %s241, 2
      %s243 = scalar_lea.vmem %s0, %s242
      %s244 = ssub.s32 7, %s17
      %p245 = scmp.lt.s32.totalorder %s244, 7
      %s246 = scalar_select %p245, %s244, 7
      %s247 = smul.addr %s246, 2
      %s248 = scalar_lea.vmem %s1, %s247
      %s249 = ssub.s32 7, %s17
      %p250 = scmp.lt.s32.totalorder %s17, 7
      %s251 = scalar_select %p250, %s17, 7
      %s252 = smul.addr %s251, 2
      %s253 = scalar_lea.vmem %s4, %s252
      %s254 = ssub.s32 7, %s17
      %p255 = scmp.lt.s32.totalorder %s254, 7
      %s256 = scalar_select %p255, %s254, 7
      %s257 = smul.addr %s256, 2
      %s258 = scalar_lea.vmem %s5, %s257
      %s259 = ssub.s32 7, %s17
      %p260 = scmp.eq.s32.totalorder %s17, 0
      // Predicated region
      $region37: #{tacotron2_forward.21} parent=35 // pred_check
        %p261 = pneg %p260
      $region38: #{tacotron2_forward.21} parent=35 // pred_check_branch
        %263 = sbr.rel (%p261) target = $region40
      $region39: #{tacotron2_forward.21} parent=35 // pred_region
        %vm264 = vcmask 58368
        %265 = vst.msk [vmem:[#allocation2] sm:$0x3] %vm264, 0.0
        %266 = vst.msk [vmem:[#allocation3] sm:$0x3] %vm264, 0.0
        %267 = vst.msk [vmem:[#allocation4] sm:$0x3] %vm264, 0.0
        %268 = vst.msk [vmem:[#allocation5] sm:$0x3] %vm264, 0.0
      $region40: #{tacotron2_forward.21} parent=35 // pred_fallthru
        _
      %v269 = vld [vmem:[%s243] sm:$0x3]
      %v270 = vld [vmem:[#allocation2] sm:$0x3]
      %v271 = vld [vmem:[%s2] sm:$0xff]
      %vm272 = vcmask 64512
      %v274 = vsel %vm272, %v270, 0
      %276 = vmatprep.subr.mxu0 0.0
      %277 = vmatpush1.msra.mxu0 %v271
      %278 = vmatprep.subr.mxu0 0.0
      %279 = vmatpush1.msra.mxu0 0.0
      %280 = vmatprep.subr.mxu0 0.0
      %281 = vmatpush1.msra.mxu0 0.0
      %282 = vmatprep.subr.mxu0 0.0
      %283 = vmatpush1.msra.mxu0 0.0
      %284 = vmatprep.subr.mxu0 0.0
      %285 = vmatpush1.msra.mxu0 0.0
      %286 = vmatprep.subr.mxu0 0.0
      %287 = vmatpush1.msra.mxu0 0.0
      %288 = vmatprep.subr.mxu0 0.0
      %289 = vmatpush1.msra.mxu0 0.0
      %290 = vmatprep.subr.mxu0 0.0
      %291 = vmatpush1.msra.mxu0 0.0
      %292 = vmatprep.subr.mxu0 0.0
      %293 = vmatpush1.msra.mxu0 0.0
      %294 = vmatprep.subr.mxu0 0.0
      %295 = vmatpush1.msra.mxu0 0.0
      %296 = vmatprep.subr.mxu0 0.0
      %297 = vmatpush1.msra.mxu0 0.0
      %298 = vmatprep.subr.mxu0 0.0
      %299 = vmatpush1.msra.mxu0 0.0
      %300 = vmatprep.subr.mxu0 0.0
      %301 = vmatpush1.msra.mxu0 0.0
      %302 = vmatprep.subr.mxu0 0.0
      %303 = vmatpush1.msra.mxu0 0.0
      %304 = vmatprep.subr.mxu0 0.0
      %305 = vmatpush1.msra.mxu0 0.0
      %306 = vmatprep.subr.mxu0 0.0
      %307 = vmatpush1.msra.mxu0 0.0
      %308 = vmatprep.subr.mxu0 0.0
      %309 = vmatpush1.msra.mxu0 0.0
      %310 = vmatprep.subr.mxu0 0.0
      %311 = vmatpush1.msra.mxu0 0.0
      %312 = vmatprep.subr.mxu0 0.0
      %313 = vmatpush1.msra.mxu0 0.0
      %314 = vmatprep.subr.mxu0 0.0
      %315 = vmatpush1.msra.mxu0 0.0
      %316 = vmatprep.subr.mxu0 0.0
      %317 = vmatpush1.msra.mxu0 0.0
      %318 = vmatprep.subr.mxu0 0.0
      %319 = vmatpush1.msra.mxu0 0.0
      %320 = vmatprep.subr.mxu0 0.0
      %321 = vmatpush1.msra.mxu0 0.0
      %322 = vmatprep.subr.mxu0 0.0
      %323 = vmatpush1.msra.mxu0 0.0
      %324 = vmatprep.subr.mxu0 0.0
      %325 = vmatpush1.msra.mxu0 0.0
      %326 = vmatprep.subr.mxu0 0.0
      %327 = vmatpush1.msra.mxu0 0.0
      %328 = vmatprep.subr.mxu0 0.0
      %329 = vmatpush1.msra.mxu0 0.0
      %330 = vmatprep.subr.mxu0 0.0
      %331 = vmatpush1.msra.mxu0 0.0
      %332 = vmatprep.subr.mxu0 0.0
      %333 = vmatpush1.msra.mxu0 0.0
      %334 = vmatprep.subr.mxu0 0.0
      %335 = vmatpush1.msra.mxu0 0.0
      %336 = vmatprep.subr.mxu0 0.0
      %337 = vmatpush1.msra.mxu0 0.0
      %338 = vmatprep.subr.mxu0 0.0
      %339 = vmatpush1.msra.mxu0 0.0
      %340 = vmatprep.mubr.f32.mxu0 0.0
      %341 = vmatmul.mubr.f32.gmra.mrb[0].mxu0 %v274
      %v342 = vpop.f32.mrb[0].mxu0
      %v343 = vadd.f32 0.0, %v342
      %v344 = vpop.f32.mrb[0].mxu0
      %345 = vdwg.mxu0
      %v346 = vadd.f32 %v269, %v343
      %v347 = vld [vmem:[#allocation3] sm:$0x3]
      %v348 = vxor.u32 %v346, 2147483648
      %v349 = vmul.f32 %v348, 1.442695
      %v350 = vpow.pop %v349
      %v351 = vadd.f32 %v350, 1.0
      %v352 = vrcp.pop %v351
      %v353 = vmul.f32 1.0, %v352
      %v354 = vtanh.pop %v346
      %356 = vrot.lane.b32.xlu0 %v347, 8
      %v357 = vpop.permute.xlu0 %356
      %v359 = vmul.f32 %v353, %v357
      %361 = vrot.lane.b32.xlu0 %v354, 112
      %v362 = vpop.permute.xlu0 %361
      %v364 = vmul.f32 %v353, %v362
      %366 = vrot.lane.b32.xlu0 %v364, 8
      %v367 = vpop.permute.xlu0 %366
      %v369 = vadd.f32 %v359, %v367
      %v370 = vtanh.pop %v369
      %372 = vrot.lane.b32.xlu0 %v370, 16
      %v373 = vpop.permute.xlu0 %372
      %v375 = vmul.f32 %v353, %v373
      %377 = vrot.lane.b32.xlu0 %v375, 104
      %v378 = vpop.permute.xlu0 %377
      %vm380 = vcmask 58368
      %381 = vst.msk [vmem:[#allocation2] sm:$0x3] %vm380, %v378
      %383 = vrot.lane.b32.xlu0 %v369, 120
      %v384 = vpop.permute.xlu0 %383
      %386 = vst.msk [vmem:[#allocation3] sm:$0x3] %vm380, %v384
      %387 = vst.msk [vmem:[%s253] sm:$0x3] %vm380, %v378
      %v388 = vld [vmem:[%s248] sm:$0x3]
      %v389 = vld [vmem:[#allocation4] sm:$0x3]
      %v390 = vld [vmem:[%s3] sm:$0xff]
      %v392 = vsel %vm272, %v389, 0
      %394 = vmatprep.subr.mxu0 0.0
      %395 = vmatpush1.msra.mxu0 %v390
      %396 = vmatprep.subr.mxu0 0.0
      %397 = vmatpush1.msra.mxu0 0.0
      %398 = vmatprep.subr.mxu0 0.0
      %399 = vmatpush1.msra.mxu0 0.0
      %400 = vmatprep.subr.mxu0 0.0
      %401 = vmatpush1.msra.mxu0 0.0
      %402 = vmatprep.subr.mxu0 0.0
      %403 = vmatpush1.msra.mxu0 0.0
      %404 = vmatprep.subr.mxu0 0.0
      %405 = vmatpush1.msra.mxu0 0.0
      %406 = vmatprep.subr.mxu0 0.0
      %407 = vmatpush1.msra.mxu0 0.0
      %408 = vmatprep.subr.mxu0 0.0
      %409 = vmatpush1.msra.mxu0 0.0
      %410 = vmatprep.subr.mxu0 0.0
      %411 = vmatpush1.msra.mxu0 0.0
      %412 = vmatprep.subr.mxu0 0.0
      %413 = vmatpush1.msra.mxu0 0.0
      %414 = vmatprep.subr.mxu0 0.0
      %415 = vmatpush1.msra.mxu0 0.0
      %416 = vmatprep.subr.mxu0 0.0
      %417 = vmatpush1.msra.mxu0 0.0
      %418 = vmatprep.subr.mxu0 0.0
      %419 = vmatpush1.msra.mxu0 0.0
      %420 = vmatprep.subr.mxu0 0.0
      %421 = vmatpush1.msra.mxu0 0.0
      %422 = vmatprep.subr.mxu0 0.0
      %423 = vmatpush1.msra.mxu0 0.0
      %424 = vmatprep.subr.mxu0 0.0
      %425 = vmatpush1.msra.mxu0 0.0
      %426 = vmatprep.subr.mxu0 0.0
      %427 = vmatpush1.msra.mxu0 0.0
      %428 = vmatprep.subr.mxu0 0.0
      %429 = vmatpush1.msra.mxu0 0.0
      %430 = vmatprep.subr.mxu0 0.0
      %431 = vmatpush1.msra.mxu0 0.0
      %432 = vmatprep.subr.mxu0 0.0
      %433 = vmatpush1.msra.mxu0 0.0
      %434 = vmatprep.subr.mxu0 0.0
      %435 = vmatpush1.msra.mxu0 0.0
      %436 = vmatprep.subr.mxu0 0.0
      %437 = vmatpush1.msra.mxu0 0.0
      %438 = vmatprep.subr.mxu0 0.0
      %439 = vmatpush1.msra.mxu0 0.0
      %440 = vmatprep.subr.mxu0 0.0
      %441 = vmatpush1.msra.mxu0 0.0
      %442 = vmatprep.subr.mxu0 0.0
      %443 = vmatpush1.msra.mxu0 0.0
      %444 = vmatprep.subr.mxu0 0.0
      %445 = vmatpush1.msra.mxu0 0.0
      %446 = vmatprep.subr.mxu0 0.0
      %447 = vmatpush1.msra.mxu0 0.0
      %448 = vmatprep.subr.mxu0 0.0
      %449 = vmatpush1.msra.mxu0 0.0
      %450 = vmatprep.subr.mxu0 0.0
      %451 = vmatpush1.msra.mxu0 0.0
      %452 = vmatprep.subr.mxu0 0.0
      %453 = vmatpush1.msra.mxu0 0.0
      %454 = vmatprep.subr.mxu0 0.0
      %455 = vmatpush1.msra.mxu0 0.0
      %456 = vmatprep.subr.mxu0 0.0
      %457 = vmatpush1.msra.mxu0 0.0
      %458 = vmatprep.mubr.f32.mxu0 0.0
      %459 = vmatmul.mubr.f32.gmra.mrb[0].mxu0 %v392
      %v460 = vpop.f32.mrb[0].mxu0
      %v461 = vadd.f32 0.0, %v460
      %v462 = vpop.f32.mrb[0].mxu0
      %463 = vdwg.mxu0
      %v464 = vadd.f32 %v388, %v461
      %v465 = vld [vmem:[#allocation5] sm:$0x3]
      %v466 = vxor.u32 %v464, 2147483648
      %v467 = vmul.f32 %v466, 1.442695
      %v468 = vpow.pop %v467
      %v469 = vadd.f32 %v468, 1.0
      %v470 = vrcp.pop %v469
      %v471 = vmul.f32 1.0, %v470
      %v472 = vtanh.pop %v464
      %474 = vrot.lane.b32.xlu0 %v465, 8
      %v475 = vpop.permute.xlu0 %474
      %v477 = vmul.f32 %v471, %v475
      %479 = vrot.lane.b32.xlu0 %v472, 112
      %v480 = vpop.permute.xlu0 %479
      %v482 = vmul.f32 %v471, %v480
      %484 = vrot.lane.b32.xlu0 %v482, 8
      %v485 = vpop.permute.xlu0 %484
      %v487 = vadd.f32 %v477, %v485
      %v488 = vtanh.pop %v487
      %490 = vrot.lane.b32.xlu0 %v488, 16
      %v491 = vpop.permute.xlu0 %490
      %v493 = vmul.f32 %v471, %v491
      %495 = vrot.lane.b32.xlu0 %v493, 104
      %v496 = vpop.permute.xlu0 %495
      %498 = vst.msk [vmem:[#allocation4] sm:$0x3] %vm380, %v496
      %500 = vrot.lane.b32.xlu0 %v487, 120
      %v501 = vpop.permute.xlu0 %500
      %503 = vst.msk [vmem:[#allocation5] sm:$0x3] %vm380, %v501
      %504 = vst.msk [vmem:[%s258] sm:$0x3] %vm380, %v496
      %p505 = scmp.lt.s32.totalorder %s17, 7
      %s506 = scalar_select %p505, %s17, 7
      %s507 = smul.addr %s506, 2
      %s508 = scalar_lea.vmem %s4, %s507
      %s509 = ssub.s32 7, %s17
      %p510 = scmp.lt.s32.totalorder %s509, 7
      %s511 = scalar_select %p510, %s509, 7
      %s512 = smul.addr %s511, 2
      %s513 = scalar_lea.vmem %s5, %s512
      // Predicated region
      $region41: #{tacotron2_forward.21} parent=35 // pred_check
        %p514 = pneg %p131
      $region42: #{tacotron2_forward.21} parent=35 // pred_check_branch
        %516 = sbr.rel (%p514) target = $region44
      $region43: #{tacotron2_forward.21} parent=35 // pred_region
        _
      $region44: #{tacotron2_forward.21} parent=35 // pred_fallthru
        _
      // Predicated region
      $region45: #{tacotron2_forward.21} parent=35 // pred_check
        %p517 = pneg %p159
      $region46: #{tacotron2_forward.21} parent=35 // pred_check_branch
        %519 = sbr.rel (%p517) target = $region48
      $region47: #{tacotron2_forward.21} parent=35 // pred_region
        %s520 = ssub.s32 7, %s17
      $region48: #{tacotron2_forward.21} parent=35 // pred_fallthru
        _
    $region36: #{tacotron2_forward.21} parent=5 // pred_fallthru
      _
    %p521 = scmp.le.s32.totalorder 2, %s12
    // Predicated region
    $region49: #{tacotron2_forward.21} parent=5 // pred_check
      %p522 = pneg %p521
    $region50: #{tacotron2_forward.21} parent=5 // pred_check_branch
      %524 = sbr.rel (%p522) target = $region52
    $region51: #{tacotron2_forward.21} parent=5 // pred_region
      %s525 = ssub.s32 %s12, 2
      // Predicated region
      $region53: #{tacotron2_forward.21} parent=51 // pred_check
        %p526 = pneg %p137
      $region54: #{tacotron2_forward.21} parent=51 // pred_check_branch
        %528 = sbr.rel (%p526) target = $region56
      $region55: #{tacotron2_forward.21} parent=51 // pred_region
        %p529 = scmp.lt.s32.totalorder %s18, 7
        %s530 = scalar_select %p529, %s18, 7
        %s531 = smul.addr %s530, 2
        %s532 = scalar_lea.vmem %s4, %s531
      $region56: #{tacotron2_forward.21} parent=51 // pred_fallthru
        _
      // Predicated region
      $region57: #{tacotron2_forward.21} parent=51 // pred_check
        %p533 = pneg %p165
      $region58: #{tacotron2_forward.21} parent=51 // pred_check_branch
        %535 = sbr.rel (%p533) target = $region60
      $region59: #{tacotron2_forward.21} parent=51 // pred_region
        %s536 = ssub.s32 7, %s18
        %p537 = scmp.lt.s32.totalorder %s536, 7
        %s538 = scalar_select %p537, %s536, 7
        %s539 = smul.addr %s538, 2
        %s540 = scalar_lea.vmem %s5, %s539
      $region60: #{tacotron2_forward.21} parent=51 // pred_fallthru
        _
    $region52: #{tacotron2_forward.21} parent=5 // pred_fallthru
      _
  $region6: #{tacotron2_forward.21} parent=0 // loop_footer
    %s16 = sadd.s32 1, %s12
  $region7: #{tacotron2_forward.21} parent=0 // loop_footer_branch
    %11 = sbr.rel target = $region3
  $region8: #{tacotron2_forward.21} parent=0 // loop_exit
    _

// kernel: tacotron2_forward.25
$region0: #{tacotron2_forward.25}
  #allocation0 [shape = 'u32[]', space=smem, size = 0x4, offset = 0x4, fixed_abs, tag = 'smem constant byte address 0x4 - core index']
  #allocation1 [shape = 'u32[144,128]{1,0:T(1,128)}', space=vmem, size = 0x12000, scoped, tag = 'internal scratch']
  %s0 = inlined_call_operand.vmem [shape: f32[16,80], index: 0, kind: input, shape index: {}]
  %s1 = inlined_call_operand.vmem [shape: f32[80,16], index: 1, kind: input, shape index: {}]
  %s2 = inlined_call_operand.vmem [shape: f32[1,16], index: 2, kind: input, shape index: {}]
  %s3 = inlined_call_operand.vmem [shape: f32[1,16], index: 3, kind: input, shape index: {}]
  %s4 = inlined_call_operand.vmem [shape: f32[1,16], index: 4, kind: input, shape index: {}]
  %s5 = inlined_call_operand.vmem [shape: f32[16,16], index: 5, kind: output, shape index: {}]
  %s6 = sld [smem:[#allocation0]]
  $region30: #{tacotron2_forward.25} parent=0
    _
  %s8 = ssub.s32 1, %s6
  %s9 = scalar_select 0, %s8, %s6
  // Predicated region
  $region2: #{tacotron2_forward.25} parent=0 // pred_check
    _
  $region3: #{tacotron2_forward.25} parent=0 // pred_check_branch
    %11 = sbr.rel (0) target = $region5
  $region4: #{tacotron2_forward.25} parent=0 // pred_region
    _
  $region5: #{tacotron2_forward.25} parent=0 // pred_fallthru
    _
  // Predicated region
  $region6: #{tacotron2_forward.25} parent=0 // pred_check
    _
  $region7: #{tacotron2_forward.25} parent=0 // pred_check_branch
    %13 = sbr.rel (0) target = $region9
  $region8: #{tacotron2_forward.25} parent=0 // pred_region
    _
  $region9: #{tacotron2_forward.25} parent=0 // pred_fallthru
    _
  // Predicated region
  $region10: #{tacotron2_forward.25} parent=0 // pred_check
    _
  $region11: #{tacotron2_forward.25} parent=0 // pred_check_branch
    %15 = sbr.rel (0) target = $region13
  $region12: #{tacotron2_forward.25} parent=0 // pred_region
    _
  $region13: #{tacotron2_forward.25} parent=0 // pred_fallthru
    _
  // Predicated region
  $region14: #{tacotron2_forward.25} parent=0 // pred_check
    _
  $region15: #{tacotron2_forward.25} parent=0 // pred_check_branch
    %17 = sbr.rel (0) target = $region17
  $region16: #{tacotron2_forward.25} parent=0 // pred_region
    _
  $region17: #{tacotron2_forward.25} parent=0 // pred_fallthru
    _
  // Predicated region
  $region18: #{tacotron2_forward.25} parent=0 // pred_check
    _
  $region19: #{tacotron2_forward.25} parent=0 // pred_check_branch
    %19 = sbr.rel (0) target = $region21
  $region20: #{tacotron2_forward.25} parent=0 // pred_region
    _
  $region21: #{tacotron2_forward.25} parent=0 // pred_fallthru
    _
  %v20 = vld [vmem:[%s0] sm:$0xff]
  %v21 = vld [vmem:[%s0 + $0x8] sm:$0xff]
  %v22 = vld [vmem:[%s1] sm:$0xff]
  %v23 = vld [vmem:[%s1 + $0x8] sm:$0xff]
  %v24 = vld [vmem:[%s1 + $0x10] sm:$0xff]
  %v25 = vld [vmem:[%s1 + $0x18] sm:$0xff]
  %v26 = vld [vmem:[%s1 + $0x20] sm:$0xff]
  %v27 = vld [vmem:[%s1 + $0x28] sm:$0xff]
  %v28 = vld [vmem:[%s1 + $0x30] sm:$0xff]
  %v29 = vld [vmem:[%s1 + $0x38] sm:$0xff]
  %v30 = vld [vmem:[%s1 + $0x40] sm:$0xff]
  %v31 = vld [vmem:[%s1 + $0x48] sm:$0xff]
  %v32 = vld [vmem:[%s2] sm:$0x1]
  %v34 = vlaneseq
  %v35 = vshrl.u32 %v34, 7
  %v36 = vsub.s32 0, %v35
  %v37 = vrot.slane %v32, %v36
  %vm39 = vcmask 654336
  %v41 = vsel %vm39, %v20, 0
  %v44 = vsel %vm39, %v21, 0
  %46 = vmatprep.subr.mxu0 0.0
  %47 = vmatpush1.msra.mxu0 %v22
  %48 = vmatprep.subr.mxu0 0.0
  %49 = vmatpush1.msra.mxu0 %v23
  %50 = vmatprep.subr.mxu0 0.0
  %51 = vmatpush1.msra.mxu0 %v24
  %52 = vmatprep.subr.mxu0 0.0
  %53 = vmatpush1.msra.mxu0 %v25
  %54 = vmatprep.subr.mxu0 0.0
  %55 = vmatpush1.msra.mxu0 %v26
  %56 = vmatprep.subr.mxu0 0.0
  %57 = vmatpush1.msra.mxu0 %v27
  %58 = vmatprep.subr.mxu0 0.0
  %59 = vmatpush1.msra.mxu0 %v28
  %60 = vmatprep.subr.mxu0 0.0
  %61 = vmatpush1.msra.mxu0 %v29
  %62 = vmatprep.subr.mxu0 0.0
  %63 = vmatpush1.msra.mxu0 %v30
  %64 = vmatprep.subr.mxu0 0.0
  %65 = vmatpush1.msra.mxu0 %v31
  %66 = vmatprep.subr.mxu0 0.0
  %67 = vmatpush1.msra.mxu0 0.0
  %68 = vmatprep.subr.mxu0 0.0
  %69 = vmatpush1.msra.mxu0 0.0
  %70 = vmatprep.subr.mxu0 0.0
  %71 = vmatpush1.msra.mxu0 0.0
  %72 = vmatprep.subr.mxu0 0.0
  %73 = vmatpush1.msra.mxu0 0.0
  %74 = vmatprep.subr.mxu0 0.0
  %75 = vmatpush1.msra.mxu0 0.0
  %76 = vmatprep.subr.mxu0 0.0
  %77 = vmatpush1.msra.mxu0 0.0
  %78 = vmatprep.subr.mxu0 0.0
  %79 = vmatpush1.msra.mxu0 0.0
  %80 = vmatprep.subr.mxu0 0.0
  %81 = vmatpush1.msra.mxu0 0.0
  %82 = vmatprep.subr.mxu0 0.0
  %83 = vmatpush1.msra.mxu0 0.0
  %84 = vmatprep.subr.mxu0 0.0
  %85 = vmatpush1.msra.mxu0 0.0
  %86 = vmatprep.subr.mxu0 0.0
  %87 = vmatpush1.msra.mxu0 0.0
  %88 = vmatprep.subr.mxu0 0.0
  %89 = vmatpush1.msra.mxu0 0.0
  %90 = vmatprep.subr.mxu0 0.0
  %91 = vmatpush1.msra.mxu0 0.0
  %92 = vmatprep.subr.mxu0 0.0
  %93 = vmatpush1.msra.mxu0 0.0
  %94 = vmatprep.subr.mxu0 0.0
  %95 = vmatpush1.msra.mxu0 0.0
  %96 = vmatprep.subr.mxu0 0.0
  %97 = vmatpush1.msra.mxu0 0.0
  %98 = vmatprep.subr.mxu0 0.0
  %99 = vmatpush1.msra.mxu0 0.0
  %100 = vmatprep.subr.mxu0 0.0
  %101 = vmatpush1.msra.mxu0 0.0
  %102 = vmatprep.subr.mxu0 0.0
  %103 = vmatpush1.msra.mxu0 0.0
  %104 = vmatprep.subr.mxu0 0.0
  %105 = vmatpush1.msra.mxu0 0.0
  %106 = vmatprep.subr.mxu0 0.0
  %107 = vmatpush1.msra.mxu0 0.0
  %108 = vmatprep.subr.mxu0 0.0
  %109 = vmatpush1.msra.mxu0 0.0
  %110 = vmatprep.mubr.f32.mxu0 0.0
  %111 = vmatmul.mubr.f32.gmra.mrb[0].mxu0 %v41
  %v112 = vpop.f32.mrb[0].mxu0
  %v113 = vadd.f32 %v37, %v112
  %v114 = vpop.f32.mrb[0].mxu0
  %115 = vmatprep.mubr.f32.mxu0 0.0
  %116 = vmatmul.mubr.f32.gmra.mrb[0].mxu0 %v44
  %v117 = vpop.f32.mrb[0].mxu0
  %v118 = vadd.f32 %v37, %v117
  %v119 = vpop.f32.mrb[0].mxu0
  %120 = vdwg.mxu0
  %vm121 = vcmask 130048
  %v122 = vsel %vm121, %v113, 0.0
  %v123 = vsel %vm121, %v118, 0.0
  %v124 = vadd.f32 %v122, %v123
  %v125 = vrot.slane %v124, 4
  %v126 = vadd.f32 %v124, %v125
  %v127 = vrot.slane %v126, 2
  %v128 = vadd.f32 %v126, %v127
  %v129 = vrot.slane %v128, 1
  %v130 = vadd.f32 %v128, %v129
  %v131 = vmul.f32 %v130, 0.0625
  %v132 = vsub.f32 %v113, %v131
  %v133 = vsub.f32 %v118, %v131
  %v134 = vmul.f32 %v132, %v132
  %v135 = vmul.f32 %v133, %v133
  %v136 = vsel %vm121, %v134, 0.0
  %v137 = vsel %vm121, %v135, 0.0
  %v138 = vadd.f32 %v136, %v137
  %v139 = vrot.slane %v138, 4
  %v140 = vadd.f32 %v138, %v139
  %v141 = vrot.slane %v140, 2
  %v142 = vadd.f32 %v140, %v141
  %v143 = vrot.slane %v142, 1
  %v144 = vadd.f32 %v142, %v143
  %v145 = vmul.f32 %v144, 0.0625
  %v146 = vadd.f32 %v145, 1e-05
  %v147 = vrsqrt.pop %v146
  %v148 = vmul.f32 %v132, %v147
  %v149 = vmul.f32 %v133, %v147
  %v150 = vld [vmem:[%s3] sm:$0x1]
  %v152 = vlaneseq
  %v153 = vshrl.u32 %v152, 7
  %v154 = vsub.s32 0, %v153
  %v155 = vrot.slane %v150, %v154
  %v157 = vmul.f32 %v148, %v155
  %v158 = vmul.f32 %v149, %v155
  %v159 = vld [vmem:[%s4] sm:$0x1]
  %v161 = vlaneseq
  %v162 = vshrl.u32 %v161, 7
  %v163 = vsub.s32 0, %v162
  %v164 = vrot.slane %v159, %v163
  %v166 = vadd.f32 %v157, %v164
  %v167 = vadd.f32 %v158, %v164
  %v168 = vtanh.pop %v166
  %v169 = vtanh.pop %v167
  %170 = vst.msk [vmem:[%s5] sm:$0xff] %vm121, %v168
  %171 = vst.msk [vmem:[%s5 + $0x8] sm:$0xff] %vm121, %v169
  // Predicated region
  $region22: #{tacotron2_forward.25} parent=0 // pred_check
    _
  $region23: #{tacotron2_forward.25} parent=0 // pred_check_branch
    %173 = sbr.rel (0) target = $region25
  $region24: #{tacotron2_forward.25} parent=0 // pred_region
    _
  $region25: #{tacotron2_forward.25} parent=0 // pred_fallthru
    _
  // Predicated region
  $region26: #{tacotron2_forward.25} parent=0 // pred_check
    _
  $region27: #{tacotron2_forward.25} parent=0 // pred_check_branch
    %175 = sbr.rel (0) target = $region29
  $region28: #{tacotron2_forward.25} parent=0 // pred_region
    _
  $region29: #{tacotron2_forward.25} parent=0 // pred_fallthru
    _

// kernel: tacotron2_forward.24
$region0: #{tacotron2_forward.24}
  #allocation0 [shape = 'u32[]', space=smem, size = 0x4, offset = 0x4, fixed_abs, tag = 'smem constant byte address 0x4 - core index']
  #allocation1 [shape = 'u32[144,128]{1,0:T(1,128)}', space=vmem, size = 0x12000, scoped, tag = 'internal scratch']
  %s0 = inlined_call_operand.vmem [shape: f32[16,8], index: 0, kind: input, shape index: {}]
  %s1 = inlined_call_operand.vmem [shape: f32[8,16], index: 1, kind: input, shape index: {}]
  %s2 = inlined_call_operand.vmem [shape: f32[1,16], index: 2, kind: input, shape index: {}]
  %s3 = inlined_call_operand.vmem [shape: f32[1,16], index: 3, kind: input, shape index: {}]
  %s4 = inlined_call_operand.vmem [shape: f32[1,16], index: 4, kind: input, shape index: {}]
  %s5 = inlined_call_operand.vmem [shape: f32[16,16], index: 5, kind: output, shape index: {}]
  %s6 = sld [smem:[#allocation0]]
  $region30: #{tacotron2_forward.24} parent=0
    _
  %s8 = ssub.s32 1, %s6
  %s9 = scalar_select 0, %s8, %s6
  // Predicated region
  $region2: #{tacotron2_forward.24} parent=0 // pred_check
    _
  $region3: #{tacotron2_forward.24} parent=0 // pred_check_branch
    %11 = sbr.rel (0) target = $region5
  $region4: #{tacotron2_forward.24} parent=0 // pred_region
    _
  $region5: #{tacotron2_forward.24} parent=0 // pred_fallthru
    _
  // Predicated region
  $region6: #{tacotron2_forward.24} parent=0 // pred_check
    _
  $region7: #{tacotron2_forward.24} parent=0 // pred_check_branch
    %13 = sbr.rel (0) target = $region9
  $region8: #{tacotron2_forward.24} parent=0 // pred_region
    _
  $region9: #{tacotron2_forward.24} parent=0 // pred_fallthru
    _
  // Predicated region
  $region10: #{tacotron2_forward.24} parent=0 // pred_check
    _
  $region11: #{tacotron2_forward.24} parent=0 // pred_check_branch
    %15 = sbr.rel (0) target = $region13
  $region12: #{tacotron2_forward.24} parent=0 // pred_region
    _
  $region13: #{tacotron2_forward.24} parent=0 // pred_fallthru
    _
  // Predicated region
  $region14: #{tacotron2_forward.24} parent=0 // pred_check
    _
  $region15: #{tacotron2_forward.24} parent=0 // pred_check_branch
    %17 = sbr.rel (0) target = $region17
  $region16: #{tacotron2_forward.24} parent=0 // pred_region
    _
  $region17: #{tacotron2_forward.24} parent=0 // pred_fallthru
    _
  // Predicated region
  $region18: #{tacotron2_forward.24} parent=0 // pred_check
    _
  $region19: #{tacotron2_forward.24} parent=0 // pred_check_branch
    %19 = sbr.rel (0) target = $region21
  $region20: #{tacotron2_forward.24} parent=0 // pred_region
    _
  $region21: #{tacotron2_forward.24} parent=0 // pred_fallthru
    _
  %v20 = vld [vmem:[%s0] sm:$0xff]
  %v21 = vld [vmem:[%s0 + $0x8] sm:$0xff]
  %v22 = vld [vmem:[%s1] sm:$0xff]
  %v23 = vld [vmem:[%s2] sm:$0x1]
  %v25 = vlaneseq
  %v26 = vshrl.u32 %v25, 7
  %v27 = vsub.s32 0, %v26
  %v28 = vrot.slane %v23, %v27
  %vm30 = vcmask 64512
  %v32 = vsel %vm30, %v20, 0
  %v35 = vsel %vm30, %v21, 0
  %37 = vmatprep.subr.mxu0 0.0
  %38 = vmatpush1.msra.mxu0 %v22
  %39 = vmatprep.subr.mxu0 0.0
  %40 = vmatpush1.msra.mxu0 0.0
  %41 = vmatprep.subr.mxu0 0.0
  %42 = vmatpush1.msra.mxu0 0.0
  %43 = vmatprep.subr.mxu0 0.0
  %44 = vmatpush1.msra.mxu0 0.0
  %45 = vmatprep.subr.mxu0 0.0
  %46 = vmatpush1.msra.mxu0 0.0
  %47 = vmatprep.subr.mxu0 0.0
  %48 = vmatpush1.msra.mxu0 0.0
  %49 = vmatprep.subr.mxu0 0.0
  %50 = vmatpush1.msra.mxu0 0.0
  %51 = vmatprep.subr.mxu0 0.0
  %52 = vmatpush1.msra.mxu0 0.0
  %53 = vmatprep.subr.mxu0 0.0
  %54 = vmatpush1.msra.mxu0 0.0
  %55 = vmatprep.subr.mxu0 0.0
  %56 = vmatpush1.msra.mxu0 0.0
  %57 = vmatprep.subr.mxu0 0.0
  %58 = vmatpush1.msra.mxu0 0.0
  %59 = vmatprep.subr.mxu0 0.0
  %60 = vmatpush1.msra.mxu0 0.0
  %61 = vmatprep.subr.mxu0 0.0
  %62 = vmatpush1.msra.mxu0 0.0
  %63 = vmatprep.subr.mxu0 0.0
  %64 = vmatpush1.msra.mxu0 0.0
  %65 = vmatprep.subr.mxu0 0.0
  %66 = vmatpush1.msra.mxu0 0.0
  %67 = vmatprep.subr.mxu0 0.0
  %68 = vmatpush1.msra.mxu0 0.0
  %69 = vmatprep.subr.mxu0 0.0
  %70 = vmatpush1.msra.mxu0 0.0
  %71 = vmatprep.subr.mxu0 0.0
  %72 = vmatpush1.msra.mxu0 0.0
  %73 = vmatprep.subr.mxu0 0.0
  %74 = vmatpush1.msra.mxu0 0.0
  %75 = vmatprep.subr.mxu0 0.0
  %76 = vmatpush1.msra.mxu0 0.0
  %77 = vmatprep.subr.mxu0 0.0
  %78 = vmatpush1.msra.mxu0 0.0
  %79 = vmatprep.subr.mxu0 0.0
  %80 = vmatpush1.msra.mxu0 0.0
  %81 = vmatprep.subr.mxu0 0.0
  %82 = vmatpush1.msra.mxu0 0.0
  %83 = vmatprep.subr.mxu0 0.0
  %84 = vmatpush1.msra.mxu0 0.0
  %85 = vmatprep.subr.mxu0 0.0
  %86 = vmatpush1.msra.mxu0 0.0
  %87 = vmatprep.subr.mxu0 0.0
  %88 = vmatpush1.msra.mxu0 0.0
  %89 = vmatprep.subr.mxu0 0.0
  %90 = vmatpush1.msra.mxu0 0.0
  %91 = vmatprep.subr.mxu0 0.0
  %92 = vmatpush1.msra.mxu0 0.0
  %93 = vmatprep.subr.mxu0 0.0
  %94 = vmatpush1.msra.mxu0 0.0
  %95 = vmatprep.subr.mxu0 0.0
  %96 = vmatpush1.msra.mxu0 0.0
  %97 = vmatprep.subr.mxu0 0.0
  %98 = vmatpush1.msra.mxu0 0.0
  %99 = vmatprep.subr.mxu0 0.0
  %100 = vmatpush1.msra.mxu0 0.0
  %101 = vmatprep.mubr.f32.mxu0 0.0
  %102 = vmatmul.mubr.f32.gmra.mrb[0].mxu0 %v32
  %v103 = vpop.f32.mrb[0].mxu0
  %v104 = vadd.f32 %v28, %v103
  %v105 = vpop.f32.mrb[0].mxu0
  %106 = vmatprep.mubr.f32.mxu0 0.0
  %107 = vmatmul.mubr.f32.gmra.mrb[0].mxu0 %v35
  %v108 = vpop.f32.mrb[0].mxu0
  %v109 = vadd.f32 %v28, %v108
  %v110 = vpop.f32.mrb[0].mxu0
  %111 = vdwg.mxu0
  %vm112 = vcmask 130048
  %v113 = vsel %vm112, %v104, 0.0
  %v114 = vsel %vm112, %v109, 0.0
  %v115 = vadd.f32 %v113, %v114
  %v116 = vrot.slane %v115, 4
  %v117 = vadd.f32 %v115, %v116
  %v118 = vrot.slane %v117, 2
  %v119 = vadd.f32 %v117, %v118
  %v120 = vrot.slane %v119, 1
  %v121 = vadd.f32 %v119, %v120
  %v122 = vmul.f32 %v121, 0.0625
  %v123 = vsub.f32 %v104, %v122
  %v124 = vsub.f32 %v109, %v122
  %v125 = vmul.f32 %v123, %v123
  %v126 = vmul.f32 %v124, %v124
  %v127 = vsel %vm112, %v125, 0.0
  %v128 = vsel %vm112, %v126, 0.0
  %v129 = vadd.f32 %v127, %v128
  %v130 = vrot.slane %v129, 4
  %v131 = vadd.f32 %v129, %v130
  %v132 = vrot.slane %v131, 2
  %v133 = vadd.f32 %v131, %v132
  %v134 = vrot.slane %v133, 1
  %v135 = vadd.f32 %v133, %v134
  %v136 = vmul.f32 %v135, 0.0625
  %v137 = vadd.f32 %v136, 1e-05
  %v138 = vrsqrt.pop %v137
  %v139 = vmul.f32 %v123, %v138
  %v140 = vmul.f32 %v124, %v138
  %v141 = vld [vmem:[%s3] sm:$0x1]
  %v143 = vlaneseq
  %v144 = vshrl.u32 %v143, 7
  %v145 = vsub.s32 0, %v144
  %v146 = vrot.slane %v141, %v145
  %v148 = vmul.f32 %v139, %v146
  %v149 = vmul.f32 %v140, %v146
  %v150 = vld [vmem:[%s4] sm:$0x1]
  %v152 = vlaneseq
  %v153 = vshrl.u32 %v152, 7
  %v154 = vsub.s32 0, %v153
  %v155 = vrot.slane %v150, %v154
  %v157 = vadd.f32 %v148, %v155
  %v158 = vadd.f32 %v149, %v155
  %v159 = vtanh.pop %v157
  %v160 = vtanh.pop %v158
  %161 = vst.msk [vmem:[%s5] sm:$0xff] %vm112, %v159
  %162 = vst.msk [vmem:[%s5 + $0x8] sm:$0xff] %vm112, %v160
  // Predicated region
  $region22: #{tacotron2_forward.24} parent=0 // pred_check
    _
  $region23: #{tacotron2_forward.24} parent=0 // pred_check_branch
    %164 = sbr.rel (0) target = $region25
  $region24: #{tacotron2_forward.24} parent=0 // pred_region
    _
  $region25: #{tacotron2_forward.24} parent=0 // pred_fallthru
    _
  // Predicated region
  $region26: #{tacotron2_forward.24} parent=0 // pred_check
    _
  $region27: #{tacotron2_forward.24} parent=0 // pred_check_branch
    %166 = sbr.rel (0) target = $region29
  $region28: #{tacotron2_forward.24} parent=0 // pred_region
    _
  $region29: #{tacotron2_forward.24} parent=0 // pred_fallthru
    _

// kernel: tacotron2_forward.23
$region0: #{tacotron2_forward.23}
  #allocation0 [shape = 'u32[]', space=smem, size = 0x4, offset = 0x4, fixed_abs, tag = 'smem constant byte address 0x4 - core index']
  #allocation1 [shape = 'u32[144,128]{1,0:T(1,128)}', space=vmem, size = 0x12000, scoped, tag = 'internal scratch']
  #allocation2 [shape = 'f32[2,16]{1,0:T(2,128)}', space=vmem, size = 0x400, scoped, tag = 'scratch operand']
  #allocation3 [shape = 'f32[2,16]{1,0:T(2,128)}', space=vmem, size = 0x400, scoped, tag = 'scratch operand']
  #allocation4 [shape = 'f32[2,16]{1,0:T(2,128)}', space=vmem, size = 0x400, scoped, tag = 'scratch operand']
  #allocation5 [shape = 'f32[2,16]{1,0:T(2,128)}', space=vmem, size = 0x400, scoped, tag = 'scratch operand']
  #allocation6 [shape = 'f32[12,2]{1,0:T(8,128)}', space=vmem, size = 0x2000, scoped, tag = 'scratch operand']
  #allocation7 [shape = 'f32[2,16]{1,0:T(2,128)}', space=vmem, size = 0x400, scoped, tag = 'scratch operand']
  #allocation8 [shape = 'f32[8,2]{1,0:T(8,128)}', space=vmem, size = 0x1000, scoped, tag = 'scratch operand']
  %s0 = inlined_call_operand.vmem [shape: f32[8,2,64], index: 0, kind: input, shape index: {}]
  %s1 = inlined_call_operand.vmem [shape: f32[2,8,16], index: 1, kind: input, shape index: {}]
  %s2 = inlined_call_operand.vmem [shape: f32[2,8,16], index: 2, kind: input, shape index: {}]
  %s3 = inlined_call_operand.vmem [shape: f32[8,2], index: 3, kind: input, shape index: {}]
  %s4 = inlined_call_operand.vmem [shape: f32[16,64], index: 4, kind: input, shape index: {}]
  %s5 = inlined_call_operand.vmem [shape: f32[16,64], index: 5, kind: input, shape index: {}]
  %s6 = inlined_call_operand.vmem [shape: f32[16,64], index: 6, kind: input, shape index: {}]
  %s7 = inlined_call_operand.vmem [shape: f32[16,64], index: 7, kind: input, shape index: {}]
  %s8 = inlined_call_operand.vmem [shape: f32[1,64], index: 8, kind: input, shape index: {}]
  %s9 = inlined_call_operand.vmem [shape: f32[16,16], index: 9, kind: input, shape index: {}]
  %s10 = inlined_call_operand.vmem [shape: f32[1,16], index: 10, kind: input, shape index: {}]
  %s11 = inlined_call_operand.vmem [shape: f32[5,8], index: 11, kind: input, shape index: {}]
  %s12 = inlined_call_operand.vmem [shape: f32[8,16], index: 12, kind: input, shape index: {}]
  %s13 = inlined_call_operand.vmem [shape: f32[1,16], index: 13, kind: input, shape index: {}]
  %s14 = inlined_call_operand.vmem [shape: f32[32,9], index: 14, kind: input, shape index: {}]
  %s15 = inlined_call_operand.vmem [shape: f32[1,9], index: 15, kind: input, shape index: {}]
  %s16 = inlined_call_operand.vmem [shape: f32[8,2,9], index: 16, kind: output, shape index: {0}]
  %s17 = inlined_call_operand.vmem [shape: f32[8,8,2], index: 17, kind: output, shape index: {1}]
  %18 = xla_tuple %s16, %s17
  %s19 = sld [smem:[#allocation0]]
  $region109: #{tacotron2_forward.23} parent=0
    _
  %s21 = ssub.s32 1, %s19
  %s22 = scalar_select 0, %s21, %s19
  loop: start=0, step=1, limit=10
  $region2: #{tacotron2_forward.23} parent=0 // loop_pre_header
    _
  $region3: #{tacotron2_forward.23} parent=0 // loop_header
    %s24 = sphi 0, %s28
    %p25 = scmp.ge.s32.totalorder %s24, 10
    %s34 = sphi 0, %s36
    %s37 = sphi 0, %s34
    %s38 = sphi 0, %s37
    %s54 = sphi 0, %s38
    %s58 = sphi 0, %s58
    %s60 = sphi 0, %s58
    %s61 = sphi 0, %s60
    %s75 = sphi 0, %s61
    %s79 = sphi 0, %s79
    %s81 = sphi 0, %s79
    %s82 = sphi 0, %s81
    %s96 = sphi 0, %s82
    %s100 = sphi 0, %s100
    %s102 = sphi 0, %s100
    %s103 = sphi 0, %s102
    %s117 = sphi 0, %s103
    %s121 = sphi 0, %s121
    %s123 = sphi 0, %s121
    %s124 = sphi 0, %s123
    %s138 = sphi 0, %s124
    %s142 = sphi 0, %s142
    %s144 = sphi 0, %s142
    %s145 = sphi 0, %s144
    %s159 = sphi 0, %s145
    %s163 = sphi 0, %s163
    %s165 = sphi 0, %s163
    %s166 = sphi 0, %s165
    %s180 = sphi 0, %s166
    %s184 = sphi 0, %s184
    %s186 = sphi 0, %s184
    %s187 = sphi 0, %s186
    %s201 = sphi 0, %s187
    %s205 = sphi 0, %s205
    %s207 = sphi 0, %s205
    %s208 = sphi 0, %s207
    %s222 = sphi 0, %s208
    %s226 = sphi 0, %s226
    %s228 = sphi 0, %s226
    %s229 = sphi 0, %s228
    %s243 = sphi 0, %s229
    %s247 = sphi 0, %s247
    %s249 = sphi 0, %s247
    %s250 = sphi 0, %s249
    %s264 = sphi 0, %s250
    %s268 = sphi 0, %s268
    %s270 = sphi 0, %s268
    %s271 = sphi 0, %s270
    %s285 = sphi 0, %s271
    %s289 = sphi 0, %s289
    %s291 = sphi 0, %s289
    %s292 = sphi 0, %s291
    %s306 = sphi 0, %s292
    %s310 = sphi 0, %s310
    %s312 = sphi 0, %s310
    %s313 = sphi 0, %s312
    %s327 = sphi 0, %s313
    %s331 = sphi 0, %s331
    %s333 = sphi 0, %s331
    %s334 = sphi 0, %s333
    %s348 = sphi 0, %s334
    %s352 = sphi 0, %s352
    %s354 = sphi 0, %s352
    %s355 = sphi 0, %s354
    %s369 = sphi 0, %s355
    %s375 = sphi 0, %s377
    %s378 = sphi 0, %s375
    %s379 = sphi 0, %s378
    %s395 = sphi 0, %s379
    %s401 = sphi 0, %s403
    %s404 = sphi 0, %s401
    %s405 = sphi 0, %s404
    %s421 = sphi 0, %s405
  $region4: #{tacotron2_forward.23} parent=0 // loop_header_branch
    %27 = sbr.rel (%p25) target = $region8
  $region5: #{tacotron2_forward.23} parent=0 // loop_body
    %s29 = ssub.s32 %s24, 1
    %s30 = ssub.s32 %s24, 2
    %s31 = sadd.s32 %s24, 1
    %s32 = ssub.s32 %s24, %s31
    %p33 = scmp.eq.s32.totalorder %s32, 0
    %s35 = sadd.s32 %s34, 1
    %s36 = scalar_select %p33, %s34, %s35
    %p39 = pneg %p33
    %p40 = scmp.eq.s32.totalorder %s24, 7
    %p41 = por %p39, %p40
    %p42 = scmp.ne.s32.totalorder %s34, %s37
    %p43 = scmp.eq.s32.totalorder %s24, 0
    %p44 = por %p42, %p43
    %p45 = scmp.ne.s32.totalorder %s34, %s37
    %p46 = scmp.eq.s32.totalorder %s29, 7
    %p47 = por %p45, %p46
    %p48 = scmp.ne.s32.totalorder %s37, %s38
    %p49 = scmp.eq.s32.totalorder %s29, 0
    %p50 = por %p48, %p49
    %p51 = scmp.ne.s32.totalorder %s37, %s38
    %p52 = scmp.eq.s32.totalorder %s30, 7
    %p53 = por %p51, %p52
    %p55 = scmp.ne.s32.totalorder %s38, %s54
    %p56 = scmp.eq.s32.totalorder %s30, 0
    %p57 = por %p55, %p56
    %s59 = sadd.s32 %s58, 1
    %p62 = scmp.eq.s32.totalorder %s24, 7
    %p63 = scmp.ne.s32.totalorder %s58, %s60
    %p64 = scmp.eq.s32.totalorder %s24, 0
    %p65 = por %p63, %p64
    %p66 = scmp.ne.s32.totalorder %s58, %s60
    %p67 = scmp.eq.s32.totalorder %s29, 7
    %p68 = por %p66, %p67
    %p69 = scmp.ne.s32.totalorder %s60, %s61
    %p70 = scmp.eq.s32.totalorder %s29, 0
    %p71 = por %p69, %p70
    %p72 = scmp.ne.s32.totalorder %s60, %s61
    %p73 = scmp.eq.s32.totalorder %s30, 7
    %p74 = por %p72, %p73
    %p76 = scmp.ne.s32.totalorder %s61, %s75
    %p77 = scmp.eq.s32.totalorder %s30, 0
    %p78 = por %p76, %p77
    %s80 = sadd.s32 %s79, 1
    %p83 = scmp.eq.s32.totalorder %s24, 7
    %p84 = scmp.ne.s32.totalorder %s79, %s81
    %p85 = scmp.eq.s32.totalorder %s24, 0
    %p86 = por %p84, %p85
    %p87 = scmp.ne.s32.totalorder %s79, %s81
    %p88 = scmp.eq.s32.totalorder %s29, 7
    %p89 = por %p87, %p88
    %p90 = scmp.ne.s32.totalorder %s81, %s82
    %p91 = scmp.eq.s32.totalorder %s29, 0
    %p92 = por %p90, %p91
    %p93 = scmp.ne.s32.totalorder %s81, %s82
    %p94 = scmp.eq.s32.totalorder %s30, 7
    %p95 = por %p93, %p94
    %p97 = scmp.ne.s32.totalorder %s82, %s96
    %p98 = scmp.eq.s32.totalorder %s30, 0
    %p99 = por %p97, %p98
    %s101 = sadd.s32 %s100, 1
    %p104 = scmp.eq.s32.totalorder %s24, 7
    %p105 = scmp.ne.s32.totalorder %s100, %s102
    %p106 = scmp.eq.s32.totalorder %s24, 0
    %p107 = por %p105, %p106
    %p108 = scmp.ne.s32.totalorder %s100, %s102
    %p109 = scmp.eq.s32.totalorder %s29, 7
    %p110 = por %p108, %p109
    %p111 = scmp.ne.s32.totalorder %s102, %s103
    %p112 = scmp.eq.s32.totalorder %s29, 0
    %p113 = por %p111, %p112
    %p114 = scmp.ne.s32.totalorder %s102, %s103
    %p115 = scmp.eq.s32.totalorder %s30, 7
    %p116 = por %p114, %p115
    %p118 = scmp.ne.s32.totalorder %s103, %s117
    %p119 = scmp.eq.s32.totalorder %s30, 0
    %p120 = por %p118, %p119
    %s122 = sadd.s32 %s121, 1
    %p125 = scmp.eq.s32.totalorder %s24, 7
    %p126 = scmp.ne.s32.totalorder %s121, %s123
    %p127 = scmp.eq.s32.totalorder %s24, 0
    %p128 = por %p126, %p127
    %p129 = scmp.ne.s32.totalorder %s121, %s123
    %p130 = scmp.eq.s32.totalorder %s29, 7
    %p131 = por %p129, %p130
    %p132 = scmp.ne.s32.totalorder %s123, %s124
    %p133 = scmp.eq.s32.totalorder %s29, 0
    %p134 = por %p132, %p133
    %p135 = scmp.ne.s32.totalorder %s123, %s124
    %p136 = scmp.eq.s32.totalorder %s30, 7
    %p137 = por %p135, %p136
    %p139 = scmp.ne.s32.totalorder %s124, %s138
    %p140 = scmp.eq.s32.totalorder %s30, 0
    %p141 = por %p139, %p140
    %s143 = sadd.s32 %s142, 1
    %p146 = scmp.eq.s32.totalorder %s24, 7
    %p147 = scmp.ne.s32.totalorder %s142, %s144
    %p148 = scmp.eq.s32.totalorder %s24, 0
    %p149 = por %p147, %p148
    %p150 = scmp.ne.s32.totalorder %s142, %s144
    %p151 = scmp.eq.s32.totalorder %s29, 7
    %p152 = por %p150, %p151
    %p153 = scmp.ne.s32.totalorder %s144, %s145
    %p154 = scmp.eq.s32.totalorder %s29, 0
    %p155 = por %p153, %p154
    %p156 = scmp.ne.s32.totalorder %s144, %s145
    %p157 = scmp.eq.s32.totalorder %s30, 7
    %p158 = por %p156, %p157
    %p160 = scmp.ne.s32.totalorder %s145, %s159
    %p161 = scmp.eq.s32.totalorder %s30, 0
    %p162 = por %p160, %p161
    %s164 = sadd.s32 %s163, 1
    %p167 = scmp.eq.s32.totalorder %s24, 7
    %p168 = scmp.ne.s32.totalorder %s163, %s165
    %p169 = scmp.eq.s32.totalorder %s24, 0
    %p170 = por %p168, %p169
    %p171 = scmp.ne.s32.totalorder %s163, %s165
    %p172 = scmp.eq.s32.totalorder %s29, 7
    %p173 = por %p171, %p172
    %p174 = scmp.ne.s32.totalorder %s165, %s166
    %p175 = scmp.eq.s32.totalorder %s29, 0
    %p176 = por %p174, %p175
    %p177 = scmp.ne.s32.totalorder %s165, %s166
    %p178 = scmp.eq.s32.totalorder %s30, 7
    %p179 = por %p177, %p178
    %p181 = scmp.ne.s32.totalorder %s166, %s180
    %p182 = scmp.eq.s32.totalorder %s30, 0
    %p183 = por %p181, %p182
    %s185 = sadd.s32 %s184, 1
    %p188 = scmp.eq.s32.totalorder %s24, 7
    %p189 = scmp.ne.s32.totalorder %s184, %s186
    %p190 = scmp.eq.s32.totalorder %s24, 0
    %p191 = por %p189, %p190
    %p192 = scmp.ne.s32.totalorder %s184, %s186
    %p193 = scmp.eq.s32.totalorder %s29, 7
    %p194 = por %p192, %p193
    %p195 = scmp.ne.s32.totalorder %s186, %s187
    %p196 = scmp.eq.s32.totalorder %s29, 0
    %p197 = por %p195, %p196
    %p198 = scmp.ne.s32.totalorder %s186, %s187
    %p199 = scmp.eq.s32.totalorder %s30, 7
    %p200 = por %p198, %p199
    %p202 = scmp.ne.s32.totalorder %s187, %s201
    %p203 = scmp.eq.s32.totalorder %s30, 0
    %p204 = por %p202, %p203
    %s206 = sadd.s32 %s205, 1
    %p209 = scmp.eq.s32.totalorder %s24, 7
    %p210 = scmp.ne.s32.totalorder %s205, %s207
    %p211 = scmp.eq.s32.totalorder %s24, 0
    %p212 = por %p210, %p211
    %p213 = scmp.ne.s32.totalorder %s205, %s207
    %p214 = scmp.eq.s32.totalorder %s29, 7
    %p215 = por %p213, %p214
    %p216 = scmp.ne.s32.totalorder %s207, %s208
    %p217 = scmp.eq.s32.totalorder %s29, 0
    %p218 = por %p216, %p217
    %p219 = scmp.ne.s32.totalorder %s207, %s208
    %p220 = scmp.eq.s32.totalorder %s30, 7
    %p221 = por %p219, %p220
    %p223 = scmp.ne.s32.totalorder %s208, %s222
    %p224 = scmp.eq.s32.totalorder %s30, 0
    %p225 = por %p223, %p224
    %s227 = sadd.s32 %s226, 1
    %p230 = scmp.eq.s32.totalorder %s24, 7
    %p231 = scmp.ne.s32.totalorder %s226, %s228
    %p232 = scmp.eq.s32.totalorder %s24, 0
    %p233 = por %p231, %p232
    %p234 = scmp.ne.s32.totalorder %s226, %s228
    %p235 = scmp.eq.s32.totalorder %s29, 7
    %p236 = por %p234, %p235
    %p237 = scmp.ne.s32.totalorder %s228, %s229
    %p238 = scmp.eq.s32.totalorder %s29, 0
    %p239 = por %p237, %p238
    %p240 = scmp.ne.s32.totalorder %s228, %s229
    %p241 = scmp.eq.s32.totalorder %s30, 7
    %p242 = por %p240, %p241
    %p244 = scmp.ne.s32.totalorder %s229, %s243
    %p245 = scmp.eq.s32.totalorder %s30, 0
    %p246 = por %p244, %p245
    %s248 = sadd.s32 %s247, 1
    %p251 = scmp.eq.s32.totalorder %s24, 7
    %p252 = scmp.ne.s32.totalorder %s247, %s249
    %p253 = scmp.eq.s32.totalorder %s24, 0
    %p254 = por %p252, %p253
    %p255 = scmp.ne.s32.totalorder %s247, %s249
    %p256 = scmp.eq.s32.totalorder %s29, 7
    %p257 = por %p255, %p256
    %p258 = scmp.ne.s32.totalorder %s249, %s250
    %p259 = scmp.eq.s32.totalorder %s29, 0
    %p260 = por %p258, %p259
    %p261 = scmp.ne.s32.totalorder %s249, %s250
    %p262 = scmp.eq.s32.totalorder %s30, 7
    %p263 = por %p261, %p262
    %p265 = scmp.ne.s32.totalorder %s250, %s264
    %p266 = scmp.eq.s32.totalorder %s30, 0
    %p267 = por %p265, %p266
    %s269 = sadd.s32 %s268, 1
    %p272 = scmp.eq.s32.totalorder %s24, 7
    %p273 = scmp.ne.s32.totalorder %s268, %s270
    %p274 = scmp.eq.s32.totalorder %s24, 0
    %p275 = por %p273, %p274
    %p276 = scmp.ne.s32.totalorder %s268, %s270
    %p277 = scmp.eq.s32.totalorder %s29, 7
    %p278 = por %p276, %p277
    %p279 = scmp.ne.s32.totalorder %s270, %s271
    %p280 = scmp.eq.s32.totalorder %s29, 0
    %p281 = por %p279, %p280
    %p282 = scmp.ne.s32.totalorder %s270, %s271
    %p283 = scmp.eq.s32.totalorder %s30, 7
    %p284 = por %p282, %p283
    %p286 = scmp.ne.s32.totalorder %s271, %s285
    %p287 = scmp.eq.s32.totalorder %s30, 0
    %p288 = por %p286, %p287
    %s290 = sadd.s32 %s289, 1
    %p293 = scmp.eq.s32.totalorder %s24, 7
    %p294 = scmp.ne.s32.totalorder %s289, %s291
    %p295 = scmp.eq.s32.totalorder %s24, 0
    %p296 = por %p294, %p295
    %p297 = scmp.ne.s32.totalorder %s289, %s291
    %p298 = scmp.eq.s32.totalorder %s29, 7
    %p299 = por %p297, %p298
    %p300 = scmp.ne.s32.totalorder %s291, %s292
    %p301 = scmp.eq.s32.totalorder %s29, 0
    %p302 = por %p300, %p301
    %p303 = scmp.ne.s32.totalorder %s291, %s292
    %p304 = scmp.eq.s32.totalorder %s30, 7
    %p305 = por %p303, %p304
    %p307 = scmp.ne.s32.totalorder %s292, %s306
    %p308 = scmp.eq.s32.totalorder %s30, 0
    %p309 = por %p307, %p308
    %s311 = sadd.s32 %s310, 1
    %p314 = scmp.eq.s32.totalorder %s24, 7
    %p315 = scmp.ne.s32.totalorder %s310, %s312
    %p316 = scmp.eq.s32.totalorder %s24, 0
    %p317 = por %p315, %p316
    %p318 = scmp.ne.s32.totalorder %s310, %s312
    %p319 = scmp.eq.s32.totalorder %s29, 7
    %p320 = por %p318, %p319
    %p321 = scmp.ne.s32.totalorder %s312, %s313
    %p322 = scmp.eq.s32.totalorder %s29, 0
    %p323 = por %p321, %p322
    %p324 = scmp.ne.s32.totalorder %s312, %s313
    %p325 = scmp.eq.s32.totalorder %s30, 7
    %p326 = por %p324, %p325
    %p328 = scmp.ne.s32.totalorder %s313, %s327
    %p329 = scmp.eq.s32.totalorder %s30, 0
    %p330 = por %p328, %p329
    %s332 = sadd.s32 %s331, 1
    %p335 = scmp.eq.s32.totalorder %s24, 7
    %p336 = scmp.ne.s32.totalorder %s331, %s333
    %p337 = scmp.eq.s32.totalorder %s24, 0
    %p338 = por %p336, %p337
    %p339 = scmp.ne.s32.totalorder %s331, %s333
    %p340 = scmp.eq.s32.totalorder %s29, 7
    %p341 = por %p339, %p340
    %p342 = scmp.ne.s32.totalorder %s333, %s334
    %p343 = scmp.eq.s32.totalorder %s29, 0
    %p344 = por %p342, %p343
    %p345 = scmp.ne.s32.totalorder %s333, %s334
    %p346 = scmp.eq.s32.totalorder %s30, 7
    %p347 = por %p345, %p346
    %p349 = scmp.ne.s32.totalorder %s334, %s348
    %p350 = scmp.eq.s32.totalorder %s30, 0
    %p351 = por %p349, %p350
    %s353 = sadd.s32 %s352, 1
    %p356 = scmp.eq.s32.totalorder %s24, 7
    %p357 = scmp.ne.s32.totalorder %s352, %s354
    %p358 = scmp.eq.s32.totalorder %s24, 0
    %p359 = por %p357, %p358
    %p360 = scmp.ne.s32.totalorder %s352, %s354
    %p361 = scmp.eq.s32.totalorder %s29, 7
    %p362 = por %p360, %p361
    %p363 = scmp.ne.s32.totalorder %s354, %s355
    %p364 = scmp.eq.s32.totalorder %s29, 0
    %p365 = por %p363, %p364
    %p366 = scmp.ne.s32.totalorder %s354, %s355
    %p367 = scmp.eq.s32.totalorder %s30, 7
    %p368 = por %p366, %p367
    %p370 = scmp.ne.s32.totalorder %s355, %s369
    %p371 = scmp.eq.s32.totalorder %s30, 0
    %p372 = por %p370, %p371
    %s373 = ssub.s32 %s24, %s31
    %p374 = scmp.eq.s32.totalorder %s373, 0
    %s376 = sadd.s32 %s375, 1
    %s377 = scalar_select %p374, %s375, %s376
    %p380 = pneg %p374
    %p381 = scmp.eq.s32.totalorder %s24, 7
    %p382 = por %p380, %p381
    %p383 = scmp.ne.s32.totalorder %s375, %s378
    %p384 = scmp.eq.s32.totalorder %s24, 0
    %p385 = por %p383, %p384
    %p386 = scmp.ne.s32.totalorder %s375, %s378
    %p387 = scmp.eq.s32.totalorder %s29, 7
    %p388 = por %p386, %p387
    %p389 = scmp.ne.s32.totalorder %s378, %s379
    %p390 = scmp.eq.s32.totalorder %s29, 0
    %p391 = por %p389, %p390
    %p392 = scmp.ne.s32.totalorder %s378, %s379
    %p393 = scmp.eq.s32.totalorder %s30, 7
    %p394 = por %p392, %p393
    %p396 = scmp.ne.s32.totalorder %s379, %s395
    %p397 = scmp.eq.s32.totalorder %s30, 0
    %p398 = por %p396, %p397
    %s399 = ssub.s32 %s24, %s31
    %p400 = scmp.eq.s32.totalorder %s399, 0
    %s402 = sadd.s32 %s401, 1
    %s403 = scalar_select %p400, %s401, %s402
    %p406 = pneg %p400
    %p407 = scmp.eq.s32.totalorder %s24, 7
    %p408 = por %p406, %p407
    %p409 = scmp.ne.s32.totalorder %s401, %s404
    %p410 = scmp.eq.s32.totalorder %s24, 0
    %p411 = por %p409, %p410
    %p412 = scmp.ne.s32.totalorder %s401, %s404
    %p413 = scmp.eq.s32.totalorder %s29, 7
    %p414 = por %p412, %p413
    %p415 = scmp.ne.s32.totalorder %s404, %s405
    %p416 = scmp.eq.s32.totalorder %s29, 0
    %p417 = por %p415, %p416
    %p418 = scmp.ne.s32.totalorder %s404, %s405
    %p419 = scmp.eq.s32.totalorder %s30, 7
    %p420 = por %p418, %p419
    %p422 = scmp.ne.s32.totalorder %s405, %s421
    %p423 = scmp.eq.s32.totalorder %s30, 0
    %p424 = por %p422, %p423
    %p425 = scmp.le.s32.totalorder 1, %s24
    %p426 = scmp.lt.s32.totalorder %s24, 9
    %p427 = pnand %p425, %p426
    %p428 = pneg %p427
    // Predicated region
    $region9: #{tacotron2_forward.23} parent=5 // pred_check
      _
    $region10: #{tacotron2_forward.23} parent=5 // pred_check_branch
      %430 = sbr.rel (%p427) target = $region12
    $region11: #{tacotron2_forward.23} parent=5 // pred_region
      %s431 = ssub.s32 %s24, 1
      // Predicated region
      $region13: #{tacotron2_forward.23} parent=11 // pred_check
        %p432 = pneg %p71
      $region14: #{tacotron2_forward.23} parent=11 // pred_check_branch
        %434 = sbr.rel (%p432) target = $region16
      $region15: #{tacotron2_forward.23} parent=11 // pred_region
        _
      $region16: #{tacotron2_forward.23} parent=11 // pred_fallthru
        _
      // Predicated region
      $region17: #{tacotron2_forward.23} parent=11 // pred_check
        %p435 = pneg %p92
      $region18: #{tacotron2_forward.23} parent=11 // pred_check_branch
        %437 = sbr.rel (%p435) target = $region20
      $region19: #{tacotron2_forward.23} parent=11 // pred_region
        _
      $region20: #{tacotron2_forward.23} parent=11 // pred_fallthru
        _
      // Predicated region
      $region21: #{tacotron2_forward.23} parent=11 // pred_check
        %p438 = pneg %p113
      $region22: #{tacotron2_forward.23} parent=11 // pred_check_branch
        %440 = sbr.rel (%p438) target = $region24
      $region23: #{tacotron2_forward.23} parent=11 // pred_region
        _
      $region24: #{tacotron2_forward.23} parent=11 // pred_fallthru
        _
      // Predicated region
      $region25: #{tacotron2_forward.23} parent=11 // pred_check
        %p441 = pneg %p134
      $region26: #{tacotron2_forward.23} parent=11 // pred_check_branch
        %443 = sbr.rel (%p441) target = $region28
      $region27: #{tacotron2_forward.23} parent=11 // pred_region
        _
      $region28: #{tacotron2_forward.23} parent=11 // pred_fallthru
        _
      // Predicated region
      $region29: #{tacotron2_forward.23} parent=11 // pred_check
        %p444 = pneg %p155
      $region30: #{tacotron2_forward.23} parent=11 // pred_check_branch
        %446 = sbr.rel (%p444) target = $region32
      $region31: #{tacotron2_forward.23} parent=11 // pred_region
        _
      $region32: #{tacotron2_forward.23} parent=11 // pred_fallthru
        _
      // Predicated region
      $region33: #{tacotron2_forward.23} parent=11 // pred_check
        %p447 = pneg %p176
      $region34: #{tacotron2_forward.23} parent=11 // pred_check_branch
        %449 = sbr.rel (%p447) target = $region36
      $region35: #{tacotron2_forward.23} parent=11 // pred_region
        _
      $region36: #{tacotron2_forward.23} parent=11 // pred_fallthru
        _
      // Predicated region
      $region37: #{tacotron2_forward.23} parent=11 // pred_check
        %p450 = pneg %p197
      $region38: #{tacotron2_forward.23} parent=11 // pred_check_branch
        %452 = sbr.rel (%p450) target = $region40
      $region39: #{tacotron2_forward.23} parent=11 // pred_region
        _
      $region40: #{tacotron2_forward.23} parent=11 // pred_fallthru
        _
      // Predicated region
      $region41: #{tacotron2_forward.23} parent=11 // pred_check
        %p453 = pneg %p218
      $region42: #{tacotron2_forward.23} parent=11 // pred_check_branch
        %455 = sbr.rel (%p453) target = $region44
      $region43: #{tacotron2_forward.23} parent=11 // pred_region
        _
      $region44: #{tacotron2_forward.23} parent=11 // pred_fallthru
        _
      // Predicated region
      $region45: #{tacotron2_forward.23} parent=11 // pred_check
        %p456 = pneg %p239
      $region46: #{tacotron2_forward.23} parent=11 // pred_check_branch
        %458 = sbr.rel (%p456) target = $region48
      $region47: #{tacotron2_forward.23} parent=11 // pred_region
        _
      $region48: #{tacotron2_forward.23} parent=11 // pred_fallthru
        _
      // Predicated region
      $region49: #{tacotron2_forward.23} parent=11 // pred_check
        %p459 = pneg %p260
      $region50: #{tacotron2_forward.23} parent=11 // pred_check_branch
        %461 = sbr.rel (%p459) target = $region52
      $region51: #{tacotron2_forward.23} parent=11 // pred_region
        _
      $region52: #{tacotron2_forward.23} parent=11 // pred_fallthru
        _
      // Predicated region
      $region53: #{tacotron2_forward.23} parent=11 // pred_check
        %p462 = pneg %p281
      $region54: #{tacotron2_forward.23} parent=11 // pred_check_branch
        %464 = sbr.rel (%p462) target = $region56
      $region55: #{tacotron2_forward.23} parent=11 // pred_region
        _
      $region56: #{tacotron2_forward.23} parent=11 // pred_fallthru
        _
      // Predicated region
      $region57: #{tacotron2_forward.23} parent=11 // pred_check
        %p465 = pneg %p302
      $region58: #{tacotron2_forward.23} parent=11 // pred_check_branch
        %467 = sbr.rel (%p465) target = $region60
      $region59: #{tacotron2_forward.23} parent=11 // pred_region
        _
      $region60: #{tacotron2_forward.23} parent=11 // pred_fallthru
        _
      // Predicated region
      $region61: #{tacotron2_forward.23} parent=11 // pred_check
        %p468 = pneg %p323
      $region62: #{tacotron2_forward.23} parent=11 // pred_check_branch
        %470 = sbr.rel (%p468) target = $region64
      $region63: #{tacotron2_forward.23} parent=11 // pred_region
        _
      $region64: #{tacotron2_forward.23} parent=11 // pred_fallthru
        _
      // Predicated region
      $region65: #{tacotron2_forward.23} parent=11 // pred_check
        %p471 = pneg %p344
      $region66: #{tacotron2_forward.23} parent=11 // pred_check_branch
        %473 = sbr.rel (%p471) target = $region68
      $region67: #{tacotron2_forward.23} parent=11 // pred_region
        _
      $region68: #{tacotron2_forward.23} parent=11 // pred_fallthru
        _
      // Predicated region
      $region69: #{tacotron2_forward.23} parent=11 // pred_check
        %p474 = pneg %p365
      $region70: #{tacotron2_forward.23} parent=11 // pred_check_branch
        %476 = sbr.rel (%p474) target = $region72
      $region71: #{tacotron2_forward.23} parent=11 // pred_region
        _
      $region72: #{tacotron2_forward.23} parent=11 // pred_fallthru
        _
    $region12: #{tacotron2_forward.23} parent=5 // pred_fallthru
      _
    %p477 = scmp.lt.s32.totalorder %s24, 8
    // Predicated region
    $region73: #{tacotron2_forward.23} parent=5 // pred_check
      %p478 = pneg %p477
    $region74: #{tacotron2_forward.23} parent=5 // pred_check_branch
      %480 = sbr.rel (%p478) target = $region76
    $region75: #{tacotron2_forward.23} parent=5 // pred_region
      // Predicated region
      $region77: #{tacotron2_forward.23} parent=75 // pred_check
        %p481 = pneg %p44
      $region78: #{tacotron2_forward.23} parent=75 // pred_check_branch
        %483 = sbr.rel (%p481) target = $region80
      $region79: #{tacotron2_forward.23} parent=75 // pred_region
        %p484 = scmp.lt.s32.totalorder %s24, 7
        %s485 = scalar_select %p484, %s24, 7
        %s486 = smul.addr %s485, 2
        %s487 = scalar_lea.vmem %s0, %s486
      $region80: #{tacotron2_forward.23} parent=75 // pred_fallthru
        _
    $region76: #{tacotron2_forward.23} parent=5 // pred_fallthru
      _
    %p488 = scmp.le.s32.totalorder 1, %s24
    %p489 = scmp.lt.s32.totalorder %s24, 9
    %p490 = pnand %p488, %p489
    %p491 = pneg %p490
    // Predicated region
    $region81: #{tacotron2_forward.23} parent=5 // pred_check
      _
    $region82: #{tacotron2_forward.23} parent=5 // pred_check_branch
      %493 = sbr.rel (%p490) target = $region84
    $region83: #{tacotron2_forward.23} parent=5 // pred_region
      %s494 = ssub.s32 %s24, 1
      %p495 = scmp.lt.s32.totalorder %s29, 7
      %s496 = scalar_select %p495, %s29, 7
      %s497 = smul.addr %s496, 2
      %s498 = scalar_lea.vmem %s0, %s497
      %p499 = pneg %p50
      %p500 = pneg %p47
      %p501 = pneg %p71
      %p502 = pneg %p68
      %p503 = pneg %p92
      %p504 = pneg %p89
      %p505 = pneg %p113
      %p506 = pneg %p110
      %p507 = pneg %p134
      %p508 = pneg %p131
      %p509 = pneg %p155
      %p510 = pneg %p152
      %p511 = pneg %p176
      %p512 = pneg %p173
      %p513 = pneg %p197
      %p514 = pneg %p194
      %p515 = pneg %p218
      %p516 = pneg %p215
      %p517 = pneg %p239
      %p518 = pneg %p236
      %p519 = pneg %p260
      %p520 = pneg %p257
      %p521 = pneg %p281
      %p522 = pneg %p278
      %p523 = pneg %p302
      %p524 = pneg %p299
      %p525 = pneg %p323
      %p526 = pneg %p320
      %p527 = pneg %p344
      %p528 = pneg %p341
      %p529 = pneg %p365
      %p530 = pneg %p362
      %p531 = pneg %p391
      %p532 = pneg %p388
      %p533 = scmp.lt.s32.totalorder %s29, 7
      %s534 = scalar_select %p533, %s29, 7
      %s535 = smul.addr %s534, 2
      %s536 = scalar_lea.vmem %s16, %s535
      %p537 = pneg %p417
      %p538 = pneg %p414
      %p539 = scmp.lt.s32.totalorder %s29, 7
      %s540 = scalar_select %p539, %s29, 7
      %s541 = smul.addr %s540, 8
      %s542 = scalar_lea.vmem %s17, %s541
      %p543 = scmp.lt.s32.totalorder %s29, 7
      %s544 = scalar_select %p543, %s29, 7
      %s545 = smul.addr %s544, 2
      %s546 = scalar_lea.vmem %s0, %s545
      %p547 = scmp.lt.s32.totalorder %s29, 7
      %s548 = scalar_select %p547, %s29, 7
      %s549 = smul.addr %s548, 2
      %s550 = scalar_lea.vmem %s16, %s549
      %p551 = scmp.lt.s32.totalorder %s29, 7
      %s552 = scalar_select %p551, %s29, 7
      %s553 = smul.addr %s552, 8
      %s554 = scalar_lea.vmem %s17, %s553
      %p555 = scmp.eq.s32.totalorder %s29, 0
      // Predicated region
      $region85: #{tacotron2_forward.23} parent=83 // pred_check
        %p556 = pneg %p555
      $region86: #{tacotron2_forward.23} parent=83 // pred_check_branch
        %558 = sbr.rel (%p556) target = $region88
      $region87: #{tacotron2_forward.23} parent=83 // pred_region
        %vm559 = vcmask 123904
        %560 = vst.msk [vmem:[#allocation2] sm:$0x3] %vm559, 0.0
        %561 = vst.msk [vmem:[#allocation3] sm:$0x3] %vm559, 0.0
        %562 = vst.msk [vmem:[#allocation4] sm:$0x3] %vm559, 0.0
        %563 = vst.msk [vmem:[#allocation5] sm:$0x3] %vm559, 0.0
        %vm564 = vcmask 15360
        %565 = vst.msk [vmem:[#allocation6] sm:$0xff] %vm564, 0.0
        %vm566 = vcmask 11264
        %567 = vst.msk [vmem:[#allocation6 + $0x8] sm:$0xf] %vm566, 0.0
        %568 = vst.msk [vmem:[#allocation7] sm:$0x3] %vm559, 0.0
      $region88: #{tacotron2_forward.23} parent=83 // pred_fallthru
        _
      %v569 = vld [vmem:[%s546] sm:$0x3]
      %v570 = vld [vmem:[#allocation7] sm:$0x3]
      %v571 = vld [vmem:[%s4] sm:$0xff]
      %v572 = vld [vmem:[%s4 + $0x8] sm:$0xff]
      %vm573 = vcmask 130048
      %v575 = vsel %vm573, %v570, 0
      %577 = vmatprep.subr.mxu0 0.0
      %578 = vmatpush1.msra.mxu0 %v571
      %579 = vmatprep.subr.mxu0 0.0
      %580 = vmatpush1.msra.mxu0 %v572
      %581 = vmatprep.subr.mxu0 0.0
      %582 = vmatpush1.msra.mxu0 0.0
      %583 = vmatprep.subr.mxu0 0.0
      %584 = vmatpush1.msra.mxu0 0.0
      %585 = vmatprep.subr.mxu0 0.0
      %586 = vmatpush1.msra.mxu0 0.0
      %587 = vmatprep.subr.mxu0 0.0
      %588 = vmatpush1.msra.mxu0 0.0
      %589 = vmatprep.subr.mxu0 0.0
      %590 = vmatpush1.msra.mxu0 0.0
      %591 = vmatprep.subr.mxu0 0.0
      %592 = vmatpush1.msra.mxu0 0.0
      %593 = vmatprep.subr.mxu0 0.0
      %594 = vmatpush1.msra.mxu0 0.0
      %595 = vmatprep.subr.mxu0 0.0
      %596 = vmatpush1.msra.mxu0 0.0
      %597 = vmatprep.subr.mxu0 0.0
      %598 = vmatpush1.msra.mxu0 0.0
      %599 = vmatprep.subr.mxu0 0.0
      %600 = vmatpush1.msra.mxu0 0.0
      %601 = vmatprep.subr.mxu0 0.0
      %602 = vmatpush1.msra.mxu0 0.0
      %603 = vmatprep.subr.mxu0 0.0
      %604 = vmatpush1.msra.mxu0 0.0
      %605 = vmatprep.subr.mxu0 0.0
      %606 = vmatpush1.msra.mxu0 0.0
      %607 = vmatprep.subr.mxu0 0.0
      %608 = vmatpush1.msra.mxu0 0.0
      %609 = vmatprep.subr.mxu0 0.0
      %610 = vmatpush1.msra.mxu0 0.0
      %611 = vmatprep.subr.mxu0 0.0
      %612 = vmatpush1.msra.mxu0 0.0
      %613 = vmatprep.subr.mxu0 0.0
      %614 = vmatpush1.msra.mxu0 0.0
      %615 = vmatprep.subr.mxu0 0.0
      %616 = vmatpush1.msra.mxu0 0.0
      %617 = vmatprep.subr.mxu0 0.0
      %618 = vmatpush1.msra.mxu0 0.0
      %619 = vmatprep.subr.mxu0 0.0
      %620 = vmatpush1.msra.mxu0 0.0
      %621 = vmatprep.subr.mxu0 0.0
      %622 = vmatpush1.msra.mxu0 0.0
      %623 = vmatprep.subr.mxu0 0.0
      %624 = vmatpush1.msra.mxu0 0.0
      %625 = vmatprep.subr.mxu0 0.0
      %626 = vmatpush1.msra.mxu0 0.0
      %627 = vmatprep.subr.mxu0 0.0
      %628 = vmatpush1.msra.mxu0 0.0
      %629 = vmatprep.subr.mxu0 0.0
      %630 = vmatpush1.msra.mxu0 0.0
      %631 = vmatprep.subr.mxu0 0.0
      %632 = vmatpush1.msra.mxu0 0.0
      %633 = vmatprep.subr.mxu0 0.0
      %634 = vmatpush1.msra.mxu0 0.0
      %635 = vmatprep.subr.mxu0 0.0
      %636 = vmatpush1.msra.mxu0 0.0
      %637 = vmatprep.subr.mxu0 0.0
      %638 = vmatpush1.msra.mxu0 0.0
      %639 = vmatprep.subr.mxu0 0.0
      %640 = vmatpush1.msra.mxu0 0.0
      %641 = vmatprep.mubr.f32.mxu0 0.0
      %642 = vmatmul.mubr.f32.gmra.mrb[0].mxu0 %v575
      %v643 = vpop.f32.mrb[0].mxu0
      %v644 = vadd.f32 0.0, %v643
      %v645 = vpop.f32.mrb[0].mxu0
      %646 = vdwg.mxu0
      %v647 = vadd.f32 %v569, %v644
      %v648 = vld [vmem:[#allocation2] sm:$0x3]
      %v649 = vld [vmem:[%s5] sm:$0xff]
      %v650 = vld [vmem:[%s5 + $0x8] sm:$0xff]
      %v652 = vsel %vm573, %v648, 0
      %654 = vmatprep.subr.mxu0 0.0
      %655 = vmatpush1.msra.mxu0 %v649
      %656 = vmatprep.subr.mxu0 0.0
      %657 = vmatpush1.msra.mxu0 %v650
      %658 = vmatprep.subr.mxu0 0.0
      %659 = vmatpush1.msra.mxu0 0.0
      %660 = vmatprep.subr.mxu0 0.0
      %661 = vmatpush1.msra.mxu0 0.0
      %662 = vmatprep.subr.mxu0 0.0
      %663 = vmatpush1.msra.mxu0 0.0
      %664 = vmatprep.subr.mxu0 0.0
      %665 = vmatpush1.msra.mxu0 0.0
      %666 = vmatprep.subr.mxu0 0.0
      %667 = vmatpush1.msra.mxu0 0.0
      %668 = vmatprep.subr.mxu0 0.0
      %669 = vmatpush1.msra.mxu0 0.0
      %670 = vmatprep.subr.mxu0 0.0
      %671 = vmatpush1.msra.mxu0 0.0
      %672 = vmatprep.subr.mxu0 0.0
      %673 = vmatpush1.msra.mxu0 0.0
      %674 = vmatprep.subr.mxu0 0.0
      %675 = vmatpush1.msra.mxu0 0.0
      %676 = vmatprep.subr.mxu0 0.0
      %677 = vmatpush1.msra.mxu0 0.0
      %678 = vmatprep.subr.mxu0 0.0
      %679 = vmatpush1.msra.mxu0 0.0
      %680 = vmatprep.subr.mxu0 0.0
      %681 = vmatpush1.msra.mxu0 0.0
      %682 = vmatprep.subr.mxu0 0.0
      %683 = vmatpush1.msra.mxu0 0.0
      %684 = vmatprep.subr.mxu0 0.0
      %685 = vmatpush1.msra.mxu0 0.0
      %686 = vmatprep.subr.mxu0 0.0
      %687 = vmatpush1.msra.mxu0 0.0
      %688 = vmatprep.subr.mxu0 0.0
      %689 = vmatpush1.msra.mxu0 0.0
      %690 = vmatprep.subr.mxu0 0.0
      %691 = vmatpush1.msra.mxu0 0.0
      %692 = vmatprep.subr.mxu0 0.0
      %693 = vmatpush1.msra.mxu0 0.0
      %694 = vmatprep.subr.mxu0 0.0
      %695 = vmatpush1.msra.mxu0 0.0
      %696 = vmatprep.subr.mxu0 0.0
      %697 = vmatpush1.msra.mxu0 0.0
      %698 = vmatprep.subr.mxu0 0.0
      %699 = vmatpush1.msra.mxu0 0.0
      %700 = vmatprep.subr.mxu0 0.0
      %701 = vmatpush1.msra.mxu0 0.0
      %702 = vmatprep.subr.mxu0 0.0
      %703 = vmatpush1.msra.mxu0 0.0
      %704 = vmatprep.subr.mxu0 0.0
      %705 = vmatpush1.msra.mxu0 0.0
      %706 = vmatprep.subr.mxu0 0.0
      %707 = vmatpush1.msra.mxu0 0.0
      %708 = vmatprep.subr.mxu0 0.0
      %709 = vmatpush1.msra.mxu0 0.0
      %710 = vmatprep.subr.mxu0 0.0
      %711 = vmatpush1.msra.mxu0 0.0
      %712 = vmatprep.subr.mxu0 0.0
      %713 = vmatpush1.msra.mxu0 0.0
      %714 = vmatprep.subr.mxu0 0.0
      %715 = vmatpush1.msra.mxu0 0.0
      %716 = vmatprep.subr.mxu0 0.0
      %717 = vmatpush1.msra.mxu0 0.0
      %718 = vmatprep.mubr.f32.mxu0 0.0
      %719 = vmatmul.mubr.f32.gmra.mrb[0].mxu0 %v652
      %v720 = vpop.f32.mrb[0].mxu0
      %v721 = vadd.f32 0.0, %v720
      %v722 = vpop.f32.mrb[0].mxu0
      %723 = vdwg.mxu0
      %v724 = vadd.f32 %v647, %v721
      %v725 = vld [vmem:[#allocation3] sm:$0x3]
      %v726 = vxor.u32 %v724, 2147483648
      %v727 = vmul.f32 %v726, 1.442695
      %v728 = vpow.pop %v727
      %v729 = vadd.f32 %v728, 1.0
      %v730 = vrcp.pop %v729
      %v731 = vmul.f32 1.0, %v730
      %v732 = vtanh.pop %v724
      %734 = vrot.lane.b32.xlu0 %v725, 16
      %v735 = vpop.permute.xlu0 %734
      %v737 = vmul.f32 %v731, %v735
      %739 = vrot.lane.b32.xlu0 %v732, 96
      %v740 = vpop.permute.xlu0 %739
      %v742 = vmul.f32 %v731, %v740
      %744 = vrot.lane.b32.xlu0 %v742, 16
      %v745 = vpop.permute.xlu0 %744
      %v747 = vadd.f32 %v737, %v745
      %v748 = vtanh.pop %v747
      %750 = vrot.lane.b32.xlu0 %v748, 32
      %v751 = vpop.permute.xlu0 %750
      %v753 = vmul.f32 %v731, %v751
      %755 = vrot.lane.b32.xlu0 %v753, 80
      %v756 = vpop.permute.xlu0 %755
      %vm758 = vcmask 123904
      %759 = vst.msk [vmem:[#allocation2] sm:$0x3] %vm758, %v756
      %761 = vrot.lane.b32.xlu0 %v747, 112
      %v762 = vpop.permute.xlu0 %761
      %764 = vst.msk [vmem:[#allocation3] sm:$0x3] %vm758, %v762
      %v765 = vld [vmem:[%s8] sm:$0x1]
      %v766 = vld [vmem:[%s6] sm:$0xff]
      %v767 = vld [vmem:[%s6 + $0x8] sm:$0xff]
      %v768 = vsel %vm573, %v756, 0
      %770 = vmatprep.subr.mxu0 0.0
      %771 = vmatpush1.msra.mxu0 %v766
      %772 = vmatprep.subr.mxu0 0.0
      %773 = vmatpush1.msra.mxu0 %v767
      %774 = vmatprep.subr.mxu0 0.0
      %775 = vmatpush1.msra.mxu0 0.0
      %776 = vmatprep.subr.mxu0 0.0
      %777 = vmatpush1.msra.mxu0 0.0
      %778 = vmatprep.subr.mxu0 0.0
      %779 = vmatpush1.msra.mxu0 0.0
      %780 = vmatprep.subr.mxu0 0.0
      %781 = vmatpush1.msra.mxu0 0.0
      %782 = vmatprep.subr.mxu0 0.0
      %783 = vmatpush1.msra.mxu0 0.0
      %784 = vmatprep.subr.mxu0 0.0
      %785 = vmatpush1.msra.mxu0 0.0
      %786 = vmatprep.subr.mxu0 0.0
      %787 = vmatpush1.msra.mxu0 0.0
      %788 = vmatprep.subr.mxu0 0.0
      %789 = vmatpush1.msra.mxu0 0.0
      %790 = vmatprep.subr.mxu0 0.0
      %791 = vmatpush1.msra.mxu0 0.0
      %792 = vmatprep.subr.mxu0 0.0
      %793 = vmatpush1.msra.mxu0 0.0
      %794 = vmatprep.subr.mxu0 0.0
      %795 = vmatpush1.msra.mxu0 0.0
      %796 = vmatprep.subr.mxu0 0.0
      %797 = vmatpush1.msra.mxu0 0.0
      %798 = vmatprep.subr.mxu0 0.0
      %799 = vmatpush1.msra.mxu0 0.0
      %800 = vmatprep.subr.mxu0 0.0
      %801 = vmatpush1.msra.mxu0 0.0
      %802 = vmatprep.subr.mxu0 0.0
      %803 = vmatpush1.msra.mxu0 0.0
      %804 = vmatprep.subr.mxu0 0.0
      %805 = vmatpush1.msra.mxu0 0.0
      %806 = vmatprep.subr.mxu0 0.0
      %807 = vmatpush1.msra.mxu0 0.0
      %808 = vmatprep.subr.mxu0 0.0
      %809 = vmatpush1.msra.mxu0 0.0
      %810 = vmatprep.subr.mxu0 0.0
      %811 = vmatpush1.msra.mxu0 0.0
      %812 = vmatprep.subr.mxu0 0.0
      %813 = vmatpush1.msra.mxu0 0.0
      %814 = vmatprep.subr.mxu0 0.0
      %815 = vmatpush1.msra.mxu0 0.0
      %816 = vmatprep.subr.mxu0 0.0
      %817 = vmatpush1.msra.mxu0 0.0
      %818 = vmatprep.subr.mxu0 0.0
      %819 = vmatpush1.msra.mxu0 0.0
      %820 = vmatprep.subr.mxu0 0.0
      %821 = vmatpush1.msra.mxu0 0.0
      %822 = vmatprep.subr.mxu0 0.0
      %823 = vmatpush1.msra.mxu0 0.0
      %824 = vmatprep.subr.mxu0 0.0
      %825 = vmatpush1.msra.mxu0 0.0
      %826 = vmatprep.subr.mxu0 0.0
      %827 = vmatpush1.msra.mxu0 0.0
      %828 = vmatprep.subr.mxu0 0.0
      %829 = vmatpush1.msra.mxu0 0.0
      %830 = vmatprep.subr.mxu0 0.0
      %831 = vmatpush1.msra.mxu0 0.0
      %832 = vmatprep.subr.mxu0 0.0
      %833 = vmatpush1.msra.mxu0 0.0
      %834 = vmatprep.mubr.f32.mxu0 0.0
      %835 = vmatmul.mubr.f32.gmra.mrb[0].mxu0 %v768
      %v836 = vpop.f32.mrb[0].mxu0
      %v837 = vadd.f32 0.0, %v836
      %v838 = vpop.f32.mrb[0].mxu0
      %839 = vdwg.mxu0
      %v841 = vlaneseq
      %v842 = vshrl.u32 %v841, 7
      %v843 = vsub.s32 0, %v842
      %v844 = vrot.slane %v765, %v843
      %v846 = vadd.f32 %v844, %v837
      %v847 = vld [vmem:[#allocation4] sm:$0x3]
      %v848 = vld [vmem:[%s7] sm:$0xff]
      %v849 = vld [vmem:[%s7 + $0x8] sm:$0xff]
      %v851 = vsel %vm573, %v847, 0
      %853 = vmatprep.subr.mxu0 0.0
      %854 = vmatpush1.msra.mxu0 %v848
      %855 = vmatprep.subr.mxu0 0.0
      %856 = vmatpush1.msra.mxu0 %v849
      %857 = vmatprep.subr.mxu0 0.0
      %858 = vmatpush1.msra.mxu0 0.0
      %859 = vmatprep.subr.mxu0 0.0
      %860 = vmatpush1.msra.mxu0 0.0
      %861 = vmatprep.subr.mxu0 0.0
      %862 = vmatpush1.msra.mxu0 0.0
      %863 = vmatprep.subr.mxu0 0.0
      %864 = vmatpush1.msra.mxu0 0.0
      %865 = vmatprep.subr.mxu0 0.0
      %866 = vmatpush1.msra.mxu0 0.0
      %867 = vmatprep.subr.mxu0 0.0
      %868 = vmatpush1.msra.mxu0 0.0
      %869 = vmatprep.subr.mxu0 0.0
      %870 = vmatpush1.msra.mxu0 0.0
      %871 = vmatprep.subr.mxu0 0.0
      %872 = vmatpush1.msra.mxu0 0.0
      %873 = vmatprep.subr.mxu0 0.0
      %874 = vmatpush1.msra.mxu0 0.0
      %875 = vmatprep.subr.mxu0 0.0
      %876 = vmatpush1.msra.mxu0 0.0
      %877 = vmatprep.subr.mxu0 0.0
      %878 = vmatpush1.msra.mxu0 0.0
      %879 = vmatprep.subr.mxu0 0.0
      %880 = vmatpush1.msra.mxu0 0.0
      %881 = vmatprep.subr.mxu0 0.0
      %882 = vmatpush1.msra.mxu0 0.0
      %883 = vmatprep.subr.mxu0 0.0
      %884 = vmatpush1.msra.mxu0 0.0
      %885 = vmatprep.subr.mxu0 0.0
      %886 = vmatpush1.msra.mxu0 0.0
      %887 = vmatprep.subr.mxu0 0.0
      %888 = vmatpush1.msra.mxu0 0.0
      %889 = vmatprep.subr.mxu0 0.0
      %890 = vmatpush1.msra.mxu0 0.0
      %891 = vmatprep.subr.mxu0 0.0
      %892 = vmatpush1.msra.mxu0 0.0
      %893 = vmatprep.subr.mxu0 0.0
      %894 = vmatpush1.msra.mxu0 0.0
      %895 = vmatprep.subr.mxu0 0.0
      %896 = vmatpush1.msra.mxu0 0.0
      %897 = vmatprep.subr.mxu0 0.0
      %898 = vmatpush1.msra.mxu0 0.0
      %899 = vmatprep.subr.mxu0 0.0
      %900 = vmatpush1.msra.mxu0 0.0
      %901 = vmatprep.subr.mxu0 0.0
      %902 = vmatpush1.msra.mxu0 0.0
      %903 = vmatprep.subr.mxu0 0.0
      %904 = vmatpush1.msra.mxu0 0.0
      %905 = vmatprep.subr.mxu0 0.0
      %906 = vmatpush1.msra.mxu0 0.0
      %907 = vmatprep.subr.mxu0 0.0
      %908 = vmatpush1.msra.mxu0 0.0
      %909 = vmatprep.subr.mxu0 0.0
      %910 = vmatpush1.msra.mxu0 0.0
      %911 = vmatprep.subr.mxu0 0.0
      %912 = vmatpush1.msra.mxu0 0.0
      %913 = vmatprep.subr.mxu0 0.0
      %914 = vmatpush1.msra.mxu0 0.0
      %915 = vmatprep.subr.mxu0 0.0
      %916 = vmatpush1.msra.mxu0 0.0
      %917 = vmatprep.mubr.f32.mxu0 0.0
      %918 = vmatmul.mubr.f32.gmra.mrb[0].mxu0 %v851
      %v919 = vpop.f32.mrb[0].mxu0
      %v920 = vadd.f32 0.0, %v919
      %v921 = vpop.f32.mrb[0].mxu0
      %922 = vdwg.mxu0
      %v923 = vadd.f32 %v846, %v920
      %v924 = vld [vmem:[#allocation5] sm:$0x3]
      %v925 = vxor.u32 %v923, 2147483648
      %v926 = vmul.f32 %v925, 1.442695
      %v927 = vpow.pop %v926
      %v928 = vadd.f32 %v927, 1.0
      %v929 = vrcp.pop %v928
      %v930 = vmul.f32 1.0, %v929
      %v931 = vtanh.pop %v923
      %933 = vrot.lane.b32.xlu0 %v924, 16
      %v934 = vpop.permute.xlu0 %933
      %v936 = vmul.f32 %v930, %v934
      %938 = vrot.lane.b32.xlu0 %v931, 96
      %v939 = vpop.permute.xlu0 %938
      %v941 = vmul.f32 %v930, %v939
      %943 = vrot.lane.b32.xlu0 %v941, 16
      %v944 = vpop.permute.xlu0 %943
      %v946 = vadd.f32 %v936, %v944
      %v947 = vtanh.pop %v946
      %949 = vrot.lane.b32.xlu0 %v947, 32
      %v950 = vpop.permute.xlu0 %949
      %v952 = vmul.f32 %v930, %v950
      %954 = vrot.lane.b32.xlu0 %v952, 80
      %v955 = vpop.permute.xlu0 %954
      %957 = vst.msk [vmem:[#allocation4] sm:$0x3] %vm758, %v955
      %959 = vrot.lane.b32.xlu0 %v946, 112
      %v960 = vpop.permute.xlu0 %959
      %962 = vst.msk [vmem:[#allocation5] sm:$0x3] %vm758, %v960
      %v963 = vld [vmem:[%s9] sm:$0xff]
      %v964 = vld [vmem:[%s9 + $0x8] sm:$0xff]
      %v965 = vld [vmem:[%s10] sm:$0x1]
      %v967 = vlaneseq
      %v968 = vshrl.u32 %v967, 7
      %v969 = vsub.s32 0, %v968
      %v970 = vrot.slane %v965, %v969
      %v972 = vsel %vm573, %v955, 0
      %974 = vmatprep.subr.mxu0 0.0
      %975 = vmatpush1.msra.mxu0 %v963
      %976 = vmatprep.subr.mxu0 0.0
      %977 = vmatpush1.msra.mxu0 %v964
      %978 = vmatprep.subr.mxu0 0.0
      %979 = vmatpush1.msra.mxu0 0.0
      %980 = vmatprep.subr.mxu0 0.0
      %981 = vmatpush1.msra.mxu0 0.0
      %982 = vmatprep.subr.mxu0 0.0
      %983 = vmatpush1.msra.mxu0 0.0
      %984 = vmatprep.subr.mxu0 0.0
      %985 = vmatpush1.msra.mxu0 0.0
      %986 = vmatprep.subr.mxu0 0.0
      %987 = vmatpush1.msra.mxu0 0.0
      %988 = vmatprep.subr.mxu0 0.0
      %989 = vmatpush1.msra.mxu0 0.0
      %990 = vmatprep.subr.mxu0 0.0
      %991 = vmatpush1.msra.mxu0 0.0
      %992 = vmatprep.subr.mxu0 0.0
      %993 = vmatpush1.msra.mxu0 0.0
      %994 = vmatprep.subr.mxu0 0.0
      %995 = vmatpush1.msra.mxu0 0.0
      %996 = vmatprep.subr.mxu0 0.0
      %997 = vmatpush1.msra.mxu0 0.0
      %998 = vmatprep.subr.mxu0 0.0
      %999 = vmatpush1.msra.mxu0 0.0
      %1000 = vmatprep.subr.mxu0 0.0
      %1001 = vmatpush1.msra.mxu0 0.0
      %1002 = vmatprep.subr.mxu0 0.0
      %1003 = vmatpush1.msra.mxu0 0.0
      %1004 = vmatprep.subr.mxu0 0.0
      %1005 = vmatpush1.msra.mxu0 0.0
      %1006 = vmatprep.subr.mxu0 0.0
      %1007 = vmatpush1.msra.mxu0 0.0
      %1008 = vmatprep.subr.mxu0 0.0
      %1009 = vmatpush1.msra.mxu0 0.0
      %1010 = vmatprep.subr.mxu0 0.0
      %1011 = vmatpush1.msra.mxu0 0.0
      %1012 = vmatprep.subr.mxu0 0.0
      %1013 = vmatpush1.msra.mxu0 0.0
      %1014 = vmatprep.subr.mxu0 0.0
      %1015 = vmatpush1.msra.mxu0 0.0
      %1016 = vmatprep.subr.mxu0 0.0
      %1017 = vmatpush1.msra.mxu0 0.0
      %1018 = vmatprep.subr.mxu0 0.0
      %1019 = vmatpush1.msra.mxu0 0.0
      %1020 = vmatprep.subr.mxu0 0.0
      %1021 = vmatpush1.msra.mxu0 0.0
      %1022 = vmatprep.subr.mxu0 0.0
      %1023 = vmatpush1.msra.mxu0 0.0
      %1024 = vmatprep.subr.mxu0 0.0
      %1025 = vmatpush1.msra.mxu0 0.0
      %1026 = vmatprep.subr.mxu0 0.0
      %1027 = vmatpush1.msra.mxu0 0.0
      %1028 = vmatprep.subr.mxu0 0.0
      %1029 = vmatpush1.msra.mxu0 0.0
      %1030 = vmatprep.subr.mxu0 0.0
      %1031 = vmatpush1.msra.mxu0 0.0
      %1032 = vmatprep.subr.mxu0 0.0
      %1033 = vmatpush1.msra.mxu0 0.0
      %1034 = vmatprep.subr.mxu0 0.0
      %1035 = vmatpush1.msra.mxu0 0.0
      %1036 = vmatprep.subr.mxu0 0.0
      %1037 = vmatpush1.msra.mxu0 0.0
      %1038 = vmatprep.mubr.f32.mxu0 0.0
      %1039 = vmatmul.mubr.f32.gmra.mrb[0].mxu0 %v972
      %v1040 = vpop.f32.mrb[0].mxu0
      %v1041 = vadd.f32 %v970, %v1040
      %v1042 = vpop.f32.mrb[0].mxu0
      %1043 = vdwg.mxu0
      %v1044 = vld [vmem:[#allocation6] sm:$0xff]
      %v1045 = vld [vmem:[%s11] sm:$0x1]
      %1047 = vset.pattern.permute.xlu0 0
      %1048 = vperm.xlu0 %1047, %v1044
      %v1049 = vpop.permute.xlu0 %1048
      %v1051 = vlaneseq
      %v1052 = vshrl.u32 %v1051, 7
      %v1053 = vsub.s32 0, %v1052
      %v1054 = vrot.slane %v1045, %v1053
      %v1055 = vmul.f32 %v1049, %v1054
      %v1056 = vld [vmem:[#allocation6 + $0x1] sm:$0xff]
      %v1057 = vld [vmem:[%s11 + $0x1] sm:$0x1]
      %1059 = vset.pattern.permute.xlu0 0
      %1060 = vperm.xlu0 %1059, %v1056
      %v1061 = vpop.permute.xlu0 %1060
      %v1063 = vlaneseq
      %v1064 = vshrl.u32 %v1063, 7
      %v1065 = vsub.s32 0, %v1064
      %v1066 = vrot.slane %v1057, %v1065
      %v1067 = vmul.f32 %v1061, %v1066
      %v1068 = vadd.f32 %v1055, %v1067
      %v1069 = vld [vmem:[#allocation6 + $0x2] sm:$0xff]
      %v1070 = vld [vmem:[%s11 + $0x2] sm:$0x1]
      %1072 = vset.pattern.permute.xlu0 0
      %1073 = vperm.xlu0 %1072, %v1069
      %v1074 = vpop.permute.xlu0 %1073
      %v1076 = vlaneseq
      %v1077 = vshrl.u32 %v1076, 7
      %v1078 = vsub.s32 0, %v1077
      %v1079 = vrot.slane %v1070, %v1078
      %v1080 = vmul.f32 %v1074, %v1079
      %v1081 = vadd.f32 %v1068, %v1080
      %v1082 = vld [vmem:[#allocation6 + $0x3] sm:$0xff]
      %v1083 = vld [vmem:[%s11 + $0x3] sm:$0x1]
      %1085 = vset.pattern.permute.xlu0 0
      %1086 = vperm.xlu0 %1085, %v1082
      %v1087 = vpop.permute.xlu0 %1086
      %v1089 = vlaneseq
      %v1090 = vshrl.u32 %v1089, 7
      %v1091 = vsub.s32 0, %v1090
      %v1092 = vrot.slane %v1083, %v1091
      %v1093 = vmul.f32 %v1087, %v1092
      %v1094 = vadd.f32 %v1081, %v1093
      %v1095 = vld [vmem:[#allocation6 + $0x4] sm:$0xff]
      %v1096 = vld [vmem:[%s11 + $0x4] sm:$0x1]
      %1098 = vset.pattern.permute.xlu0 0
      %1099 = vperm.xlu0 %1098, %v1095
      %v1100 = vpop.permute.xlu0 %1099
      %v1102 = vlaneseq
      %v1103 = vshrl.u32 %v1102, 7
      %v1104 = vsub.s32 0, %v1103
      %v1105 = vrot.slane %v1096, %v1104
      %v1106 = vmul.f32 %v1100, %v1105
      %v1107 = vadd.f32 %v1094, %v1106
      %v1108 = vld [vmem:[%s12] sm:$0xff]
      %vm1109 = vcmask 64512
      %v1111 = vsel %vm1109, %v1107, 0
      %1113 = vmatprep.subr.mxu0 0.0
      %1114 = vmatpush1.msra.mxu0 %v1108
      %1115 = vmatprep.subr.mxu0 0.0
      %1116 = vmatpush1.msra.mxu0 0.0
      %1117 = vmatprep.subr.mxu0 0.0
      %1118 = vmatpush1.msra.mxu0 0.0
      %1119 = vmatprep.subr.mxu0 0.0
      %1120 = vmatpush1.msra.mxu0 0.0
      %1121 = vmatprep.subr.mxu0 0.0
      %1122 = vmatpush1.msra.mxu0 0.0
      %1123 = vmatprep.subr.mxu0 0.0
      %1124 = vmatpush1.msra.mxu0 0.0
      %1125 = vmatprep.subr.mxu0 0.0
      %1126 = vmatpush1.msra.mxu0 0.0
      %1127 = vmatprep.subr.mxu0 0.0
      %1128 = vmatpush1.msra.mxu0 0.0
      %1129 = vmatprep.subr.mxu0 0.0
      %1130 = vmatpush1.msra.mxu0 0.0
      %1131 = vmatprep.subr.mxu0 0.0
      %1132 = vmatpush1.msra.mxu0 0.0
      %1133 = vmatprep.subr.mxu0 0.0
      %1134 = vmatpush1.msra.mxu0 0.0
      %1135 = vmatprep.subr.mxu0 0.0
      %1136 = vmatpush1.msra.mxu0 0.0
      %1137 = vmatprep.subr.mxu0 0.0
      %1138 = vmatpush1.msra.mxu0 0.0
      %1139 = vmatprep.subr.mxu0 0.0
      %1140 = vmatpush1.msra.mxu0 0.0
      %1141 = vmatprep.subr.mxu0 0.0
      %1142 = vmatpush1.msra.mxu0 0.0
      %1143 = vmatprep.subr.mxu0 0.0
      %1144 = vmatpush1.msra.mxu0 0.0
      %1145 = vmatprep.subr.mxu0 0.0
      %1146 = vmatpush1.msra.mxu0 0.0
      %1147 = vmatprep.subr.mxu0 0.0
      %1148 = vmatpush1.msra.mxu0 0.0
      %1149 = vmatprep.subr.mxu0 0.0
      %1150 = vmatpush1.msra.mxu0 0.0
      %1151 = vmatprep.subr.mxu0 0.0
      %1152 = vmatpush1.msra.mxu0 0.0
      %1153 = vmatprep.subr.mxu0 0.0
      %1154 = vmatpush1.msra.mxu0 0.0
      %1155 = vmatprep.subr.mxu0 0.0
      %1156 = vmatpush1.msra.mxu0 0.0
      %1157 = vmatprep.subr.mxu0 0.0
      %1158 = vmatpush1.msra.mxu0 0.0
      %1159 = vmatprep.subr.mxu0 0.0
      %1160 = vmatpush1.msra.mxu0 0.0
      %1161 = vmatprep.subr.mxu0 0.0
      %1162 = vmatpush1.msra.mxu0 0.0
      %1163 = vmatprep.subr.mxu0 0.0
      %1164 = vmatpush1.msra.mxu0 0.0
      %1165 = vmatprep.subr.mxu0 0.0
      %1166 = vmatpush1.msra.mxu0 0.0
      %1167 = vmatprep.subr.mxu0 0.0
      %1168 = vmatpush1.msra.mxu0 0.0
      %1169 = vmatprep.subr.mxu0 0.0
      %1170 = vmatpush1.msra.mxu0 0.0
      %1171 = vmatprep.subr.mxu0 0.0
      %1172 = vmatpush1.msra.mxu0 0.0
      %1173 = vmatprep.subr.mxu0 0.0
      %1174 = vmatpush1.msra.mxu0 0.0
      %1175 = vmatprep.subr.mxu0 0.0
      %1176 = vmatpush1.msra.mxu0 0.0
      %1177 = vmatprep.mubr.f32.mxu0 0.0
      %1178 = vmatmul.mubr.f32.gmra.mrb[0].mxu0 %v1111
      %v1179 = vpop.f32.mrb[0].mxu0
      %v1180 = vadd.f32 0.0, %v1179
      %v1181 = vpop.f32.mrb[0].mxu0
      %1182 = vdwg.mxu0
      %v1183 = vld [vmem:[%s2] sm:$0xff]
      %v1184 = vlaneseq
      %v1185 = vshrl.u32 %v1184, 7
      %v1186 = vsub.s32 0, %v1185
      %v1187 = vrot.slane %v1041, %v1186
      %v1188 = vadd.f32 %v1187, %v1183
      %v1189 = vadd.f32 %v1188, %v1180
      %v1190 = vtanh.pop %v1189
      %v1191 = vld [vmem:[%s13] sm:$0x1]
      %v1193 = vlaneseq
      %v1194 = vshrl.u32 %v1193, 7
      %v1195 = vsub.s32 0, %v1194
      %v1196 = vrot.slane %v1191, %v1195
      %v1198 = vmul.f32 %v1190, %v1196
      %v1199 = vsel %vm573, %v1198, 0.0
      %1200 = vadd.xlane.f32.xlu0 %v1199
      %v1201 = vpop.xlane.xlu0 %1200
      %v1202 = vld [vmem:[%s3] sm:$0xff]
      %vm1203 = vcmp.gt.f32.partialorder %v1202, 0.5
      %v1204 = vsel %vm1203, -1e+30, %v1201
      %vm1205 = vcmask 7168
      %v1206 = vsel %vm1205, %v1204, -inf
      %v1207 = vrot.slane %v1206, 4
      %v1208 = vmax.f32 %v1206, %v1207
      %v1209 = vrot.slane %v1208, 2
      %v1210 = vmax.f32 %v1208, %v1209
      %v1211 = vrot.slane %v1210, 1
      %v1212 = vmax.f32 %v1210, %v1211
      %v1213 = vsub.f32 %v1204, %v1212
      %v1214 = vmul.f32 %v1213, 1.442695
      %v1215 = vpow.pop %v1214
      %v1216 = vsel %vm1205, %v1215, 0.0
      %v1217 = vrot.slane %v1216, 4
      %v1218 = vadd.f32 %v1216, %v1217
      %v1219 = vrot.slane %v1218, 2
      %v1220 = vadd.f32 %v1218, %v1219
      %v1221 = vrot.slane %v1220, 1
      %v1222 = vadd.f32 %v1220, %v1221
      %v1223 = vrcp.pop %v1222
      %v1224 = vmul.f32 %v1215, %v1223
      %1225 = vst.msk [vmem:[#allocation8] sm:$0xff] %vm1205, %v1224
      %v1226 = vld [vmem:[%s1] sm:$0xff]
      %1228 = vset.pattern.permute.xlu0 0
      %1229 = vperm.xlu0 %1228, %v1224
      %v1230 = vpop.permute.xlu0 %1229
      %v1232 = vmul.f32 %v1226, %v1230
      %v1233 = vsel %vm573, %v1232, 0.0
      %v1234 = vrot.slane %v1233, 4
      %v1235 = vadd.f32 %v1233, %v1234
      %v1236 = vrot.slane %v1235, 2
      %v1237 = vadd.f32 %v1235, %v1236
      %v1238 = vrot.slane %v1237, 1
      %v1239 = vadd.f32 %v1237, %v1238
      %vm1240 = vcmask 122880
      %1241 = vst.msk [vmem:[#allocation7] sm:$0x1] %vm1240, %v1239
      %v1242 = vld [vmem:[#allocation6] sm:$0xff]
      %v1243 = vld [vmem:[%s11] sm:$0x1]
      %1245 = vset.pattern.permute.xlu0 1
      %1246 = vperm.xlu0 %1245, %v1242
      %v1247 = vpop.permute.xlu0 %1246
      %v1249 = vlaneseq
      %v1250 = vshrl.u32 %v1249, 7
      %v1251 = vsub.s32 0, %v1250
      %v1252 = vrot.slane %v1243, %v1251
      %v1253 = vmul.f32 %v1247, %v1252
      %v1254 = vld [vmem:[#allocation6 + $0x1] sm:$0xff]
      %v1255 = vld [vmem:[%s11 + $0x1] sm:$0x1]
      %1257 = vset.pattern.permute.xlu0 1
      %1258 = vperm.xlu0 %1257, %v1254
      %v1259 = vpop.permute.xlu0 %1258
      %v1261 = vlaneseq
      %v1262 = vshrl.u32 %v1261, 7
      %v1263 = vsub.s32 0, %v1262
      %v1264 = vrot.slane %v1255, %v1263
      %v1265 = vmul.f32 %v1259, %v1264
      %v1266 = vadd.f32 %v1253, %v1265
      %v1267 = vld [vmem:[#allocation6 + $0x2] sm:$0xff]
      %v1268 = vld [vmem:[%s11 + $0x2] sm:$0x1]
      %1270 = vset.pattern.permute.xlu0 1
      %1271 = vperm.xlu0 %1270, %v1267
      %v1272 = vpop.permute.xlu0 %1271
      %v1274 = vlaneseq
      %v1275 = vshrl.u32 %v1274, 7
      %v1276 = vsub.s32 0, %v1275
      %v1277 = vrot.slane %v1268, %v1276
      %v1278 = vmul.f32 %v1272, %v1277
      %v1279 = vadd.f32 %v1266, %v1278
      %v1280 = vld [vmem:[#allocation6 + $0x3] sm:$0xff]
      %v1281 = vld [vmem:[%s11 + $0x3] sm:$0x1]
      %1283 = vset.pattern.permute.xlu0 1
      %1284 = vperm.xlu0 %1283, %v1280
      %v1285 = vpop.permute.xlu0 %1284
      %v1287 = vlaneseq
      %v1288 = vshrl.u32 %v1287, 7
      %v1289 = vsub.s32 0, %v1288
      %v1290 = vrot.slane %v1281, %v1289
      %v1291 = vmul.f32 %v1285, %v1290
      %v1292 = vadd.f32 %v1279, %v1291
      %v1293 = vld [vmem:[#allocation6 + $0x4] sm:$0xff]
      %v1294 = vld [vmem:[%s11 + $0x4] sm:$0x1]
      %1296 = vset.pattern.permute.xlu0 1
      %1297 = vperm.xlu0 %1296, %v1293
      %v1298 = vpop.permute.xlu0 %1297
      %v1300 = vlaneseq
      %v1301 = vshrl.u32 %v1300, 7
      %v1302 = vsub.s32 0, %v1301
      %v1303 = vrot.slane %v1294, %v1302
      %v1304 = vmul.f32 %v1298, %v1303
      %v1305 = vadd.f32 %v1292, %v1304
      %v1306 = vld [vmem:[%s12] sm:$0xff]
      %v1308 = vsel %vm1109, %v1305, 0
      %1310 = vmatprep.subr.mxu0 0.0
      %1311 = vmatpush1.msra.mxu0 %v1306
      %1312 = vmatprep.subr.mxu0 0.0
      %1313 = vmatpush1.msra.mxu0 0.0
      %1314 = vmatprep.subr.mxu0 0.0
      %1315 = vmatpush1.msra.mxu0 0.0
      %1316 = vmatprep.subr.mxu0 0.0
      %1317 = vmatpush1.msra.mxu0 0.0
      %1318 = vmatprep.subr.mxu0 0.0
      %1319 = vmatpush1.msra.mxu0 0.0
      %1320 = vmatprep.subr.mxu0 0.0
      %1321 = vmatpush1.msra.mxu0 0.0
      %1322 = vmatprep.subr.mxu0 0.0
      %1323 = vmatpush1.msra.mxu0 0.0
      %1324 = vmatprep.subr.mxu0 0.0
      %1325 = vmatpush1.msra.mxu0 0.0
      %1326 = vmatprep.subr.mxu0 0.0
      %1327 = vmatpush1.msra.mxu0 0.0
      %1328 = vmatprep.subr.mxu0 0.0
      %1329 = vmatpush1.msra.mxu0 0.0
      %1330 = vmatprep.subr.mxu0 0.0
      %1331 = vmatpush1.msra.mxu0 0.0
      %1332 = vmatprep.subr.mxu0 0.0
      %1333 = vmatpush1.msra.mxu0 0.0
      %1334 = vmatprep.subr.mxu0 0.0
      %1335 = vmatpush1.msra.mxu0 0.0
      %1336 = vmatprep.subr.mxu0 0.0
      %1337 = vmatpush1.msra.mxu0 0.0
      %1338 = vmatprep.subr.mxu0 0.0
      %1339 = vmatpush1.msra.mxu0 0.0
      %1340 = vmatprep.subr.mxu0 0.0
      %1341 = vmatpush1.msra.mxu0 0.0
      %1342 = vmatprep.subr.mxu0 0.0
      %1343 = vmatpush1.msra.mxu0 0.0
      %1344 = vmatprep.subr.mxu0 0.0
      %1345 = vmatpush1.msra.mxu0 0.0
      %1346 = vmatprep.subr.mxu0 0.0
      %1347 = vmatpush1.msra.mxu0 0.0
      %1348 = vmatprep.subr.mxu0 0.0
      %1349 = vmatpush1.msra.mxu0 0.0
      %1350 = vmatprep.subr.mxu0 0.0
      %1351 = vmatpush1.msra.mxu0 0.0
      %1352 = vmatprep.subr.mxu0 0.0
      %1353 = vmatpush1.msra.mxu0 0.0
      %1354 = vmatprep.subr.mxu0 0.0
      %1355 = vmatpush1.msra.mxu0 0.0
      %1356 = vmatprep.subr.mxu0 0.0
      %1357 = vmatpush1.msra.mxu0 0.0
      %1358 = vmatprep.subr.mxu0 0.0
      %1359 = vmatpush1.msra.mxu0 0.0
      %1360 = vmatprep.subr.mxu0 0.0
      %1361 = vmatpush1.msra.mxu0 0.0
      %1362 = vmatprep.subr.mxu0 0.0
      %1363 = vmatpush1.msra.mxu0 0.0
      %1364 = vmatprep.subr.mxu0 0.0
      %1365 = vmatpush1.msra.mxu0 0.0
      %1366 = vmatprep.subr.mxu0 0.0
      %1367 = vmatpush1.msra.mxu0 0.0
      %1368 = vmatprep.subr.mxu0 0.0
      %1369 = vmatpush1.msra.mxu0 0.0
      %1370 = vmatprep.subr.mxu0 0.0
      %1371 = vmatpush1.msra.mxu0 0.0
      %1372 = vmatprep.subr.mxu0 0.0
      %1373 = vmatpush1.msra.mxu0 0.0
      %1374 = vmatprep.mubr.f32.mxu0 0.0
      %1375 = vmatmul.mubr.f32.gmra.mrb[0].mxu0 %v1308
      %v1376 = vpop.f32.mrb[0].mxu0
      %v1377 = vadd.f32 0.0, %v1376
      %v1378 = vpop.f32.mrb[0].mxu0
      %1379 = vdwg.mxu0
      %s1380 = scalar_lea.vmem %s2, 8
      %v1381 = vld [vmem:[%s1380] sm:$0xff]
      %v1382 = vlaneseq
      %v1383 = vshrl.u32 %v1382, 7
      %v1384 = vsub.s32 1, %v1383
      %v1385 = vrot.slane %v1041, %v1384
      %v1386 = vadd.f32 %v1385, %v1381
      %v1387 = vadd.f32 %v1386, %v1377
      %v1388 = vtanh.pop %v1387
      %v1389 = vld [vmem:[%s13] sm:$0x1]
      %v1391 = vlaneseq
      %v1392 = vshrl.u32 %v1391, 7
      %v1393 = vsub.s32 0, %v1392
      %v1394 = vrot.slane %v1389, %v1393
      %v1396 = vmul.f32 %v1388, %v1394
      %v1397 = vsel %vm573, %v1396, 0.0
      %1398 = vadd.xlane.f32.xlu0 %v1397
      %v1399 = vpop.xlane.xlu0 %1398
      %v1400 = vld [vmem:[%s3] sm:$0xff]
      %vm1401 = vcmp.gt.f32.partialorder %v1400, 0.5
      %v1402 = vsel %vm1401, -1e+30, %v1399
      %vm1403 = vcmask 15368
      %v1404 = vsel %vm1403, %v1402, -inf
      %v1405 = vrot.slane %v1404, 4
      %v1406 = vmax.f32 %v1404, %v1405
      %v1407 = vrot.slane %v1406, 2
      %v1408 = vmax.f32 %v1406, %v1407
      %v1409 = vrot.slane %v1408, 1
      %v1410 = vmax.f32 %v1408, %v1409
      %v1411 = vsub.f32 %v1402, %v1410
      %v1412 = vmul.f32 %v1411, 1.442695
      %v1413 = vpow.pop %v1412
      %v1414 = vsel %vm1403, %v1413, 0.0
      %v1415 = vrot.slane %v1414, 4
      %v1416 = vadd.f32 %v1414, %v1415
      %v1417 = vrot.slane %v1416, 2
      %v1418 = vadd.f32 %v1416, %v1417
      %v1419 = vrot.slane %v1418, 1
      %v1420 = vadd.f32 %v1418, %v1419
      %v1421 = vrcp.pop %v1420
      %v1422 = vmul.f32 %v1413, %v1421
      %1423 = vst.msk [vmem:[#allocation8] sm:$0xff] %vm1403, %v1422
      %s1424 = scalar_lea.vmem %s1, 8
      %v1425 = vld [vmem:[%s1424] sm:$0xff]
      %1427 = vset.pattern.permute.xlu0 1
      %1428 = vperm.xlu0 %1427, %v1422
      %v1429 = vpop.permute.xlu0 %1428
      %v1431 = vmul.f32 %v1425, %v1429
      %v1432 = vsel %vm573, %v1431, 0.0
      %v1433 = vrot.slane %v1432, 4
      %v1434 = vadd.f32 %v1432, %v1433
      %v1435 = vrot.slane %v1434, 2
      %v1436 = vadd.f32 %v1434, %v1435
      %v1437 = vrot.slane %v1436, 1
      %v1438 = vadd.f32 %v1436, %v1437
      %1439 = vst.msk [vmem:[#allocation7 + $0x1] sm:$0x1] %vm1240, %v1438
      %v1440 = vld [vmem:[#allocation8] sm:$0xff]
      %v1441 = vld [vmem:[#allocation7] sm:$0x3]
      %v1442 = vld [vmem:[#allocation6 + $0x2] sm:$0xff]
      %v1443 = vadd.f32 %v1442, %v1440
      %vm1444 = vcmask 15360
      %1445 = vst.msk [vmem:[#allocation6 + $0x2] sm:$0xff] %vm1444, %v1443
      %v1446 = vld [vmem:[%s14] sm:$0xff]
      %v1447 = vld [vmem:[%s14 + $0x8] sm:$0xff]
      %v1448 = vld [vmem:[%s14 + $0x10] sm:$0xff]
      %v1449 = vld [vmem:[%s14 + $0x18] sm:$0xff]
      %v1451 = vsel %vm573, %v1441, 0
      %1453 = vmatprep.subr.mxu0 0.0
      %1454 = vmatpush1.msra.mxu0 %v1448
      %1455 = vmatprep.subr.mxu0 0.0
      %1456 = vmatpush1.msra.mxu0 %v1449
      %1457 = vmatprep.subr.mxu0 0.0
      %1458 = vmatpush1.msra.mxu0 0.0
      %1459 = vmatprep.subr.mxu0 0.0
      %1460 = vmatpush1.msra.mxu0 0.0
      %1461 = vmatprep.subr.mxu0 0.0
      %1462 = vmatpush1.msra.mxu0 0.0
      %1463 = vmatprep.subr.mxu0 0.0
      %1464 = vmatpush1.msra.mxu0 0.0
      %1465 = vmatprep.subr.mxu0 0.0
      %1466 = vmatpush1.msra.mxu0 0.0
      %1467 = vmatprep.subr.mxu0 0.0
      %1468 = vmatpush1.msra.mxu0 0.0
      %1469 = vmatprep.subr.mxu0 0.0
      %1470 = vmatpush1.msra.mxu0 0.0
      %1471 = vmatprep.subr.mxu0 0.0
      %1472 = vmatpush1.msra.mxu0 0.0
      %1473 = vmatprep.subr.mxu0 0.0
      %1474 = vmatpush1.msra.mxu0 0.0
      %1475 = vmatprep.subr.mxu0 0.0
      %1476 = vmatpush1.msra.mxu0 0.0
      %1477 = vmatprep.subr.mxu0 0.0
      %1478 = vmatpush1.msra.mxu0 0.0
      %1479 = vmatprep.subr.mxu0 0.0
      %1480 = vmatpush1.msra.mxu0 0.0
      %1481 = vmatprep.subr.mxu0 0.0
      %1482 = vmatpush1.msra.mxu0 0.0
      %1483 = vmatprep.subr.mxu0 0.0
      %1484 = vmatpush1.msra.mxu0 0.0
      %1485 = vmatprep.subr.mxu0 0.0
      %1486 = vmatpush1.msra.mxu0 0.0
      %1487 = vmatprep.subr.mxu0 0.0
      %1488 = vmatpush1.msra.mxu0 0.0
      %1489 = vmatprep.subr.mxu0 0.0
      %1490 = vmatpush1.msra.mxu0 0.0
      %1491 = vmatprep.subr.mxu0 0.0
      %1492 = vmatpush1.msra.mxu0 0.0
      %1493 = vmatprep.subr.mxu0 0.0
      %1494 = vmatpush1.msra.mxu0 0.0
      %1495 = vmatprep.subr.mxu0 0.0
      %1496 = vmatpush1.msra.mxu0 0.0
      %1497 = vmatprep.subr.mxu0 0.0
      %1498 = vmatpush1.msra.mxu0 0.0
      %1499 = vmatprep.subr.mxu0 0.0
      %1500 = vmatpush1.msra.mxu0 0.0
      %1501 = vmatprep.subr.mxu0 0.0
      %1502 = vmatpush1.msra.mxu0 0.0
      %1503 = vmatprep.subr.mxu0 0.0
      %1504 = vmatpush1.msra.mxu0 0.0
      %1505 = vmatprep.subr.mxu0 0.0
      %1506 = vmatpush1.msra.mxu0 0.0
      %1507 = vmatprep.subr.mxu0 0.0
      %1508 = vmatpush1.msra.mxu0 0.0
      %1509 = vmatprep.subr.mxu0 0.0
      %1510 = vmatpush1.msra.mxu0 0.0
      %1511 = vmatprep.subr.mxu0 0.0
      %1512 = vmatpush1.msra.mxu0 0.0
      %1513 = vmatprep.subr.mxu0 0.0
      %1514 = vmatpush1.msra.mxu0 0.0
      %1515 = vmatprep.subr.mxu0 0.0
      %1516 = vmatpush1.msra.mxu0 0.0
      %1517 = vmatprep.mubr.f32.mxu0 0.0
      %1518 = vmatmul.mubr.f32.gmra.mrb[0].mxu0 %v1451
      %v1519 = vpop.f32.mrb[0].mxu0
      %v1520 = vadd.f32 0.0, %v1519
      %v1521 = vpop.f32.mrb[0].mxu0
      %1522 = vdwg.mxu0
      %1523 = vmatprep.subr.mxu0 0.0
      %1524 = vmatpush1.msra.mxu0 %v1446
      %1525 = vmatprep.subr.mxu0 0.0
      %1526 = vmatpush1.msra.mxu0 %v1447
      %1527 = vmatprep.subr.mxu0 0.0
      %1528 = vmatpush1.msra.mxu0 0.0
      %1529 = vmatprep.subr.mxu0 0.0
      %1530 = vmatpush1.msra.mxu0 0.0
      %1531 = vmatprep.subr.mxu0 0.0
      %1532 = vmatpush1.msra.mxu0 0.0
      %1533 = vmatprep.subr.mxu0 0.0
      %1534 = vmatpush1.msra.mxu0 0.0
      %1535 = vmatprep.subr.mxu0 0.0
      %1536 = vmatpush1.msra.mxu0 0.0
      %1537 = vmatprep.subr.mxu0 0.0
      %1538 = vmatpush1.msra.mxu0 0.0
      %1539 = vmatprep.subr.mxu0 0.0
      %1540 = vmatpush1.msra.mxu0 0.0
      %1541 = vmatprep.subr.mxu0 0.0
      %1542 = vmatpush1.msra.mxu0 0.0
      %1543 = vmatprep.subr.mxu0 0.0
      %1544 = vmatpush1.msra.mxu0 0.0
      %1545 = vmatprep.subr.mxu0 0.0
      %1546 = vmatpush1.msra.mxu0 0.0
      %1547 = vmatprep.subr.mxu0 0.0
      %1548 = vmatpush1.msra.mxu0 0.0
      %1549 = vmatprep.subr.mxu0 0.0
      %1550 = vmatpush1.msra.mxu0 0.0
      %1551 = vmatprep.subr.mxu0 0.0
      %1552 = vmatpush1.msra.mxu0 0.0
      %1553 = vmatprep.subr.mxu0 0.0
      %1554 = vmatpush1.msra.mxu0 0.0
      %1555 = vmatprep.subr.mxu0 0.0
      %1556 = vmatpush1.msra.mxu0 0.0
      %1557 = vmatprep.subr.mxu0 0.0
      %1558 = vmatpush1.msra.mxu0 0.0
      %1559 = vmatprep.subr.mxu0 0.0
      %1560 = vmatpush1.msra.mxu0 0.0
      %1561 = vmatprep.subr.mxu0 0.0
      %1562 = vmatpush1.msra.mxu0 0.0
      %1563 = vmatprep.subr.mxu0 0.0
      %1564 = vmatpush1.msra.mxu0 0.0
      %1565 = vmatprep.subr.mxu0 0.0
      %1566 = vmatpush1.msra.mxu0 0.0
      %1567 = vmatprep.subr.mxu0 0.0
      %1568 = vmatpush1.msra.mxu0 0.0
      %1569 = vmatprep.subr.mxu0 0.0
      %1570 = vmatpush1.msra.mxu0 0.0
      %1571 = vmatprep.subr.mxu0 0.0
      %1572 = vmatpush1.msra.mxu0 0.0
      %1573 = vmatprep.subr.mxu0 0.0
      %1574 = vmatpush1.msra.mxu0 0.0
      %1575 = vmatprep.subr.mxu0 0.0
      %1576 = vmatpush1.msra.mxu0 0.0
      %1577 = vmatprep.subr.mxu0 0.0
      %1578 = vmatpush1.msra.mxu0 0.0
      %1579 = vmatprep.subr.mxu0 0.0
      %1580 = vmatpush1.msra.mxu0 0.0
      %1581 = vmatprep.subr.mxu0 0.0
      %1582 = vmatpush1.msra.mxu0 0.0
      %1583 = vmatprep.subr.mxu0 0.0
      %1584 = vmatpush1.msra.mxu0 0.0
      %1585 = vmatprep.subr.mxu0 0.0
      %1586 = vmatpush1.msra.mxu0 0.0
      %1587 = vmatprep.mubr.f32.mxu0 0.0
      %1588 = vmatmul.mubr.f32.gmra.mrb[0].mxu0 %v972
      %v1589 = vpop.f32.mrb[0].mxu0
      %v1590 = vadd.f32 %v1520, %v1589
      %v1591 = vpop.f32.mrb[0].mxu0
      %1592 = vdwg.mxu0
      %v1593 = vld [vmem:[%s15] sm:$0x1]
      %v1595 = vlaneseq
      %v1596 = vshrl.u32 %v1595, 7
      %v1597 = vsub.s32 0, %v1596
      %v1598 = vrot.slane %v1593, %v1597
      %v1600 = vadd.f32 %v1590, %v1598
      %v1601 = vlaneseq
      %v1602 = vand.u32 %v1601, 127
      %vm1603 = vcmp.lt.s32.totalorder %v1602, 8
      %v1604 = vtanh.pop %v1600
      %v1605 = vsel %vm1603, %v1604, %v1600
      %vm1606 = vcmask 66560
      %1607 = vst.msk [vmem:[%s550] sm:$0x3] %vm1606, %v1605
      %1608 = vst.msk [vmem:[%s554] sm:$0xff] %vm1444, %v1440
      %p1609 = scmp.lt.s32.totalorder %s29, 7
      %s1610 = scalar_select %p1609, %s29, 7
      %s1611 = smul.addr %s1610, 2
      %s1612 = scalar_lea.vmem %s16, %s1611
      %p1613 = scmp.lt.s32.totalorder %s29, 7
      %s1614 = scalar_select %p1613, %s29, 7
      %s1615 = smul.addr %s1614, 8
      %s1616 = scalar_lea.vmem %s17, %s1615
      // Predicated region
      $region89: #{tacotron2_forward.23} parent=83 // pred_check
        %p1617 = pneg %p388
      $region90: #{tacotron2_forward.23} parent=83 // pred_check_branch
        %1619 = sbr.rel (%p1617) target = $region92
      $region91: #{tacotron2_forward.23} parent=83 // pred_region
        _
      $region92: #{tacotron2_forward.23} parent=83 // pred_fallthru
        _
      // Predicated region
      $region93: #{tacotron2_forward.23} parent=83 // pred_check
        %p1620 = pneg %p414
      $region94: #{tacotron2_forward.23} parent=83 // pred_check_branch
        %1622 = sbr.rel (%p1620) target = $region96
      $region95: #{tacotron2_forward.23} parent=83 // pred_region
        _
      $region96: #{tacotron2_forward.23} parent=83 // pred_fallthru
        _
    $region84: #{tacotron2_forward.23} parent=5 // pred_fallthru
      _
    %p1623 = scmp.le.s32.totalorder 2, %s24
    // Predicated region
    $region97: #{tacotron2_forward.23} parent=5 // pred_check
      %p1624 = pneg %p1623
    $region98: #{tacotron2_forward.23} parent=5 // pred_check_branch
      %1626 = sbr.rel (%p1624) target = $region100
    $region99: #{tacotron2_forward.23} parent=5 // pred_region
      %s1627 = ssub.s32 %s24, 2
      // Predicated region
      $region101: #{tacotron2_forward.23} parent=99 // pred_check
        %p1628 = pneg %p394
      $region102: #{tacotron2_forward.23} parent=99 // pred_check_branch
        %1630 = sbr.rel (%p1628) target = $region104
      $region103: #{tacotron2_forward.23} parent=99 // pred_region
        %p1631 = scmp.lt.s32.totalorder %s30, 7
        %s1632 = scalar_select %p1631, %s30, 7
        %s1633 = smul.addr %s1632, 2
        %s1634 = scalar_lea.vmem %s16, %s1633
      $region104: #{tacotron2_forward.23} parent=99 // pred_fallthru
        _
      // Predicated region
      $region105: #{tacotron2_forward.23} parent=99 // pred_check
        %p1635 = pneg %p420
      $region106: #{tacotron2_forward.23} parent=99 // pred_check_branch
        %1637 = sbr.rel (%p1635) target = $region108
      $region107: #{tacotron2_forward.23} parent=99 // pred_region
        %p1638 = scmp.lt.s32.totalorder %s30, 7
        %s1639 = scalar_select %p1638, %s30, 7
        %s1640 = smul.addr %s1639, 8
        %s1641 = scalar_lea.vmem %s17, %s1640
      $region108: #{tacotron2_forward.23} parent=99 // pred_fallthru
        _
    $region100: #{tacotron2_forward.23} parent=5 // pred_fallthru
      _
  $region6: #{tacotron2_forward.23} parent=0 // loop_footer
    %s28 = sadd.s32 1, %s24
  $region7: #{tacotron2_forward.23} parent=0 // loop_footer_branch
    %23 = sbr.rel target = $region3
  $region8: #{tacotron2_forward.23} parent=0 // loop_exit
    _

// kernel: tacotron2_forward.27
$region0: #{tacotron2_forward.27}
  #allocation0 [shape = 'u32[]', space=smem, size = 0x4, offset = 0x4, fixed_abs, tag = 'smem constant byte address 0x4 - core index']
  #allocation1 [shape = 'u32[144,128]{1,0:T(1,128)}', space=vmem, size = 0x12000, scoped, tag = 'internal scratch']
  %s0 = inlined_call_operand.vmem [shape: f32[16,16], index: 0, kind: input, shape index: {}]
  %s1 = inlined_call_operand.vmem [shape: f32[16,8], index: 1, kind: input, shape index: {}]
  %s2 = inlined_call_operand.vmem [shape: f32[1,8], index: 2, kind: input, shape index: {}]
  %s3 = inlined_call_operand.vmem [shape: f32[1,8], index: 3, kind: input, shape index: {}]
  %s4 = inlined_call_operand.vmem [shape: f32[1,8], index: 4, kind: input, shape index: {}]
  %s5 = inlined_call_operand.vmem [shape: f32[16,8], index: 5, kind: output, shape index: {}]
  %s6 = sld [smem:[#allocation0]]
  $region30: #{tacotron2_forward.27} parent=0
    _
  %s8 = ssub.s32 1, %s6
  %s9 = scalar_select 0, %s8, %s6
  // Predicated region
  $region2: #{tacotron2_forward.27} parent=0 // pred_check
    _
  $region3: #{tacotron2_forward.27} parent=0 // pred_check_branch
    %11 = sbr.rel (0) target = $region5
  $region4: #{tacotron2_forward.27} parent=0 // pred_region
    _
  $region5: #{tacotron2_forward.27} parent=0 // pred_fallthru
    _
  // Predicated region
  $region6: #{tacotron2_forward.27} parent=0 // pred_check
    _
  $region7: #{tacotron2_forward.27} parent=0 // pred_check_branch
    %13 = sbr.rel (0) target = $region9
  $region8: #{tacotron2_forward.27} parent=0 // pred_region
    _
  $region9: #{tacotron2_forward.27} parent=0 // pred_fallthru
    _
  // Predicated region
  $region10: #{tacotron2_forward.27} parent=0 // pred_check
    _
  $region11: #{tacotron2_forward.27} parent=0 // pred_check_branch
    %15 = sbr.rel (0) target = $region13
  $region12: #{tacotron2_forward.27} parent=0 // pred_region
    _
  $region13: #{tacotron2_forward.27} parent=0 // pred_fallthru
    _
  // Predicated region
  $region14: #{tacotron2_forward.27} parent=0 // pred_check
    _
  $region15: #{tacotron2_forward.27} parent=0 // pred_check_branch
    %17 = sbr.rel (0) target = $region17
  $region16: #{tacotron2_forward.27} parent=0 // pred_region
    _
  $region17: #{tacotron2_forward.27} parent=0 // pred_fallthru
    _
  // Predicated region
  $region18: #{tacotron2_forward.27} parent=0 // pred_check
    _
  $region19: #{tacotron2_forward.27} parent=0 // pred_check_branch
    %19 = sbr.rel (0) target = $region21
  $region20: #{tacotron2_forward.27} parent=0 // pred_region
    _
  $region21: #{tacotron2_forward.27} parent=0 // pred_fallthru
    _
  %v20 = vld [vmem:[%s0] sm:$0xff]
  %v21 = vld [vmem:[%s0 + $0x8] sm:$0xff]
  %v22 = vld [vmem:[%s1] sm:$0xff]
  %v23 = vld [vmem:[%s1 + $0x8] sm:$0xff]
  %v24 = vld [vmem:[%s2] sm:$0x1]
  %v26 = vlaneseq
  %v27 = vshrl.u32 %v26, 7
  %v28 = vsub.s32 0, %v27
  %v29 = vrot.slane %v24, %v28
  %vm31 = vcmask 130048
  %v33 = vsel %vm31, %v20, 0
  %v36 = vsel %vm31, %v21, 0
  %38 = vmatprep.subr.mxu0 0.0
  %39 = vmatpush1.msra.mxu0 %v22
  %40 = vmatprep.subr.mxu0 0.0
  %41 = vmatpush1.msra.mxu0 %v23
  %42 = vmatprep.subr.mxu0 0.0
  %43 = vmatpush1.msra.mxu0 0.0
  %44 = vmatprep.subr.mxu0 0.0
  %45 = vmatpush1.msra.mxu0 0.0
  %46 = vmatprep.subr.mxu0 0.0
  %47 = vmatpush1.msra.mxu0 0.0
  %48 = vmatprep.subr.mxu0 0.0
  %49 = vmatpush1.msra.mxu0 0.0
  %50 = vmatprep.subr.mxu0 0.0
  %51 = vmatpush1.msra.mxu0 0.0
  %52 = vmatprep.subr.mxu0 0.0
  %53 = vmatpush1.msra.mxu0 0.0
  %54 = vmatprep.subr.mxu0 0.0
  %55 = vmatpush1.msra.mxu0 0.0
  %56 = vmatprep.subr.mxu0 0.0
  %57 = vmatpush1.msra.mxu0 0.0
  %58 = vmatprep.subr.mxu0 0.0
  %59 = vmatpush1.msra.mxu0 0.0
  %60 = vmatprep.subr.mxu0 0.0
  %61 = vmatpush1.msra.mxu0 0.0
  %62 = vmatprep.subr.mxu0 0.0
  %63 = vmatpush1.msra.mxu0 0.0
  %64 = vmatprep.subr.mxu0 0.0
  %65 = vmatpush1.msra.mxu0 0.0
  %66 = vmatprep.subr.mxu0 0.0
  %67 = vmatpush1.msra.mxu0 0.0
  %68 = vmatprep.subr.mxu0 0.0
  %69 = vmatpush1.msra.mxu0 0.0
  %70 = vmatprep.subr.mxu0 0.0
  %71 = vmatpush1.msra.mxu0 0.0
  %72 = vmatprep.subr.mxu0 0.0
  %73 = vmatpush1.msra.mxu0 0.0
  %74 = vmatprep.subr.mxu0 0.0
  %75 = vmatpush1.msra.mxu0 0.0
  %76 = vmatprep.subr.mxu0 0.0
  %77 = vmatpush1.msra.mxu0 0.0
  %78 = vmatprep.subr.mxu0 0.0
  %79 = vmatpush1.msra.mxu0 0.0
  %80 = vmatprep.subr.mxu0 0.0
  %81 = vmatpush1.msra.mxu0 0.0
  %82 = vmatprep.subr.mxu0 0.0
  %83 = vmatpush1.msra.mxu0 0.0
  %84 = vmatprep.subr.mxu0 0.0
  %85 = vmatpush1.msra.mxu0 0.0
  %86 = vmatprep.subr.mxu0 0.0
  %87 = vmatpush1.msra.mxu0 0.0
  %88 = vmatprep.subr.mxu0 0.0
  %89 = vmatpush1.msra.mxu0 0.0
  %90 = vmatprep.subr.mxu0 0.0
  %91 = vmatpush1.msra.mxu0 0.0
  %92 = vmatprep.subr.mxu0 0.0
  %93 = vmatpush1.msra.mxu0 0.0
  %94 = vmatprep.subr.mxu0 0.0
  %95 = vmatpush1.msra.mxu0 0.0
  %96 = vmatprep.subr.mxu0 0.0
  %97 = vmatpush1.msra.mxu0 0.0
  %98 = vmatprep.subr.mxu0 0.0
  %99 = vmatpush1.msra.mxu0 0.0
  %100 = vmatprep.subr.mxu0 0.0
  %101 = vmatpush1.msra.mxu0 0.0
  %102 = vmatprep.mubr.f32.mxu0 0.0
  %103 = vmatmul.mubr.f32.gmra.mrb[0].mxu0 %v33
  %v104 = vpop.f32.mrb[0].mxu0
  %v105 = vadd.f32 %v29, %v104
  %v106 = vpop.f32.mrb[0].mxu0
  %107 = vmatprep.mubr.f32.mxu0 0.0
  %108 = vmatmul.mubr.f32.gmra.mrb[0].mxu0 %v36
  %v109 = vpop.f32.mrb[0].mxu0
  %v110 = vadd.f32 %v29, %v109
  %v111 = vpop.f32.mrb[0].mxu0
  %112 = vdwg.mxu0
  %vm113 = vcmask 64512
  %114 = vst.msk [vmem:[%s5] sm:$0xff] %vm113, %v105
  %115 = vst.msk [vmem:[%s5 + $0x8] sm:$0xff] %vm113, %v110
  // Predicated region
  $region22: #{tacotron2_forward.27} parent=0 // pred_check
    _
  $region23: #{tacotron2_forward.27} parent=0 // pred_check_branch
    %117 = sbr.rel (0) target = $region25
  $region24: #{tacotron2_forward.27} parent=0 // pred_region
    _
  $region25: #{tacotron2_forward.27} parent=0 // pred_fallthru
    _
  // Predicated region
  $region26: #{tacotron2_forward.27} parent=0 // pred_check
    _
  $region27: #{tacotron2_forward.27} parent=0 // pred_check_branch
    %119 = sbr.rel (0) target = $region29
  $region28: #{tacotron2_forward.27} parent=0 // pred_region
    _
  $region29: #{tacotron2_forward.27} parent=0 // pred_fallthru
    _

</llo_original>
